<compile_context>
chip_gen: v7x
topology: tpu7x:2x2x1
jax: 0.10.0
libtpu: 0.0.40
codegen_flags: <defaults>
</compile_context>

<pallas_src>
import functools

import jax
import jax.numpy as jnp
from jax import lax
from jax.experimental import pallas as pl
from jax.experimental.pallas import tpu as pltpu


def _round_up(x, m):
    return pl.cdiv(x, m) * m


# ------------------- Pallas kernel 1: lane-dense conv matmul -----------------
# out^T (Cp, tm) = W (Cp, K) @ X^T (K, tm) + b, optional fused activation.

def _matmul_bias_act_kernel(x_ref, w_ref, b_ref, o_ref, *, act):
    y = jnp.dot(w_ref[...], x_ref[...], preferred_element_type=jnp.float32)
    y = y + b_ref[...]
    if act == "relu":
        y = jnp.maximum(y, 0.0)
    elif act == "tanh":
        y = jnp.tanh(y)
    o_ref[...] = y.astype(o_ref.dtype)


def matmul_t(w, b, xT, act="none"):
    """w: (Cp, K) row-padded weight, b: (Cout, 1) bias (Cout <= Cp),
    xT: (K, M) patch matrix.  Returns (Cout, M) = (w @ xT + b)[:Cout]."""
    Cp, K = w.shape
    cout = b.shape[0]
    _, M = xT.shape
    tm = 256 if M % 256 == 0 else 128
    Mp = _round_up(M, tm)
    if Mp != M:
        xT = jnp.pad(xT, ((0, 0), (0, Mp - M)))
    bp = b if cout == Cp else jnp.pad(b, ((0, Cp - cout), (0, 0)))

    out = pl.pallas_call(
        functools.partial(_matmul_bias_act_kernel, act=act),
        out_shape=jax.ShapeDtypeStruct((Cp, Mp), jnp.float32),
        grid_spec=pltpu.PrefetchScalarGridSpec(
            num_scalar_prefetch=0,
            grid=(Mp // tm,),
            in_specs=[
                pl.BlockSpec((K, tm), lambda i: (0, i)),   # patches (lane = M)
                pl.BlockSpec((Cp, K), lambda i: (0, 0)),   # resident weight
                pl.BlockSpec((Cp, 1), lambda i: (0, 0)),   # bias
            ],
            out_specs=pl.BlockSpec((Cp, tm), lambda i: (0, i)),
        ),
        compiler_params=pltpu.CompilerParams(
            dimension_semantics=("parallel",)),
    )(xT, w, bp)

    out = out[:cout] if cout != Cp else out
    return out[:, :M] if Mp != M else out


# --------- Pallas kernel 2: fused BatchNorm (+residual) (+ReLU) --------------
# Operates on the lane-dense (C, M) conv output; per-channel batch statistics
# are computed in-kernel (train-mode BatchNorm2d, biased variance).

def _bn_act_kernel(*refs, act, has_res, eps):
    if has_res:
        x_ref, g_ref, b_ref, r_ref, o_ref = refs
    else:
        x_ref, g_ref, b_ref, o_ref = refs
    x = x_ref[...]                                     # (8, M)
    inv_m = 1.0 / x.shape[1]
    mean = jnp.sum(x, axis=1, keepdims=True) * inv_m   # (8, 1)
    d = x - mean
    var = jnp.sum(d * d, axis=1, keepdims=True) * inv_m
    scale = g_ref[...] * lax.rsqrt(var + eps)
    shift = b_ref[...] - mean * scale
    y = x * scale + shift
    if has_res:
        y = y + r_ref[...]
    if act == "relu":
        y = jnp.maximum(y, 0.0)
    o_ref[...] = y


def batchnorm_act(x2d, gamma, beta, act="none", residual=None, eps=1e-5):
    """x2d: (C, M) with M = N*H*W.  Fused BN(+res)(+ReLU), lane-dense."""
    C, M = x2d.shape
    Rp = _round_up(C, 8)

    def pad_rows(a):
        if a.shape[0] == Rp:
            return a
        return jnp.pad(a, ((0, Rp - a.shape[0]),) + ((0, 0),) * (a.ndim - 1))

    has_res = residual is not None
    args = [pad_rows(x2d), pad_rows(gamma.reshape(C, 1)),
            pad_rows(beta.reshape(C, 1))]
    in_specs = [
        pl.BlockSpec((8, M), lambda i: (i, 0)),
        pl.BlockSpec((8, 1), lambda i: (i, 0)),
        pl.BlockSpec((8, 1), lambda i: (i, 0)),
    ]
    if has_res:
        args.append(pad_rows(residual))
        in_specs.append(pl.BlockSpec((8, M), lambda i: (i, 0)))

    out = pl.pallas_call(
        functools.partial(_bn_act_kernel, act=act, has_res=has_res, eps=eps),
        out_shape=jax.ShapeDtypeStruct((Rp, M), jnp.float32),
        grid_spec=pltpu.PrefetchScalarGridSpec(
            num_scalar_prefetch=0,
            grid=(Rp // 8,),
            in_specs=in_specs,
            out_specs=pl.BlockSpec((8, M), lambda i: (i, 0)),
        ),
        compiler_params=pltpu.CompilerParams(
            dimension_semantics=("parallel",)),
    )(*args)
    return out[:C] if Rp != C else out


# ------------------------------ conv glue ------------------------------------

def _im2col_T(x, k, stride):
    """x: (C, N, H, W) already spatially padded ->
    (C*k*k, N*Ho*Wo) patch matrix (K rows ordered (c, dy, dx), lane axis = M)."""
    C, N, H, W = x.shape
    Ho = (H - k) // stride + 1
    Wo = (W - k) // stride + 1
    cols = []
    for dy in range(k):
        for dx in range(k):
            cols.append(x[:, :, dy:dy + stride * Ho:stride,
                             dx:dx + stride * Wo:stride])
    p = jnp.stack(cols, axis=1)          # (C, k*k, N, Ho, Wo); lane dim preserved
    return p.reshape(C * k * k, N * Ho * Wo), Ho, Wo


def reflect_pad(x, p):
    return jnp.pad(x, ((0, 0), (0, 0), (p, p), (p, p)), mode="reflect")


def zero_pad(x, p):
    return jnp.pad(x, ((0, 0), (0, 0), (p, p), (p, p)))


def conv2d_cm(x, cp, stride=1, act="none"):
    """x: (Cin, N, H, W) already padded; cp: packed conv params.
    Returns ((Cout, N*Ho*Wo), Ho, Wo) in lane-dense channel-major form."""
    cin = x.shape[0]
    K = cp["w"].shape[1]
    k = int(round((K // cin) ** 0.5))
    xT, Ho, Wo = _im2col_T(x, k, stride)
    yT = matmul_t(cp["w"], cp["b"], xT, act=act)
    return yT, Ho, Wo


def conv_transpose2d_cm(x, tp):
    """ConvTranspose2d(3x3, stride=2, padding=1, output_padding=1, bias=False)
    via sub-pixel decomposition: one matmul over 2x2 patches of the un-dilated
    input produces all 4 output phases, which are then interleaved spatially.
    x: (Cin, N, H, W) -> (Cout, N, 2H, 2W)."""
    Cin, N, H, W = x.shape
    xp = jnp.pad(x, ((0, 0), (0, 0), (0, 1), (0, 1)))      # bottom/right zeros
    xT, _, _ = _im2col_T(xp, 2, 1)                         # (4*Cin, N*H*W)
    yT = matmul_t(tp["w"], tp["b"], xT)                    # (4*Cout, N*H*W)
    cout = yT.shape[0] // 4
    y = yT.reshape(cout, 2, 2, N, H, W)                    # (co, py, px, n, i, j)
    y = y.transpose(0, 3, 4, 1, 5, 2)                      # (co, n, i, py, j, px)
    return y.reshape(cout, N, 2 * H, 2 * W)


# --------------------------- weight packing (once at init) -------------------

def pack_conv_w(w):
    """torch Conv2d weight (Cout, Cin, k, k) -> (Cp, Cin*k*k), rows padded to 8."""
    cout, cin, k, _ = w.shape
    cp = int(_round_up(cout, 8))
    wm = w.reshape(cout, cin * k * k)
    if cp != cout:
        wm = jnp.pad(wm, ((0, cp - cout), (0, 0)))
    return wm


def pack_convT_w(w):
    """torch ConvTranspose2d weight (Cin, Cout, 3, 3) -> combined sub-pixel
    weight (4*Cout, 4*Cin): row = co*4 + phase(py,px), col = cin*4 + tap(dy,dx)."""
    cin, cout = w.shape[0], w.shape[1]
    z = jnp.zeros((cin, cout), w.dtype)
    coef = [
        [w[:, :, 1, 1], z,              z,              z             ],  # (0,0)
        [w[:, :, 1, 2], w[:, :, 1, 0],  z,              z             ],  # (0,1)
        [w[:, :, 2, 1], z,              w[:, :, 0, 1],  z             ],  # (1,0)
        [w[:, :, 2, 2], w[:, :, 2, 0],  w[:, :, 0, 2],  w[:, :, 0, 0]],   # (1,1)
    ]
    wc = jnp.stack([jnp.stack(row, axis=-1) for row in coef], axis=-2)
    wc = wc.transpose(1, 2, 0, 3).reshape(cout * 4, cin * 4)
    rp = int(_round_up(cout * 4, 8))
    if rp != cout * 4:
        wc = jnp.pad(wc, ((0, rp - cout * 4), (0, 0)))
    return wc


# --------------------------- ResnetGenerator ---------------------------------

def init_params(key, input_nc=3, output_nc=3, ngf=8, n_blocks=2):
    ks = iter(jax.random.split(key, 64))

    def conv(cout, cin, k):
        w = 0.05 * jax.random.normal(next(ks), (cout, cin, k, k), jnp.float32)
        return {"w": pack_conv_w(w), "b": jnp.zeros((cout, 1), jnp.float32)}

    def convT(cin, cout):
        w = 0.05 * jax.random.normal(next(ks), (cin, cout, 3, 3), jnp.float32)
        return {"w": pack_convT_w(w), "b": jnp.zeros((cout * 4, 1), jnp.float32)}

    def bn(c):
        return (1.0 + 0.1 * jax.random.normal(next(ks), (c,), jnp.float32),
                0.1 * jax.random.normal(next(ks), (c,), jnp.float32))

    p = {}
    p["c1"] = conv(ngf, input_nc, 7)
    p["bn1"] = bn(ngf)
    p["d1"] = conv(ngf * 2, ngf, 3)
    p["bnd1"] = bn(ngf * 2)
    p["d2"] = conv(ngf * 4, ngf * 2, 3)
    p["bnd2"] = bn(ngf * 4)
    c = ngf * 4
    p["blocks"] = []
    for _ in range(n_blocks):
        p["blocks"].append({
            "c1": conv(c, c, 3), "bn1": bn(c),
            "c2": conv(c, c, 3), "bn2": bn(c),
        })
    p["u1"] = convT(ngf * 4, ngf * 2)
    p["bnu1"] = bn(ngf * 2)
    p["u2"] = convT(ngf * 2, ngf)
    p["bnu2"] = bn(ngf)
    cf_w = 0.05 * jax.random.normal(next(ks), (output_nc, ngf, 7, 7), jnp.float32)
    cf_b = 0.1 * jax.random.normal(next(ks), (output_nc, 1), jnp.float32)
    p["cf"] = {"w": pack_conv_w(cf_w), "b": cf_b}
    return p


def resnet_generator_forward(x, p):
    # use_bias=False everywhere except the final conv (norm_layer is BatchNorm2d),
    # use_dropout=False, padding_type='reflect'.
    N = x.shape[0]
    h = jnp.transpose(x, (1, 0, 2, 3))                 # NCHW -> CNHW (once)

    # ReflectionPad2d(3) -> Conv 7x7 -> BN -> ReLU
    yT, Ho, Wo = conv2d_cm(reflect_pad(h, 3), p["c1"])
    yT = batchnorm_act(yT, *p["bn1"], act="relu")
    h = yT.reshape(yT.shape[0], N, Ho, Wo)

    # Two downsampling convs: Conv 3x3 s2 p1 -> BN -> ReLU
    yT, Ho, Wo = conv2d_cm(zero_pad(h, 1), p["d1"], stride=2)
    yT = batchnorm_act(yT, *p["bnd1"], act="relu")
    h = yT.reshape(yT.shape[0], N, Ho, Wo)

    yT, Ho, Wo = conv2d_cm(zero_pad(h, 1), p["d2"], stride=2)
    yT = batchnorm_act(yT, *p["bnd2"], act="relu")
    h = yT.reshape(yT.shape[0], N, Ho, Wo)

    # Resnet blocks: reflect-pad + 3x3 conv + BN + ReLU, reflect-pad + conv + BN, +skip.
    # NOTE: the provided ResnetBlock.forward omits `return out`; we implement the
    # canonical CycleGAN residual semantics out = x + conv_block(x).
    c = h.shape[0]
    for blk in p["blocks"]:
        res = h.reshape(c, N * Ho * Wo)
        tT, _, _ = conv2d_cm(reflect_pad(h, 1), blk["c1"])
        tT = batchnorm_act(tT, *blk["bn1"], act="relu")
        t = tT.reshape(c, N, Ho, Wo)
        tT, _, _ = conv2d_cm(reflect_pad(t, 1), blk["c2"])
        hT = batchnorm_act(tT, *blk["bn2"], act="none", residual=res)
        h = hT.reshape(c, N, Ho, Wo)

    # Two upsampling transposed convs: ConvT 3x3 s2 p1 op1 -> BN -> ReLU
    h = conv_transpose2d_cm(h, p["u1"])
    cU, _, Hu, Wu = h.shape
    yT = batchnorm_act(h.reshape(cU, N * Hu * Wu), *p["bnu1"], act="relu")
    h = yT.reshape(cU, N, Hu, Wu)

    h = conv_transpose2d_cm(h, p["u2"])
    cU, _, Hu, Wu = h.shape
    yT = batchnorm_act(h.reshape(cU, N * Hu * Wu), *p["bnu2"], act="relu")
    h = yT.reshape(cU, N, Hu, Wu)

    # Final: ReflectionPad2d(3) -> Conv 7x7 (with bias) -> Tanh (fused epilogue)
    yT, Ho, Wo = conv2d_cm(reflect_pad(h, 3), p["cf"], act="tanh")
    y = yT.reshape(yT.shape[0], N, Ho, Wo)
    return jnp.transpose(y, (1, 0, 2, 3))              # CNHW -> NCHW


if __name__ == "__main__":
    key = jax.random.PRNGKey(0)
    kx, kp = jax.random.split(key)
    # Small shapes: batch=2, input_nc=output_nc=3, spatial 32x32, ngf=8, n_blocks=2.
    # (spatial 32 / batch 2 keeps every M = N*Ho*Wo a multiple of 128 -> no runtime padding.)
    x = jax.random.normal(kx, (2, 3, 32, 32), jnp.float32)
    params = init_params(kp, input_nc=3, output_nc=3, ngf=8, n_blocks=2)

    fwd = jax.jit(resnet_generator_forward)
    y = fwd(x, params)
    jax.block_until_ready(y)
    assert y.shape == (2, 3, 32, 32)
    assert bool(jnp.all(jnp.isfinite(y)))
    print("KERNEL_OK")
</pallas_src>

<mosaic_0001>
module attributes {stable_mosaic.version = 11 : i64} {
  func.func @_matmul_bias_act_kernel(%arg0: i32, %arg1: memref<147x256xf32, #tpu.memory_space<vmem>>, %arg2: memref<8x147xf32, #tpu.memory_space<vmem>>, %arg3: memref<8x1xf32, #tpu.memory_space<vmem>>, %arg4: memref<8x256xf32, #tpu.memory_space<vmem>>) attributes {dimension_semantics = [#tpu.dimension_semantics<parallel>], iteration_bounds = array<i64: 8>, scalar_prefetch = 0 : i64, scratch_operands = 0 : i64, tpu.core_type = #tpu.core_type<tc>, window_params = [{transform_indices = @transform_0, window_bounds = array<i64: 147, 256>}, {pipeline_mode = #tpu.pipeline_mode<synchronous>, transform_indices = @transform_1, window_bounds = array<i64: 8, 147>}, {pipeline_mode = #tpu.pipeline_mode<synchronous>, transform_indices = @transform_2, window_bounds = array<i64: 8, 1>}, {transform_indices = @transform_3, window_bounds = array<i64: 8, 256>}]} {
    %c0 = arith.constant 0 : index
    %c0_0 = arith.constant 0 : index
    %0 = vector.load %arg2[%c0, %c0_0] : memref<8x147xf32, #tpu.memory_space<vmem>>, vector<8x147xf32>
    %c0_1 = arith.constant 0 : index
    %c0_2 = arith.constant 0 : index
    %1 = vector.load %arg1[%c0_1, %c0_2] : memref<147x256xf32, #tpu.memory_space<vmem>>, vector<147x256xf32>
    %cst = arith.constant dense<0.000000e+00> : vector<8x256xf32>
    %2 = tpu.matmul %0, %1, %cst {dimension_numbers = #tpu.dot_dimension_numbers<[1], [0], [0], [1], [0, 0, 1, 1], [], []>} : vector<8x147xf32>, vector<147x256xf32>, vector<8x256xf32> -> vector<8x256xf32>
    %c0_3 = arith.constant 0 : index
    %c0_4 = arith.constant 0 : index
    %3 = vector.load %arg3[%c0_3, %c0_4] : memref<8x1xf32, #tpu.memory_space<vmem>>, vector<8x1xf32>
    %4 = vector.broadcast %3 : vector<8x1xf32> to vector<8x256xf32>
    %5 = arith.addf %2, %4 : vector<8x256xf32>
    %c0_5 = arith.constant 0 : index
    %c0_6 = arith.constant 0 : index
    %6 = vector.load %arg4[%c0_5, %c0_6] : memref<8x256xf32, #tpu.memory_space<vmem>>, vector<8x256xf32>
    tpu.vector_store %arg4[%c0_5, %c0_6], %5 {strides = array<i32>} : memref<8x256xf32, #tpu.memory_space<vmem>>, vector<8x256xf32>,
    return
  }
  func.func @transform_0(%arg0: i32) -> (i32, i32) {
    %c0_i32 = arith.constant 0 : i32
    %c0_i32_0 = arith.constant 0 : i32
    return %c0_i32, %arg0 : i32, i32
  }
  func.func @transform_1(%arg0: i32) -> (i32, i32) {
    %c0_i32 = arith.constant 0 : i32
    %c0_i32_0 = arith.constant 0 : i32
    %c0_i32_1 = arith.constant 0 : i32
    return %c0_i32, %c0_i32_0 : i32, i32
  }
  func.func @transform_2(%arg0: i32) -> (i32, i32) {
    %c0_i32 = arith.constant 0 : i32
    %c0_i32_0 = arith.constant 0 : i32
    %c0_i32_1 = arith.constant 0 : i32
    return %c0_i32, %c0_i32_0 : i32, i32
  }
  func.func @transform_3(%arg0: i32) -> (i32, i32) {
    %c0_i32 = arith.constant 0 : i32
    %c0_i32_0 = arith.constant 0 : i32
    return %c0_i32, %arg0 : i32, i32
  }
}

module attributes {stable_mosaic.version = 11 : i64} {
  func.func @_bn_act_kernel(%arg0: i32, %arg1: memref<8x2048xf32, #tpu.memory_space<vmem>>, %arg2: memref<8x1xf32, #tpu.memory_space<vmem>>, %arg3: memref<8x1xf32, #tpu.memory_space<vmem>>, %arg4: memref<8x2048xf32, #tpu.memory_space<vmem>>) attributes {dimension_semantics = [#tpu.dimension_semantics<parallel>], iteration_bounds = array<i64: 1>, scalar_prefetch = 0 : i64, scratch_operands = 0 : i64, tpu.core_type = #tpu.core_type<tc>, window_params = [{transform_indices = @transform_0, window_bounds = array<i64: 8, 2048>}, {transform_indices = @transform_1, window_bounds = array<i64: 8, 1>}, {transform_indices = @transform_2, window_bounds = array<i64: 8, 1>}, {transform_indices = @transform_3, window_bounds = array<i64: 8, 2048>}]} {
    %c0 = arith.constant 0 : index
    %c0_0 = arith.constant 0 : index
    %0 = vector.load %arg1[%c0, %c0_0] : memref<8x2048xf32, #tpu.memory_space<vmem>>, vector<8x2048xf32>
    %cst = arith.constant dense<0.000000e+00> : vector<8xf32>
    %1 = vector.multi_reduction <add>, %0, %cst [1] : vector<8x2048xf32> to vector<8xf32>
    %2 = vector.shape_cast %1 : vector<8xf32> to vector<8x1xf32>
    %cst_1 = arith.constant 4.8828125E-4 : f32
    %3 = vector.broadcast %cst_1 : f32 to vector<8x1xf32>
    %4 = arith.mulf %2, %3 : vector<8x1xf32>
    %5 = vector.broadcast %4 : vector<8x1xf32> to vector<8x2048xf32>
    %6 = arith.subf %0, %5 : vector<8x2048xf32>
    %7 = arith.mulf %6, %6 : vector<8x2048xf32>
    %cst_2 = arith.constant dense<0.000000e+00> : vector<8xf32>
    %8 = vector.multi_reduction <add>, %7, %cst_2 [1] : vector<8x2048xf32> to vector<8xf32>
    %9 = vector.shape_cast %8 : vector<8xf32> to vector<8x1xf32>
    %cst_3 = arith.constant 4.8828125E-4 : f32
    %10 = vector.broadcast %cst_3 : f32 to vector<8x1xf32>
    %11 = arith.mulf %9, %10 : vector<8x1xf32>
    %c0_4 = arith.constant 0 : index
    %c0_5 = arith.constant 0 : index
    %12 = vector.load %arg2[%c0_4, %c0_5] : memref<8x1xf32, #tpu.memory_space<vmem>>, vector<8x1xf32>
    %cst_6 = arith.constant 9.99999974E-6 : f32
    %13 = vector.broadcast %cst_6 : f32 to vector<8x1xf32>
    %14 = arith.addf %11, %13 : vector<8x1xf32>
    %15 = math.rsqrt %14 : vector<8x1xf32>
    %16 = arith.mulf %12, %15 : vector<8x1xf32>
    %c0_7 = arith.constant 0 : index
    %c0_8 = arith.constant 0 : index
    %17 = vector.load %arg3[%c0_7, %c0_8] : memref<8x1xf32, #tpu.memory_space<vmem>>, vector<8x1xf32>
    %18 = arith.mulf %4, %16 : vector<8x1xf32>
    %19 = arith.subf %17, %18 : vector<8x1xf32>
    %20 = vector.broadcast %16 : vector<8x1xf32> to vector<8x2048xf32>
    %21 = arith.mulf %0, %20 : vector<8x2048xf32>
    %22 = vector.broadcast %19 : vector<8x1xf32> to vector<8x2048xf32>
    %23 = arith.addf %21, %22 : vector<8x2048xf32>
    %cst_9 = arith.constant 0.000000e+00 : f32
    %24 = vector.broadcast %cst_9 : f32 to vector<8x2048xf32>
    %25 = arith.maximumf %23, %24 : vector<8x2048xf32>
    %c0_10 = arith.constant 0 : index
    %c0_11 = arith.constant 0 : index
    %26 = vector.load %arg4[%c0_10, %c0_11] : memref<8x2048xf32, #tpu.memory_space<vmem>>, vector<8x2048xf32>
    tpu.vector_store %arg4[%c0_10, %c0_11], %25 {strides = array<i32>} : memref<8x2048xf32, #tpu.memory_space<vmem>>, vector<8x2048xf32>,
    return
  }
  func.func @transform_0(%arg0: i32) -> (i32, i32) {
    %c0_i32 = arith.constant 0 : i32
    %c0_i32_0 = arith.constant 0 : i32
    return %arg0, %c0_i32 : i32, i32
  }
  func.func @transform_1(%arg0: i32) -> (i32, i32) {
    %c0_i32 = arith.constant 0 : i32
    %c0_i32_0 = arith.constant 0 : i32
    return %arg0, %c0_i32 : i32, i32
  }
  func.func @transform_2(%arg0: i32) -> (i32, i32) {
    %c0_i32 = arith.constant 0 : i32
    %c0_i32_0 = arith.constant 0 : i32
    return %arg0, %c0_i32 : i32, i32
  }
  func.func @transform_3(%arg0: i32) -> (i32, i32) {
    %c0_i32 = arith.constant 0 : i32
    %c0_i32_0 = arith.constant 0 : i32
    return %arg0, %c0_i32 : i32, i32
  }
}

module attributes {stable_mosaic.version = 11 : i64} {
  func.func @_matmul_bias_act_kernel(%arg0: i32, %arg1: memref<72x256xf32, #tpu.memory_space<vmem>>, %arg2: memref<16x72xf32, #tpu.memory_space<vmem>>, %arg3: memref<16x1xf32, #tpu.memory_space<vmem>>, %arg4: memref<16x256xf32, #tpu.memory_space<vmem>>) attributes {dimension_semantics = [#tpu.dimension_semantics<parallel>], iteration_bounds = array<i64: 2>, scalar_prefetch = 0 : i64, scratch_operands = 0 : i64, tpu.core_type = #tpu.core_type<tc>, window_params = [{transform_indices = @transform_0, window_bounds = array<i64: 72, 256>}, {pipeline_mode = #tpu.pipeline_mode<synchronous>, transform_indices = @transform_1, window_bounds = array<i64: 16, 72>}, {pipeline_mode = #tpu.pipeline_mode<synchronous>, transform_indices = @transform_2, window_bounds = array<i64: 16, 1>}, {transform_indices = @transform_3, window_bounds = array<i64: 16, 256>}]} {
    %c0 = arith.constant 0 : index
    %c0_0 = arith.constant 0 : index
    %0 = vector.load %arg2[%c0, %c0_0] : memref<16x72xf32, #tpu.memory_space<vmem>>, vector<16x72xf32>
    %c0_1 = arith.constant 0 : index
    %c0_2 = arith.constant 0 : index
    %1 = vector.load %arg1[%c0_1, %c0_2] : memref<72x256xf32, #tpu.memory_space<vmem>>, vector<72x256xf32>
    %cst = arith.constant dense<0.000000e+00> : vector<16x256xf32>
    %2 = tpu.matmul %0, %1, %cst {dimension_numbers = #tpu.dot_dimension_numbers<[1], [0], [0], [1], [0, 0, 1, 1], [], []>} : vector<16x72xf32>, vector<72x256xf32>, vector<16x256xf32> -> vector<16x256xf32>
    %c0_3 = arith.constant 0 : index
    %c0_4 = arith.constant 0 : index
    %3 = vector.load %arg3[%c0_3, %c0_4] : memref<16x1xf32, #tpu.memory_space<vmem>>, vector<16x1xf32>
    %4 = vector.broadcast %3 : vector<16x1xf32> to vector<16x256xf32>
    %5 = arith.addf %2, %4 : vector<16x256xf32>
    %c0_5 = arith.constant 0 : index
    %c0_6 = arith.constant 0 : index
    %6 = vector.load %arg4[%c0_5, %c0_6] : memref<16x256xf32, #tpu.memory_space<vmem>>, vector<16x256xf32>
    tpu.vector_store %arg4[%c0_5, %c0_6], %5 {strides = array<i32>} : memref<16x256xf32, #tpu.memory_space<vmem>>, vector<16x256xf32>,
    return
  }
  func.func @transform_0(%arg0: i32) -> (i32, i32) {
    %c0_i32 = arith.constant 0 : i32
    %c0_i32_0 = arith.constant 0 : i32
    return %c0_i32, %arg0 : i32, i32
  }
  func.func @transform_1(%arg0: i32) -> (i32, i32) {
    %c0_i32 = arith.constant 0 : i32
    %c0_i32_0 = arith.constant 0 : i32
    %c0_i32_1 = arith.constant 0 : i32
    return %c0_i32, %c0_i32_0 : i32, i32
  }
  func.func @transform_2(%arg0: i32) -> (i32, i32) {
    %c0_i32 = arith.constant 0 : i32
    %c0_i32_0 = arith.constant 0 : i32
    %c0_i32_1 = arith.constant 0 : i32
    return %c0_i32, %c0_i32_0 : i32, i32
  }
  func.func @transform_3(%arg0: i32) -> (i32, i32) {
    %c0_i32 = arith.constant 0 : i32
    %c0_i32_0 = arith.constant 0 : i32
    return %c0_i32, %arg0 : i32, i32
  }
}

module attributes {stable_mosaic.version = 11 : i64} {
  func.func @_bn_act_kernel(%arg0: i32, %arg1: memref<8x512xf32, #tpu.memory_space<vmem>>, %arg2: memref<8x1xf32, #tpu.memory_space<vmem>>, %arg3: memref<8x1xf32, #tpu.memory_space<vmem>>, %arg4: memref<8x512xf32, #tpu.memory_space<vmem>>) attributes {dimension_semantics = [#tpu.dimension_semantics<parallel>], iteration_bounds = array<i64: 2>, scalar_prefetch = 0 : i64, scratch_operands = 0 : i64, tpu.core_type = #tpu.core_type<tc>, window_params = [{transform_indices = @transform_0, window_bounds = array<i64: 8, 512>}, {transform_indices = @transform_1, window_bounds = array<i64: 8, 1>}, {transform_indices = @transform_2, window_bounds = array<i64: 8, 1>}, {transform_indices = @transform_3, window_bounds = array<i64: 8, 512>}]} {
    %c0 = arith.constant 0 : index
    %c0_0 = arith.constant 0 : index
    %0 = vector.load %arg1[%c0, %c0_0] : memref<8x512xf32, #tpu.memory_space<vmem>>, vector<8x512xf32>
    %cst = arith.constant dense<0.000000e+00> : vector<8xf32>
    %1 = vector.multi_reduction <add>, %0, %cst [1] : vector<8x512xf32> to vector<8xf32>
    %2 = vector.shape_cast %1 : vector<8xf32> to vector<8x1xf32>
    %cst_1 = arith.constant 0.001953125 : f32
    %3 = vector.broadcast %cst_1 : f32 to vector<8x1xf32>
    %4 = arith.mulf %2, %3 : vector<8x1xf32>
    %5 = vector.broadcast %4 : vector<8x1xf32> to vector<8x512xf32>
    %6 = arith.subf %0, %5 : vector<8x512xf32>
    %7 = arith.mulf %6, %6 : vector<8x512xf32>
    %cst_2 = arith.constant dense<0.000000e+00> : vector<8xf32>
    %8 = vector.multi_reduction <add>, %7, %cst_2 [1] : vector<8x512xf32> to vector<8xf32>
    %9 = vector.shape_cast %8 : vector<8xf32> to vector<8x1xf32>
    %cst_3 = arith.constant 0.001953125 : f32
    %10 = vector.broadcast %cst_3 : f32 to vector<8x1xf32>
    %11 = arith.mulf %9, %10 : vector<8x1xf32>
    %c0_4 = arith.constant 0 : index
    %c0_5 = arith.constant 0 : index
    %12 = vector.load %arg2[%c0_4, %c0_5] : memref<8x1xf32, #tpu.memory_space<vmem>>, vector<8x1xf32>
    %cst_6 = arith.constant 9.99999974E-6 : f32
    %13 = vector.broadcast %cst_6 : f32 to vector<8x1xf32>
    %14 = arith.addf %11, %13 : vector<8x1xf32>
    %15 = math.rsqrt %14 : vector<8x1xf32>
    %16 = arith.mulf %12, %15 : vector<8x1xf32>
    %c0_7 = arith.constant 0 : index
    %c0_8 = arith.constant 0 : index
    %17 = vector.load %arg3[%c0_7, %c0_8] : memref<8x1xf32, #tpu.memory_space<vmem>>, vector<8x1xf32>
    %18 = arith.mulf %4, %16 : vector<8x1xf32>
    %19 = arith.subf %17, %18 : vector<8x1xf32>
    %20 = vector.broadcast %16 : vector<8x1xf32> to vector<8x512xf32>
    %21 = arith.mulf %0, %20 : vector<8x512xf32>
    %22 = vector.broadcast %19 : vector<8x1xf32> to vector<8x512xf32>
    %23 = arith.addf %21, %22 : vector<8x512xf32>
    %cst_9 = arith.constant 0.000000e+00 : f32
    %24 = vector.broadcast %cst_9 : f32 to vector<8x512xf32>
    %25 = arith.maximumf %23, %24 : vector<8x512xf32>
    %c0_10 = arith.constant 0 : index
    %c0_11 = arith.constant 0 : index
    %26 = vector.load %arg4[%c0_10, %c0_11] : memref<8x512xf32, #tpu.memory_space<vmem>>, vector<8x512xf32>
    tpu.vector_store %arg4[%c0_10, %c0_11], %25 {strides = array<i32>} : memref<8x512xf32, #tpu.memory_space<vmem>>, vector<8x512xf32>,
    return
  }
  func.func @transform_0(%arg0: i32) -> (i32, i32) {
    %c0_i32 = arith.constant 0 : i32
    %c0_i32_0 = arith.constant 0 : i32
    return %arg0, %c0_i32 : i32, i32
  }
  func.func @transform_1(%arg0: i32) -> (i32, i32) {
    %c0_i32 = arith.constant 0 : i32
    %c0_i32_0 = arith.constant 0 : i32
    return %arg0, %c0_i32 : i32, i32
  }
  func.func @transform_2(%arg0: i32) -> (i32, i32) {
    %c0_i32 = arith.constant 0 : i32
    %c0_i32_0 = arith.constant 0 : i32
    return %arg0, %c0_i32 : i32, i32
  }
  func.func @transform_3(%arg0: i32) -> (i32, i32) {
    %c0_i32 = arith.constant 0 : i32
    %c0_i32_0 = arith.constant 0 : i32
    return %arg0, %c0_i32 : i32, i32
  }
}

module attributes {stable_mosaic.version = 11 : i64} {
  func.func @_matmul_bias_act_kernel(%arg0: i32, %arg1: memref<144x128xf32, #tpu.memory_space<vmem>>, %arg2: memref<32x144xf32, #tpu.memory_space<vmem>>, %arg3: memref<32x1xf32, #tpu.memory_space<vmem>>, %arg4: memref<32x128xf32, #tpu.memory_space<vmem>>) attributes {dimension_semantics = [#tpu.dimension_semantics<parallel>], iteration_bounds = array<i64: 1>, scalar_prefetch = 0 : i64, scratch_operands = 0 : i64, tpu.core_type = #tpu.core_type<tc>, window_params = [{transform_indices = @transform_0, window_bounds = array<i64: 144, 128>}, {pipeline_mode = #tpu.pipeline_mode<synchronous>, transform_indices = @transform_1, window_bounds = array<i64: 32, 144>}, {pipeline_mode = #tpu.pipeline_mode<synchronous>, transform_indices = @transform_2, window_bounds = array<i64: 32, 1>}, {transform_indices = @transform_3, window_bounds = array<i64: 32, 128>}]} {
    %c0 = arith.constant 0 : index
    %c0_0 = arith.constant 0 : index
    %0 = vector.load %arg2[%c0, %c0_0] : memref<32x144xf32, #tpu.memory_space<vmem>>, vector<32x144xf32>
    %c0_1 = arith.constant 0 : index
    %c0_2 = arith.constant 0 : index
    %1 = vector.load %arg1[%c0_1, %c0_2] : memref<144x128xf32, #tpu.memory_space<vmem>>, vector<144x128xf32>
    %cst = arith.constant dense<0.000000e+00> : vector<32x128xf32>
    %2 = tpu.matmul %0, %1, %cst {dimension_numbers = #tpu.dot_dimension_numbers<[1], [0], [0], [1], [0, 0, 1, 1], [], []>} : vector<32x144xf32>, vector<144x128xf32>, vector<32x128xf32> -> vector<32x128xf32>
    %c0_3 = arith.constant 0 : index
    %c0_4 = arith.constant 0 : index
    %3 = vector.load %arg3[%c0_3, %c0_4] : memref<32x1xf32, #tpu.memory_space<vmem>>, vector<32x1xf32>
    %4 = vector.broadcast %3 : vector<32x1xf32> to vector<32x128xf32>
    %5 = arith.addf %2, %4 : vector<32x128xf32>
    %c0_5 = arith.constant 0 : index
    %c0_6 = arith.constant 0 : index
    %6 = vector.load %arg4[%c0_5, %c0_6] : memref<32x128xf32, #tpu.memory_space<vmem>>, vector<32x128xf32>
    tpu.vector_store %arg4[%c0_5, %c0_6], %5 {strides = array<i32>} : memref<32x128xf32, #tpu.memory_space<vmem>>, vector<32x128xf32>,
    return
  }
  func.func @transform_0(%arg0: i32) -> (i32, i32) {
    %c0_i32 = arith.constant 0 : i32
    %c0_i32_0 = arith.constant 0 : i32
    return %c0_i32, %arg0 : i32, i32
  }
  func.func @transform_1(%arg0: i32) -> (i32, i32) {
    %c0_i32 = arith.constant 0 : i32
    %c0_i32_0 = arith.constant 0 : i32
    %c0_i32_1 = arith.constant 0 : i32
    return %c0_i32, %c0_i32_0 : i32, i32
  }
  func.func @transform_2(%arg0: i32) -> (i32, i32) {
    %c0_i32 = arith.constant 0 : i32
    %c0_i32_0 = arith.constant 0 : i32
    %c0_i32_1 = arith.constant 0 : i32
    return %c0_i32, %c0_i32_0 : i32, i32
  }
  func.func @transform_3(%arg0: i32) -> (i32, i32) {
    %c0_i32 = arith.constant 0 : i32
    %c0_i32_0 = arith.constant 0 : i32
    return %c0_i32, %arg0 : i32, i32
  }
}

module attributes {stable_mosaic.version = 11 : i64} {
  func.func @_bn_act_kernel(%arg0: i32, %arg1: memref<8x128xf32, #tpu.memory_space<vmem>>, %arg2: memref<8x1xf32, #tpu.memory_space<vmem>>, %arg3: memref<8x1xf32, #tpu.memory_space<vmem>>, %arg4: memref<8x128xf32, #tpu.memory_space<vmem>>) attributes {dimension_semantics = [#tpu.dimension_semantics<parallel>], iteration_bounds = array<i64: 4>, scalar_prefetch = 0 : i64, scratch_operands = 0 : i64, tpu.core_type = #tpu.core_type<tc>, window_params = [{transform_indices = @transform_0, window_bounds = array<i64: 8, 128>}, {transform_indices = @transform_1, window_bounds = array<i64: 8, 1>}, {transform_indices = @transform_2, window_bounds = array<i64: 8, 1>}, {transform_indices = @transform_3, window_bounds = array<i64: 8, 128>}]} {
    %c0 = arith.constant 0 : index
    %c0_0 = arith.constant 0 : index
    %0 = vector.load %arg1[%c0, %c0_0] : memref<8x128xf32, #tpu.memory_space<vmem>>, vector<8x128xf32>
    %cst = arith.constant dense<0.000000e+00> : vector<8xf32>
    %1 = vector.multi_reduction <add>, %0, %cst [1] : vector<8x128xf32> to vector<8xf32>
    %2 = vector.shape_cast %1 : vector<8xf32> to vector<8x1xf32>
    %cst_1 = arith.constant 7.812500e-03 : f32
    %3 = vector.broadcast %cst_1 : f32 to vector<8x1xf32>
    %4 = arith.mulf %2, %3 : vector<8x1xf32>
    %5 = vector.broadcast %4 : vector<8x1xf32> to vector<8x128xf32>
    %6 = arith.subf %0, %5 : vector<8x128xf32>
    %7 = arith.mulf %6, %6 : vector<8x128xf32>
    %cst_2 = arith.constant dense<0.000000e+00> : vector<8xf32>
    %8 = vector.multi_reduction <add>, %7, %cst_2 [1] : vector<8x128xf32> to vector<8xf32>
    %9 = vector.shape_cast %8 : vector<8xf32> to vector<8x1xf32>
    %cst_3 = arith.constant 7.812500e-03 : f32
    %10 = vector.broadcast %cst_3 : f32 to vector<8x1xf32>
    %11 = arith.mulf %9, %10 : vector<8x1xf32>
    %c0_4 = arith.constant 0 : index
    %c0_5 = arith.constant 0 : index
    %12 = vector.load %arg2[%c0_4, %c0_5] : memref<8x1xf32, #tpu.memory_space<vmem>>, vector<8x1xf32>
    %cst_6 = arith.constant 9.99999974E-6 : f32
    %13 = vector.broadcast %cst_6 : f32 to vector<8x1xf32>
    %14 = arith.addf %11, %13 : vector<8x1xf32>
    %15 = math.rsqrt %14 : vector<8x1xf32>
    %16 = arith.mulf %12, %15 : vector<8x1xf32>
    %c0_7 = arith.constant 0 : index
    %c0_8 = arith.constant 0 : index
    %17 = vector.load %arg3[%c0_7, %c0_8] : memref<8x1xf32, #tpu.memory_space<vmem>>, vector<8x1xf32>
    %18 = arith.mulf %4, %16 : vector<8x1xf32>
    %19 = arith.subf %17, %18 : vector<8x1xf32>
    %20 = vector.broadcast %16 : vector<8x1xf32> to vector<8x128xf32>
    %21 = arith.mulf %0, %20 : vector<8x128xf32>
    %22 = vector.broadcast %19 : vector<8x1xf32> to vector<8x128xf32>
    %23 = arith.addf %21, %22 : vector<8x128xf32>
    %cst_9 = arith.constant 0.000000e+00 : f32
    %24 = vector.broadcast %cst_9 : f32 to vector<8x128xf32>
    %25 = arith.maximumf %23, %24 : vector<8x128xf32>
    %c0_10 = arith.constant 0 : index
    %c0_11 = arith.constant 0 : index
    %26 = vector.load %arg4[%c0_10, %c0_11] : memref<8x128xf32, #tpu.memory_space<vmem>>, vector<8x128xf32>
    tpu.vector_store %arg4[%c0_10, %c0_11], %25 {strides = array<i32>} : memref<8x128xf32, #tpu.memory_space<vmem>>, vector<8x128xf32>,
    return
  }
  func.func @transform_0(%arg0: i32) -> (i32, i32) {
    %c0_i32 = arith.constant 0 : i32
    %c0_i32_0 = arith.constant 0 : i32
    return %arg0, %c0_i32 : i32, i32
  }
  func.func @transform_1(%arg0: i32) -> (i32, i32) {
    %c0_i32 = arith.constant 0 : i32
    %c0_i32_0 = arith.constant 0 : i32
    return %arg0, %c0_i32 : i32, i32
  }
  func.func @transform_2(%arg0: i32) -> (i32, i32) {
    %c0_i32 = arith.constant 0 : i32
    %c0_i32_0 = arith.constant 0 : i32
    return %arg0, %c0_i32 : i32, i32
  }
  func.func @transform_3(%arg0: i32) -> (i32, i32) {
    %c0_i32 = arith.constant 0 : i32
    %c0_i32_0 = arith.constant 0 : i32
    return %arg0, %c0_i32 : i32, i32
  }
}

module attributes {stable_mosaic.version = 11 : i64} {
  func.func @_matmul_bias_act_kernel(%arg0: i32, %arg1: memref<288x128xf32, #tpu.memory_space<vmem>>, %arg2: memref<32x288xf32, #tpu.memory_space<vmem>>, %arg3: memref<32x1xf32, #tpu.memory_space<vmem>>, %arg4: memref<32x128xf32, #tpu.memory_space<vmem>>) attributes {dimension_semantics = [#tpu.dimension_semantics<parallel>], iteration_bounds = array<i64: 1>, scalar_prefetch = 0 : i64, scratch_operands = 0 : i64, tpu.core_type = #tpu.core_type<tc>, window_params = [{transform_indices = @transform_0, window_bounds = array<i64: 288, 128>}, {pipeline_mode = #tpu.pipeline_mode<synchronous>, transform_indices = @transform_1, window_bounds = array<i64: 32, 288>}, {pipeline_mode = #tpu.pipeline_mode<synchronous>, transform_indices = @transform_2, window_bounds = array<i64: 32, 1>}, {transform_indices = @transform_3, window_bounds = array<i64: 32, 128>}]} {
    %c0 = arith.constant 0 : index
    %c0_0 = arith.constant 0 : index
    %0 = vector.load %arg2[%c0, %c0_0] : memref<32x288xf32, #tpu.memory_space<vmem>>, vector<32x288xf32>
    %c0_1 = arith.constant 0 : index
    %c0_2 = arith.constant 0 : index
    %1 = vector.load %arg1[%c0_1, %c0_2] : memref<288x128xf32, #tpu.memory_space<vmem>>, vector<288x128xf32>
    %cst = arith.constant dense<0.000000e+00> : vector<32x128xf32>
    %2 = tpu.matmul %0, %1, %cst {dimension_numbers = #tpu.dot_dimension_numbers<[1], [0], [0], [1], [0, 0, 1, 1], [], []>} : vector<32x288xf32>, vector<288x128xf32>, vector<32x128xf32> -> vector<32x128xf32>
    %c0_3 = arith.constant 0 : index
    %c0_4 = arith.constant 0 : index
    %3 = vector.load %arg3[%c0_3, %c0_4] : memref<32x1xf32, #tpu.memory_space<vmem>>, vector<32x1xf32>
    %4 = vector.broadcast %3 : vector<32x1xf32> to vector<32x128xf32>
    %5 = arith.addf %2, %4 : vector<32x128xf32>
    %c0_5 = arith.constant 0 : index
    %c0_6 = arith.constant 0 : index
    %6 = vector.load %arg4[%c0_5, %c0_6] : memref<32x128xf32, #tpu.memory_space<vmem>>, vector<32x128xf32>
    tpu.vector_store %arg4[%c0_5, %c0_6], %5 {strides = array<i32>} : memref<32x128xf32, #tpu.memory_space<vmem>>, vector<32x128xf32>,
    return
  }
  func.func @transform_0(%arg0: i32) -> (i32, i32) {
    %c0_i32 = arith.constant 0 : i32
    %c0_i32_0 = arith.constant 0 : i32
    return %c0_i32, %arg0 : i32, i32
  }
  func.func @transform_1(%arg0: i32) -> (i32, i32) {
    %c0_i32 = arith.constant 0 : i32
    %c0_i32_0 = arith.constant 0 : i32
    %c0_i32_1 = arith.constant 0 : i32
    return %c0_i32, %c0_i32_0 : i32, i32
  }
  func.func @transform_2(%arg0: i32) -> (i32, i32) {
    %c0_i32 = arith.constant 0 : i32
    %c0_i32_0 = arith.constant 0 : i32
    %c0_i32_1 = arith.constant 0 : i32
    return %c0_i32, %c0_i32_0 : i32, i32
  }
  func.func @transform_3(%arg0: i32) -> (i32, i32) {
    %c0_i32 = arith.constant 0 : i32
    %c0_i32_0 = arith.constant 0 : i32
    return %c0_i32, %arg0 : i32, i32
  }
}

module attributes {stable_mosaic.version = 11 : i64} {
  func.func @_bn_act_kernel(%arg0: i32, %arg1: memref<8x128xf32, #tpu.memory_space<vmem>>, %arg2: memref<8x1xf32, #tpu.memory_space<vmem>>, %arg3: memref<8x1xf32, #tpu.memory_space<vmem>>, %arg4: memref<8x128xf32, #tpu.memory_space<vmem>>, %arg5: memref<8x128xf32, #tpu.memory_space<vmem>>) attributes {dimension_semantics = [#tpu.dimension_semantics<parallel>], iteration_bounds = array<i64: 4>, scalar_prefetch = 0 : i64, scratch_operands = 0 : i64, tpu.core_type = #tpu.core_type<tc>, window_params = [{transform_indices = @transform_0, window_bounds = array<i64: 8, 128>}, {transform_indices = @transform_1, window_bounds = array<i64: 8, 1>}, {transform_indices = @transform_2, window_bounds = array<i64: 8, 1>}, {transform_indices = @transform_3, window_bounds = array<i64: 8, 128>}, {transform_indices = @transform_4, window_bounds = array<i64: 8, 128>}]} {
    %c0 = arith.constant 0 : index
    %c0_0 = arith.constant 0 : index
    %0 = vector.load %arg1[%c0, %c0_0] : memref<8x128xf32, #tpu.memory_space<vmem>>, vector<8x128xf32>
    %cst = arith.constant dense<0.000000e+00> : vector<8xf32>
    %1 = vector.multi_reduction <add>, %0, %cst [1] : vector<8x128xf32> to vector<8xf32>
    %2 = vector.shape_cast %1 : vector<8xf32> to vector<8x1xf32>
    %cst_1 = arith.constant 7.812500e-03 : f32
    %3 = vector.broadcast %cst_1 : f32 to vector<8x1xf32>
    %4 = arith.mulf %2, %3 : vector<8x1xf32>
    %5 = vector.broadcast %4 : vector<8x1xf32> to vector<8x128xf32>
    %6 = arith.subf %0, %5 : vector<8x128xf32>
    %7 = arith.mulf %6, %6 : vector<8x128xf32>
    %cst_2 = arith.constant dense<0.000000e+00> : vector<8xf32>
    %8 = vector.multi_reduction <add>, %7, %cst_2 [1] : vector<8x128xf32> to vector<8xf32>
    %9 = vector.shape_cast %8 : vector<8xf32> to vector<8x1xf32>
    %cst_3 = arith.constant 7.812500e-03 : f32
    %10 = vector.broadcast %cst_3 : f32 to vector<8x1xf32>
    %11 = arith.mulf %9, %10 : vector<8x1xf32>
    %c0_4 = arith.constant 0 : index
    %c0_5 = arith.constant 0 : index
    %12 = vector.load %arg2[%c0_4, %c0_5] : memref<8x1xf32, #tpu.memory_space<vmem>>, vector<8x1xf32>
    %cst_6 = arith.constant 9.99999974E-6 : f32
    %13 = vector.broadcast %cst_6 : f32 to vector<8x1xf32>
    %14 = arith.addf %11, %13 : vector<8x1xf32>
    %15 = math.rsqrt %14 : vector<8x1xf32>
    %16 = arith.mulf %12, %15 : vector<8x1xf32>
    %c0_7 = arith.constant 0 : index
    %c0_8 = arith.constant 0 : index
    %17 = vector.load %arg3[%c0_7, %c0_8] : memref<8x1xf32, #tpu.memory_space<vmem>>, vector<8x1xf32>
    %18 = arith.mulf %4, %16 : vector<8x1xf32>
    %19 = arith.subf %17, %18 : vector<8x1xf32>
    %20 = vector.broadcast %16 : vector<8x1xf32> to vector<8x128xf32>
    %21 = arith.mulf %0, %20 : vector<8x128xf32>
    %22 = vector.broadcast %19 : vector<8x1xf32> to vector<8x128xf32>
    %23 = arith.addf %21, %22 : vector<8x128xf32>
    %c0_9 = arith.constant 0 : index
    %c0_10 = arith.constant 0 : index
    %24 = vector.load %arg4[%c0_9, %c0_10] : memref<8x128xf32, #tpu.memory_space<vmem>>, vector<8x128xf32>
    %25 = arith.addf %23, %24 : vector<8x128xf32>
    %c0_11 = arith.constant 0 : index
    %c0_12 = arith.constant 0 : index
    %26 = vector.load %arg5[%c0_11, %c0_12] : memref<8x128xf32, #tpu.memory_space<vmem>>, vector<8x128xf32>
    tpu.vector_store %arg5[%c0_11, %c0_12], %25 {strides = array<i32>} : memref<8x128xf32, #tpu.memory_space<vmem>>, vector<8x128xf32>,
    return
  }
  func.func @transform_0(%arg0: i32) -> (i32, i32) {
    %c0_i32 = arith.constant 0 : i32
    %c0_i32_0 = arith.constant 0 : i32
    return %arg0, %c0_i32 : i32, i32
  }
  func.func @transform_1(%arg0: i32) -> (i32, i32) {
    %c0_i32 = arith.constant 0 : i32
    %c0_i32_0 = arith.constant 0 : i32
    return %arg0, %c0_i32 : i32, i32
  }
  func.func @transform_2(%arg0: i32) -> (i32, i32) {
    %c0_i32 = arith.constant 0 : i32
    %c0_i32_0 = arith.constant 0 : i32
    return %arg0, %c0_i32 : i32, i32
  }
  func.func @transform_3(%arg0: i32) -> (i32, i32) {
    %c0_i32 = arith.constant 0 : i32
    %c0_i32_0 = arith.constant 0 : i32
    return %arg0, %c0_i32 : i32, i32
  }
  func.func @transform_4(%arg0: i32) -> (i32, i32) {
    %c0_i32 = arith.constant 0 : i32
    %c0_i32_0 = arith.constant 0 : i32
    return %arg0, %c0_i32 : i32, i32
  }
}

module attributes {stable_mosaic.version = 11 : i64} {
  func.func @_matmul_bias_act_kernel(%arg0: i32, %arg1: memref<128x128xf32, #tpu.memory_space<vmem>>, %arg2: memref<64x128xf32, #tpu.memory_space<vmem>>, %arg3: memref<64x1xf32, #tpu.memory_space<vmem>>, %arg4: memref<64x128xf32, #tpu.memory_space<vmem>>) attributes {dimension_semantics = [#tpu.dimension_semantics<parallel>], iteration_bounds = array<i64: 1>, scalar_prefetch = 0 : i64, scratch_operands = 0 : i64, tpu.core_type = #tpu.core_type<tc>, window_params = [{transform_indices = @transform_0, window_bounds = array<i64: 128, 128>}, {pipeline_mode = #tpu.pipeline_mode<synchronous>, transform_indices = @transform_1, window_bounds = array<i64: 64, 128>}, {pipeline_mode = #tpu.pipeline_mode<synchronous>, transform_indices = @transform_2, window_bounds = array<i64: 64, 1>}, {transform_indices = @transform_3, window_bounds = array<i64: 64, 128>}]} {
    %c0 = arith.constant 0 : index
    %c0_0 = arith.constant 0 : index
    %0 = vector.load %arg2[%c0, %c0_0] : memref<64x128xf32, #tpu.memory_space<vmem>>, vector<64x128xf32>
    %c0_1 = arith.constant 0 : index
    %c0_2 = arith.constant 0 : index
    %1 = vector.load %arg1[%c0_1, %c0_2] : memref<128x128xf32, #tpu.memory_space<vmem>>, vector<128x128xf32>
    %cst = arith.constant dense<0.000000e+00> : vector<64x128xf32>
    %2 = tpu.matmul %0, %1, %cst {dimension_numbers = #tpu.dot_dimension_numbers<[1], [0], [0], [1], [0, 0, 1, 1], [], []>} : vector<64x128xf32>, vector<128x128xf32>, vector<64x128xf32> -> vector<64x128xf32>
    %c0_3 = arith.constant 0 : index
    %c0_4 = arith.constant 0 : index
    %3 = vector.load %arg3[%c0_3, %c0_4] : memref<64x1xf32, #tpu.memory_space<vmem>>, vector<64x1xf32>
    %4 = vector.broadcast %3 : vector<64x1xf32> to vector<64x128xf32>
    %5 = arith.addf %2, %4 : vector<64x128xf32>
    %c0_5 = arith.constant 0 : index
    %c0_6 = arith.constant 0 : index
    %6 = vector.load %arg4[%c0_5, %c0_6] : memref<64x128xf32, #tpu.memory_space<vmem>>, vector<64x128xf32>
    tpu.vector_store %arg4[%c0_5, %c0_6], %5 {strides = array<i32>} : memref<64x128xf32, #tpu.memory_space<vmem>>, vector<64x128xf32>,
    return
  }
  func.func @transform_0(%arg0: i32) -> (i32, i32) {
    %c0_i32 = arith.constant 0 : i32
    %c0_i32_0 = arith.constant 0 : i32
    return %c0_i32, %arg0 : i32, i32
  }
  func.func @transform_1(%arg0: i32) -> (i32, i32) {
    %c0_i32 = arith.constant 0 : i32
    %c0_i32_0 = arith.constant 0 : i32
    %c0_i32_1 = arith.constant 0 : i32
    return %c0_i32, %c0_i32_0 : i32, i32
  }
  func.func @transform_2(%arg0: i32) -> (i32, i32) {
    %c0_i32 = arith.constant 0 : i32
    %c0_i32_0 = arith.constant 0 : i32
    %c0_i32_1 = arith.constant 0 : i32
    return %c0_i32, %c0_i32_0 : i32, i32
  }
  func.func @transform_3(%arg0: i32) -> (i32, i32) {
    %c0_i32 = arith.constant 0 : i32
    %c0_i32_0 = arith.constant 0 : i32
    return %c0_i32, %arg0 : i32, i32
  }
}

module attributes {stable_mosaic.version = 11 : i64} {
  func.func @_matmul_bias_act_kernel(%arg0: i32, %arg1: memref<64x256xf32, #tpu.memory_space<vmem>>, %arg2: memref<32x64xf32, #tpu.memory_space<vmem>>, %arg3: memref<32x1xf32, #tpu.memory_space<vmem>>, %arg4: memref<32x256xf32, #tpu.memory_space<vmem>>) attributes {dimension_semantics = [#tpu.dimension_semantics<parallel>], iteration_bounds = array<i64: 2>, scalar_prefetch = 0 : i64, scratch_operands = 0 : i64, tpu.core_type = #tpu.core_type<tc>, window_params = [{transform_indices = @transform_0, window_bounds = array<i64: 64, 256>}, {pipeline_mode = #tpu.pipeline_mode<synchronous>, transform_indices = @transform_1, window_bounds = array<i64: 32, 64>}, {pipeline_mode = #tpu.pipeline_mode<synchronous>, transform_indices = @transform_2, window_bounds = array<i64: 32, 1>}, {transform_indices = @transform_3, window_bounds = array<i64: 32, 256>}]} {
    %c0 = arith.constant 0 : index
    %c0_0 = arith.constant 0 : index
    %0 = vector.load %arg2[%c0, %c0_0] : memref<32x64xf32, #tpu.memory_space<vmem>>, vector<32x64xf32>
    %c0_1 = arith.constant 0 : index
    %c0_2 = arith.constant 0 : index
    %1 = vector.load %arg1[%c0_1, %c0_2] : memref<64x256xf32, #tpu.memory_space<vmem>>, vector<64x256xf32>
    %cst = arith.constant dense<0.000000e+00> : vector<32x256xf32>
    %2 = tpu.matmul %0, %1, %cst {dimension_numbers = #tpu.dot_dimension_numbers<[1], [0], [0], [1], [0, 0, 1, 1], [], []>} : vector<32x64xf32>, vector<64x256xf32>, vector<32x256xf32> -> vector<32x256xf32>
    %c0_3 = arith.constant 0 : index
    %c0_4 = arith.constant 0 : index
    %3 = vector.load %arg3[%c0_3, %c0_4] : memref<32x1xf32, #tpu.memory_space<vmem>>, vector<32x1xf32>
    %4 = vector.broadcast %3 : vector<32x1xf32> to vector<32x256xf32>
    %5 = arith.addf %2, %4 : vector<32x256xf32>
    %c0_5 = arith.constant 0 : index
    %c0_6 = arith.constant 0 : index
    %6 = vector.load %arg4[%c0_5, %c0_6] : memref<32x256xf32, #tpu.memory_space<vmem>>, vector<32x256xf32>
    tpu.vector_store %arg4[%c0_5, %c0_6], %5 {strides = array<i32>} : memref<32x256xf32, #tpu.memory_space<vmem>>, vector<32x256xf32>,
    return
  }
  func.func @transform_0(%arg0: i32) -> (i32, i32) {
    %c0_i32 = arith.constant 0 : i32
    %c0_i32_0 = arith.constant 0 : i32
    return %c0_i32, %arg0 : i32, i32
  }
  func.func @transform_1(%arg0: i32) -> (i32, i32) {
    %c0_i32 = arith.constant 0 : i32
    %c0_i32_0 = arith.constant 0 : i32
    %c0_i32_1 = arith.constant 0 : i32
    return %c0_i32, %c0_i32_0 : i32, i32
  }
  func.func @transform_2(%arg0: i32) -> (i32, i32) {
    %c0_i32 = arith.constant 0 : i32
    %c0_i32_0 = arith.constant 0 : i32
    %c0_i32_1 = arith.constant 0 : i32
    return %c0_i32, %c0_i32_0 : i32, i32
  }
  func.func @transform_3(%arg0: i32) -> (i32, i32) {
    %c0_i32 = arith.constant 0 : i32
    %c0_i32_0 = arith.constant 0 : i32
    return %c0_i32, %arg0 : i32, i32
  }
}

module attributes {stable_mosaic.version = 11 : i64} {
  func.func @_matmul_bias_act_kernel(%arg0: i32, %arg1: memref<392x256xf32, #tpu.memory_space<vmem>>, %arg2: memref<8x392xf32, #tpu.memory_space<vmem>>, %arg3: memref<8x1xf32, #tpu.memory_space<vmem>>, %arg4: memref<8x256xf32, #tpu.memory_space<vmem>>) attributes {dimension_semantics = [#tpu.dimension_semantics<parallel>], iteration_bounds = array<i64: 8>, scalar_prefetch = 0 : i64, scratch_operands = 0 : i64, tpu.core_type = #tpu.core_type<tc>, window_params = [{transform_indices = @transform_0, window_bounds = array<i64: 392, 256>}, {pipeline_mode = #tpu.pipeline_mode<synchronous>, transform_indices = @transform_1, window_bounds = array<i64: 8, 392>}, {pipeline_mode = #tpu.pipeline_mode<synchronous>, transform_indices = @transform_2, window_bounds = array<i64: 8, 1>}, {transform_indices = @transform_3, window_bounds = array<i64: 8, 256>}]} {
    %c0 = arith.constant 0 : index
    %c0_0 = arith.constant 0 : index
    %0 = vector.load %arg2[%c0, %c0_0] : memref<8x392xf32, #tpu.memory_space<vmem>>, vector<8x392xf32>
    %c0_1 = arith.constant 0 : index
    %c0_2 = arith.constant 0 : index
    %1 = vector.load %arg1[%c0_1, %c0_2] : memref<392x256xf32, #tpu.memory_space<vmem>>, vector<392x256xf32>
    %cst = arith.constant dense<0.000000e+00> : vector<8x256xf32>
    %2 = tpu.matmul %0, %1, %cst {dimension_numbers = #tpu.dot_dimension_numbers<[1], [0], [0], [1], [0, 0, 1, 1], [], []>} : vector<8x392xf32>, vector<392x256xf32>, vector<8x256xf32> -> vector<8x256xf32>
    %c0_3 = arith.constant 0 : index
    %c0_4 = arith.constant 0 : index
    %3 = vector.load %arg3[%c0_3, %c0_4] : memref<8x1xf32, #tpu.memory_space<vmem>>, vector<8x1xf32>
    %4 = vector.broadcast %3 : vector<8x1xf32> to vector<8x256xf32>
    %5 = arith.addf %2, %4 : vector<8x256xf32>
    %6 = math.tanh %5 : vector<8x256xf32>
    %c0_5 = arith.constant 0 : index
    %c0_6 = arith.constant 0 : index
    %7 = vector.load %arg4[%c0_5, %c0_6] : memref<8x256xf32, #tpu.memory_space<vmem>>, vector<8x256xf32>
    tpu.vector_store %arg4[%c0_5, %c0_6], %6 {strides = array<i32>} : memref<8x256xf32, #tpu.memory_space<vmem>>, vector<8x256xf32>,
    return
  }
  func.func @transform_0(%arg0: i32) -> (i32, i32) {
    %c0_i32 = arith.constant 0 : i32
    %c0_i32_0 = arith.constant 0 : i32
    return %c0_i32, %arg0 : i32, i32
  }
  func.func @transform_1(%arg0: i32) -> (i32, i32) {
    %c0_i32 = arith.constant 0 : i32
    %c0_i32_0 = arith.constant 0 : i32
    %c0_i32_1 = arith.constant 0 : i32
    return %c0_i32, %c0_i32_0 : i32, i32
  }
  func.func @transform_2(%arg0: i32) -> (i32, i32) {
    %c0_i32 = arith.constant 0 : i32
    %c0_i32_0 = arith.constant 0 : i32
    %c0_i32_1 = arith.constant 0 : i32
    return %c0_i32, %c0_i32_0 : i32, i32
  }
  func.func @transform_3(%arg0: i32) -> (i32, i32) {
    %c0_i32 = arith.constant 0 : i32
    %c0_i32_0 = arith.constant 0 : i32
    return %c0_i32, %arg0 : i32, i32
  }
}

</mosaic_0001>

<llo_original>
// kernel: resnet_generator_forward.20
$region0: #{resnet_generator_forward.20}
  #allocation0 [shape = 'u32[]', space=smem, size = 0x4, offset = 0x4, fixed_abs, tag = 'smem constant byte address 0x4 - core index']
  #allocation1 [shape = 'u32[144,128]{1,0:T(1,128)}', space=vmem, size = 0x12000, scoped, tag = 'internal scratch']
  %s0 = inlined_call_operand.vmem [shape: f32[8,2048], index: 0, kind: input, shape index: {}]
  %s1 = inlined_call_operand.vmem [shape: f32[8,1], index: 1, kind: input, shape index: {}]
  %s2 = inlined_call_operand.vmem [shape: f32[8,1], index: 2, kind: input, shape index: {}]
  %s3 = inlined_call_operand.vmem [shape: f32[8,2048], index: 3, kind: output, shape index: {}]
  %s4 = sld [smem:[#allocation0]]
  $region22: #{resnet_generator_forward.20} parent=0
    _
  %s6 = ssub.s32 1, %s4
  %s7 = scalar_select 0, %s6, %s4
  // Predicated region
  $region2: #{resnet_generator_forward.20} parent=0 // pred_check
    _
  $region3: #{resnet_generator_forward.20} parent=0 // pred_check_branch
    %9 = sbr.rel (0) target = $region5
  $region4: #{resnet_generator_forward.20} parent=0 // pred_region
    _
  $region5: #{resnet_generator_forward.20} parent=0 // pred_fallthru
    _
  // Predicated region
  $region6: #{resnet_generator_forward.20} parent=0 // pred_check
    _
  $region7: #{resnet_generator_forward.20} parent=0 // pred_check_branch
    %11 = sbr.rel (0) target = $region9
  $region8: #{resnet_generator_forward.20} parent=0 // pred_region
    _
  $region9: #{resnet_generator_forward.20} parent=0 // pred_fallthru
    _
  // Predicated region
  $region10: #{resnet_generator_forward.20} parent=0 // pred_check
    _
  $region11: #{resnet_generator_forward.20} parent=0 // pred_check_branch
    %13 = sbr.rel (0) target = $region13
  $region12: #{resnet_generator_forward.20} parent=0 // pred_region
    _
  $region13: #{resnet_generator_forward.20} parent=0 // pred_fallthru
    _
  %v14 = vld [vmem:[%s0] sm:$0xff]
  %v15 = vld [vmem:[%s0 + $0x8] sm:$0xff]
  %v16 = vld [vmem:[%s0 + $0x10] sm:$0xff]
  %v17 = vld [vmem:[%s0 + $0x18] sm:$0xff]
  %v18 = vld [vmem:[%s0 + $0x20] sm:$0xff]
  %v19 = vld [vmem:[%s0 + $0x28] sm:$0xff]
  %v20 = vld [vmem:[%s0 + $0x30] sm:$0xff]
  %v21 = vld [vmem:[%s0 + $0x38] sm:$0xff]
  %v22 = vld [vmem:[%s0 + $0x40] sm:$0xff]
  %v23 = vld [vmem:[%s0 + $0x48] sm:$0xff]
  %v24 = vld [vmem:[%s0 + $0x50] sm:$0xff]
  %v25 = vld [vmem:[%s0 + $0x58] sm:$0xff]
  %v26 = vld [vmem:[%s0 + $0x60] sm:$0xff]
  %v27 = vld [vmem:[%s0 + $0x68] sm:$0xff]
  %v28 = vld [vmem:[%s0 + $0x70] sm:$0xff]
  %v29 = vld [vmem:[%s0 + $0x78] sm:$0xff]
  %v30 = vadd.f32 %v14, %v15
  %v31 = vadd.f32 %v30, %v16
  %v32 = vadd.f32 %v31, %v17
  %v33 = vadd.f32 %v32, %v18
  %v34 = vadd.f32 %v33, %v19
  %v35 = vadd.f32 %v34, %v20
  %v36 = vadd.f32 %v35, %v21
  %v37 = vadd.f32 %v36, %v22
  %v38 = vadd.f32 %v37, %v23
  %v39 = vadd.f32 %v38, %v24
  %v40 = vadd.f32 %v39, %v25
  %v41 = vadd.f32 %v40, %v26
  %v42 = vadd.f32 %v41, %v27
  %v43 = vadd.f32 %v42, %v28
  %v44 = vadd.f32 %v43, %v29
  %45 = vadd.xlane.f32.xlu0 %v44
  %v46 = vpop.xlane.xlu0 %45
  %v47 = vmul.f32 %v46, 0.00048828125
  %v48 = vsub.f32 %v14, %v47
  %v49 = vsub.f32 %v15, %v47
  %v50 = vsub.f32 %v16, %v47
  %v51 = vsub.f32 %v17, %v47
  %v52 = vsub.f32 %v18, %v47
  %v53 = vsub.f32 %v19, %v47
  %v54 = vsub.f32 %v20, %v47
  %v55 = vsub.f32 %v21, %v47
  %v56 = vsub.f32 %v22, %v47
  %v57 = vsub.f32 %v23, %v47
  %v58 = vsub.f32 %v24, %v47
  %v59 = vsub.f32 %v25, %v47
  %v60 = vsub.f32 %v26, %v47
  %v61 = vsub.f32 %v27, %v47
  %v62 = vsub.f32 %v28, %v47
  %v63 = vsub.f32 %v29, %v47
  %v64 = vmul.f32 %v48, %v48
  %v65 = vmul.f32 %v49, %v49
  %v66 = vmul.f32 %v50, %v50
  %v67 = vmul.f32 %v51, %v51
  %v68 = vmul.f32 %v52, %v52
  %v69 = vmul.f32 %v53, %v53
  %v70 = vmul.f32 %v54, %v54
  %v71 = vmul.f32 %v55, %v55
  %v72 = vmul.f32 %v56, %v56
  %v73 = vmul.f32 %v57, %v57
  %v74 = vmul.f32 %v58, %v58
  %v75 = vmul.f32 %v59, %v59
  %v76 = vmul.f32 %v60, %v60
  %v77 = vmul.f32 %v61, %v61
  %v78 = vmul.f32 %v62, %v62
  %v79 = vmul.f32 %v63, %v63
  %v80 = vadd.f32 %v64, %v65
  %v81 = vadd.f32 %v80, %v66
  %v82 = vadd.f32 %v81, %v67
  %v83 = vadd.f32 %v82, %v68
  %v84 = vadd.f32 %v83, %v69
  %v85 = vadd.f32 %v84, %v70
  %v86 = vadd.f32 %v85, %v71
  %v87 = vadd.f32 %v86, %v72
  %v88 = vadd.f32 %v87, %v73
  %v89 = vadd.f32 %v88, %v74
  %v90 = vadd.f32 %v89, %v75
  %v91 = vadd.f32 %v90, %v76
  %v92 = vadd.f32 %v91, %v77
  %v93 = vadd.f32 %v92, %v78
  %v94 = vadd.f32 %v93, %v79
  %95 = vadd.xlane.f32.xlu0 %v94
  %v96 = vpop.xlane.xlu0 %95
  %v97 = vmul.f32 %v96, 0.00048828125
  %v98 = vld [vmem:[%s1] sm:$0xff]
  %v99 = vadd.f32 %v97, 1e-05
  %v100 = vrsqrt.pop %v99
  %v101 = vmul.f32 %v98, %v100
  %v102 = vld [vmem:[%s2] sm:$0xff]
  %v103 = vmul.f32 %v47, %v101
  %v104 = vsub.f32 %v102, %v103
  %106 = vset.pattern.permute.xlu0 0
  %107 = vperm.xlu0 %106, %v101
  %v108 = vpop.permute.xlu0 %107
  %v110 = vmul.f32 %v14, %v108
  %v111 = vmul.f32 %v15, %v108
  %v112 = vmul.f32 %v16, %v108
  %v113 = vmul.f32 %v17, %v108
  %v114 = vmul.f32 %v18, %v108
  %v115 = vmul.f32 %v19, %v108
  %v116 = vmul.f32 %v20, %v108
  %v117 = vmul.f32 %v21, %v108
  %v118 = vmul.f32 %v22, %v108
  %v119 = vmul.f32 %v23, %v108
  %v120 = vmul.f32 %v24, %v108
  %v121 = vmul.f32 %v25, %v108
  %v122 = vmul.f32 %v26, %v108
  %v123 = vmul.f32 %v27, %v108
  %v124 = vmul.f32 %v28, %v108
  %v125 = vmul.f32 %v29, %v108
  %127 = vset.pattern.permute.xlu0 0
  %128 = vperm.xlu0 %127, %v104
  %v129 = vpop.permute.xlu0 %128
  %v131 = vadd.f32 %v110, %v129
  %v132 = vadd.f32 %v111, %v129
  %v133 = vadd.f32 %v112, %v129
  %v134 = vadd.f32 %v113, %v129
  %v135 = vadd.f32 %v114, %v129
  %v136 = vadd.f32 %v115, %v129
  %v137 = vadd.f32 %v116, %v129
  %v138 = vadd.f32 %v117, %v129
  %v139 = vadd.f32 %v118, %v129
  %v140 = vadd.f32 %v119, %v129
  %v141 = vadd.f32 %v120, %v129
  %v142 = vadd.f32 %v121, %v129
  %v143 = vadd.f32 %v122, %v129
  %v144 = vadd.f32 %v123, %v129
  %v145 = vadd.f32 %v124, %v129
  %v146 = vadd.f32 %v125, %v129
  %v147 = vmax.f32 %v131, 0.0
  %v148 = vmax.f32 %v132, 0.0
  %v149 = vmax.f32 %v133, 0.0
  %v150 = vmax.f32 %v134, 0.0
  %v151 = vmax.f32 %v135, 0.0
  %v152 = vmax.f32 %v136, 0.0
  %v153 = vmax.f32 %v137, 0.0
  %v154 = vmax.f32 %v138, 0.0
  %v155 = vmax.f32 %v139, 0.0
  %v156 = vmax.f32 %v140, 0.0
  %v157 = vmax.f32 %v141, 0.0
  %v158 = vmax.f32 %v142, 0.0
  %v159 = vmax.f32 %v143, 0.0
  %v160 = vmax.f32 %v144, 0.0
  %v161 = vmax.f32 %v145, 0.0
  %v162 = vmax.f32 %v146, 0.0
  %163 = vst [vmem:[%s3] sm:$0xff] %v147
  %164 = vst [vmem:[%s3 + $0x8] sm:$0xff] %v148
  %165 = vst [vmem:[%s3 + $0x10] sm:$0xff] %v149
  %166 = vst [vmem:[%s3 + $0x18] sm:$0xff] %v150
  %167 = vst [vmem:[%s3 + $0x20] sm:$0xff] %v151
  %168 = vst [vmem:[%s3 + $0x28] sm:$0xff] %v152
  %169 = vst [vmem:[%s3 + $0x30] sm:$0xff] %v153
  %170 = vst [vmem:[%s3 + $0x38] sm:$0xff] %v154
  %171 = vst [vmem:[%s3 + $0x40] sm:$0xff] %v155
  %172 = vst [vmem:[%s3 + $0x48] sm:$0xff] %v156
  %173 = vst [vmem:[%s3 + $0x50] sm:$0xff] %v157
  %174 = vst [vmem:[%s3 + $0x58] sm:$0xff] %v158
  %175 = vst [vmem:[%s3 + $0x60] sm:$0xff] %v159
  %176 = vst [vmem:[%s3 + $0x68] sm:$0xff] %v160
  %177 = vst [vmem:[%s3 + $0x70] sm:$0xff] %v161
  %178 = vst [vmem:[%s3 + $0x78] sm:$0xff] %v162
  // Predicated region
  $region14: #{resnet_generator_forward.20} parent=0 // pred_check
    _
  $region15: #{resnet_generator_forward.20} parent=0 // pred_check_branch
    %180 = sbr.rel (0) target = $region17
  $region16: #{resnet_generator_forward.20} parent=0 // pred_region
    _
  $region17: #{resnet_generator_forward.20} parent=0 // pred_fallthru
    _
  // Predicated region
  $region18: #{resnet_generator_forward.20} parent=0 // pred_check
    _
  $region19: #{resnet_generator_forward.20} parent=0 // pred_check_branch
    %182 = sbr.rel (0) target = $region21
  $region20: #{resnet_generator_forward.20} parent=0 // pred_region
    _
  $region21: #{resnet_generator_forward.20} parent=0 // pred_fallthru
    _

// kernel: resnet_generator_forward.19
$region0: #{resnet_generator_forward.19}
  #allocation0 [shape = 'u32[]', space=smem, size = 0x4, offset = 0x4, fixed_abs, tag = 'smem constant byte address 0x4 - core index']
  #allocation1 [shape = 'u32[144,128]{1,0:T(1,128)}', space=vmem, size = 0x12000, scoped, tag = 'internal scratch']
  %s0 = inlined_call_operand.vmem [shape: f32[147,2048], index: 0, kind: input, shape index: {}]
  %s1 = inlined_call_operand.vmem [shape: f32[8,147], index: 1, kind: input, shape index: {}]
  %s2 = inlined_call_operand.vmem [shape: f32[8,1], index: 2, kind: input, shape index: {}]
  %s3 = inlined_call_operand.vmem [shape: f32[8,2048], index: 3, kind: output, shape index: {}]
  %s4 = sld [smem:[#allocation0]]
  $region68: #{resnet_generator_forward.19} parent=0
    _
  %s6 = ssub.s32 1, %s4
  %s7 = scalar_select 0, %s6, %s4
  $region1: #{resnet_generator_forward.19} parent=0
    #allocation2 [shape = 'u8[311296]{0}', space=vmem, size = 0x4c000, scoped, tag = 'input window, operand 0']
    loop: start=0, step=1, limit=10
    $region2: #{resnet_generator_forward.19} parent=1 // loop_pre_header
      _
    $region3: #{resnet_generator_forward.19} parent=1 // loop_header
      %s9 = sphi 0, %s13
      %p10 = scmp.ge.s32.totalorder %s9, 10
      %s19 = sphi 0, %s21
      %s22 = sphi 0, %s19
      %s23 = sphi 0, %s22
      %s39 = sphi 0, %s23
      %s43 = sphi 0, %s43
      %s45 = sphi 0, %s43
      %s46 = sphi 0, %s45
      %s60 = sphi 0, %s46
      %s64 = sphi 0, %s64
      %s66 = sphi 0, %s64
      %s67 = sphi 0, %s66
      %s81 = sphi 0, %s67
      %s87 = sphi 0, %s89
      %s90 = sphi 0, %s87
      %s91 = sphi 0, %s90
      %s107 = sphi 0, %s91
    $region4: #{resnet_generator_forward.19} parent=1 // loop_header_branch
      %12 = sbr.rel (%p10) target = $region8
    $region5: #{resnet_generator_forward.19} parent=1 // loop_body
      %s14 = ssub.s32 %s9, 1
      %s15 = ssub.s32 %s9, 2
      %s16 = sadd.s32 %s9, 1
      %s17 = ssub.s32 %s9, %s16
      %p18 = scmp.eq.s32.totalorder %s17, 0
      %s20 = sadd.s32 %s19, 1
      %s21 = scalar_select %p18, %s19, %s20
      %p24 = pneg %p18
      %p25 = scmp.eq.s32.totalorder %s9, 7
      %p26 = por %p24, %p25
      %p27 = scmp.ne.s32.totalorder %s19, %s22
      %p28 = scmp.eq.s32.totalorder %s9, 0
      %p29 = por %p27, %p28
      %p30 = scmp.ne.s32.totalorder %s19, %s22
      %p31 = scmp.eq.s32.totalorder %s14, 7
      %p32 = por %p30, %p31
      %p33 = scmp.ne.s32.totalorder %s22, %s23
      %p34 = scmp.eq.s32.totalorder %s14, 0
      %p35 = por %p33, %p34
      %p36 = scmp.ne.s32.totalorder %s22, %s23
      %p37 = scmp.eq.s32.totalorder %s15, 7
      %p38 = por %p36, %p37
      %p40 = scmp.ne.s32.totalorder %s23, %s39
      %p41 = scmp.eq.s32.totalorder %s15, 0
      %p42 = por %p40, %p41
      %s44 = sadd.s32 %s43, 1
      %p47 = scmp.eq.s32.totalorder %s9, 7
      %p48 = scmp.ne.s32.totalorder %s43, %s45
      %p49 = scmp.eq.s32.totalorder %s9, 0
      %p50 = por %p48, %p49
      %p51 = scmp.ne.s32.totalorder %s43, %s45
      %p52 = scmp.eq.s32.totalorder %s14, 7
      %p53 = por %p51, %p52
      %p54 = scmp.ne.s32.totalorder %s45, %s46
      %p55 = scmp.eq.s32.totalorder %s14, 0
      %p56 = por %p54, %p55
      %p57 = scmp.ne.s32.totalorder %s45, %s46
      %p58 = scmp.eq.s32.totalorder %s15, 7
      %p59 = por %p57, %p58
      %p61 = scmp.ne.s32.totalorder %s46, %s60
      %p62 = scmp.eq.s32.totalorder %s15, 0
      %p63 = por %p61, %p62
      %s65 = sadd.s32 %s64, 1
      %p68 = scmp.eq.s32.totalorder %s9, 7
      %p69 = scmp.ne.s32.totalorder %s64, %s66
      %p70 = scmp.eq.s32.totalorder %s9, 0
      %p71 = por %p69, %p70
      %p72 = scmp.ne.s32.totalorder %s64, %s66
      %p73 = scmp.eq.s32.totalorder %s14, 7
      %p74 = por %p72, %p73
      %p75 = scmp.ne.s32.totalorder %s66, %s67
      %p76 = scmp.eq.s32.totalorder %s14, 0
      %p77 = por %p75, %p76
      %p78 = scmp.ne.s32.totalorder %s66, %s67
      %p79 = scmp.eq.s32.totalorder %s15, 7
      %p80 = por %p78, %p79
      %p82 = scmp.ne.s32.totalorder %s67, %s81
      %p83 = scmp.eq.s32.totalorder %s15, 0
      %p84 = por %p82, %p83
      %s85 = ssub.s32 %s9, %s16
      %p86 = scmp.eq.s32.totalorder %s85, 0
      %s88 = sadd.s32 %s87, 1
      %s89 = scalar_select %p86, %s87, %s88
      %p92 = pneg %p86
      %p93 = scmp.eq.s32.totalorder %s9, 7
      %p94 = por %p92, %p93
      %p95 = scmp.ne.s32.totalorder %s87, %s90
      %p96 = scmp.eq.s32.totalorder %s9, 0
      %p97 = por %p95, %p96
      %p98 = scmp.ne.s32.totalorder %s87, %s90
      %p99 = scmp.eq.s32.totalorder %s14, 7
      %p100 = por %p98, %p99
      %p101 = scmp.ne.s32.totalorder %s90, %s91
      %p102 = scmp.eq.s32.totalorder %s14, 0
      %p103 = por %p101, %p102
      %p104 = scmp.ne.s32.totalorder %s90, %s91
      %p105 = scmp.eq.s32.totalorder %s15, 7
      %p106 = por %p104, %p105
      %p108 = scmp.ne.s32.totalorder %s91, %s107
      %p109 = scmp.eq.s32.totalorder %s15, 0
      %p110 = por %p108, %p109
      %p111 = scmp.le.s32.totalorder 1, %s9
      %p112 = scmp.lt.s32.totalorder %s9, 9
      %p113 = pnand %p111, %p112
      %p114 = pneg %p113
      // Predicated region
      $region9: #{resnet_generator_forward.19} parent=5 // pred_check
        _
      $region10: #{resnet_generator_forward.19} parent=5 // pred_check_branch
        %116 = sbr.rel (%p113) target = $region12
      $region11: #{resnet_generator_forward.19} parent=5 // pred_region
        %s117 = ssub.s32 %s9, 1
        // Predicated region
        $region13: #{resnet_generator_forward.19} parent=11 // pred_check
          %p118 = pneg %p56
        $region14: #{resnet_generator_forward.19} parent=11 // pred_check_branch
          %120 = sbr.rel (%p118) target = $region16
        $region15: #{resnet_generator_forward.19} parent=11 // pred_region
          _
        $region16: #{resnet_generator_forward.19} parent=11 // pred_fallthru
          _
        // Predicated region
        $region17: #{resnet_generator_forward.19} parent=11 // pred_check
          %p121 = pneg %p77
        $region18: #{resnet_generator_forward.19} parent=11 // pred_check_branch
          %123 = sbr.rel (%p121) target = $region20
        $region19: #{resnet_generator_forward.19} parent=11 // pred_region
          _
        $region20: #{resnet_generator_forward.19} parent=11 // pred_fallthru
          _
      $region12: #{resnet_generator_forward.19} parent=5 // pred_fallthru
        _
      %p124 = scmp.lt.s32.totalorder %s9, 8
      // Predicated region
      $region21: #{resnet_generator_forward.19} parent=5 // pred_check
        %p125 = pneg %p124
      $region22: #{resnet_generator_forward.19} parent=5 // pred_check_branch
        %127 = sbr.rel (%p125) target = $region24
      $region23: #{resnet_generator_forward.19} parent=5 // pred_region
        // Predicated region
        $region25: #{resnet_generator_forward.19} parent=23 // pred_check
          %p128 = pneg %p29
        $region26: #{resnet_generator_forward.19} parent=23 // pred_check_branch
          %130 = sbr.rel (%p128) target = $region28
        $region27: #{resnet_generator_forward.19} parent=23 // pred_region
          %s131 = sand.u32 %s19, 1
          %s132 = sand.u32 %s19, 1
          %s133 = smul.addr %s132, 304
          %s134 = scalar_lea.vmem [#allocation2], %s133
          %s135 = smul.u32 2, %s9
          %s136 = smul.addr %s135, 8
          %s137 = scalar_lea.vmem %s0, %s136
          // Predicated region
          $region29: #{resnet_generator_forward.19} parent=27 // pred_check
            _
          $region30: #{resnet_generator_forward.19} parent=27 // pred_check_branch
            %139 = sbr.rel (0) target = $region32
          $region31: #{resnet_generator_forward.19} parent=27 // pred_region
            // Predicated region
            $region33: #{resnet_generator_forward.19} parent=31 // pred_check
              _
            $region34: #{resnet_generator_forward.19} parent=31 // pred_check_branch
              %141 = sbr.rel (0) target = $region36
            $region35: #{resnet_generator_forward.19} parent=31 // pred_region
              loop: start=0, step=1, limit=1
              $region37: #{resnet_generator_forward.19} parent=35 // loop_pre_header
                _
              $region38: #{resnet_generator_forward.19} parent=35 // loop_header
                %s143 = sphi 0, %s147
                %p144 = scmp.ge.s32.totalorder %s143, 1
                %s148 = sphi %s137, %s137
                %s149 = sphi %s134, %s134
              $region39: #{resnet_generator_forward.19} parent=35 // loop_header_branch
                %146 = sbr.rel (%p144) target = $region43
              $region40: #{resnet_generator_forward.19} parent=35 // loop_body
                %v150 = vld [vmem:[%s148] sm:$0xff]
                %151 = vst [vmem:[%s149] sm:$0xff] %v150
                %v152 = vld [vmem:[%s148 + $0x8] sm:$0xff]
                %153 = vst [vmem:[%s149 + $0x8] sm:$0xff] %v152
                %v154 = vld [vmem:[%s148 + $0x80] sm:$0xff]
                %155 = vst [vmem:[%s149 + $0x10] sm:$0xff] %v154
                %v156 = vld [vmem:[%s148 + $0x88] sm:$0xff]
                %157 = vst [vmem:[%s149 + $0x18] sm:$0xff] %v156
                %v158 = vld [vmem:[%s148 + $0x100] sm:$0xff]
                %159 = vst [vmem:[%s149 + $0x20] sm:$0xff] %v158
                %v160 = vld [vmem:[%s148 + $0x108] sm:$0xff]
                %161 = vst [vmem:[%s149 + $0x28] sm:$0xff] %v160
                %v162 = vld [vmem:[%s148 + $0x180] sm:$0xff]
                %163 = vst [vmem:[%s149 + $0x30] sm:$0xff] %v162
                %v164 = vld [vmem:[%s148 + $0x188] sm:$0xff]
                %165 = vst [vmem:[%s149 + $0x38] sm:$0xff] %v164
                %v166 = vld [vmem:[%s148 + $0x200] sm:$0xff]
                %167 = vst [vmem:[%s149 + $0x40] sm:$0xff] %v166
                %v168 = vld [vmem:[%s148 + $0x208] sm:$0xff]
                %169 = vst [vmem:[%s149 + $0x48] sm:$0xff] %v168
                %v170 = vld [vmem:[%s148 + $0x280] sm:$0xff]
                %171 = vst [vmem:[%s149 + $0x50] sm:$0xff] %v170
                %v172 = vld [vmem:[%s148 + $0x288] sm:$0xff]
                %173 = vst [vmem:[%s149 + $0x58] sm:$0xff] %v172
                %v174 = vld [vmem:[%s148 + $0x300] sm:$0xff]
                %175 = vst [vmem:[%s149 + $0x60] sm:$0xff] %v174
                %v176 = vld [vmem:[%s148 + $0x308] sm:$0xff]
                %177 = vst [vmem:[%s149 + $0x68] sm:$0xff] %v176
                %v178 = vld [vmem:[%s148 + $0x380] sm:$0xff]
                %179 = vst [vmem:[%s149 + $0x70] sm:$0xff] %v178
                %v180 = vld [vmem:[%s148 + $0x388] sm:$0xff]
                %181 = vst [vmem:[%s149 + $0x78] sm:$0xff] %v180
                %v182 = vld [vmem:[%s148 + $0x400] sm:$0xff]
                %183 = vst [vmem:[%s149 + $0x80] sm:$0xff] %v182
                %v184 = vld [vmem:[%s148 + $0x408] sm:$0xff]
                %185 = vst [vmem:[%s149 + $0x88] sm:$0xff] %v184
                %v186 = vld [vmem:[%s148 + $0x480] sm:$0xff]
                %187 = vst [vmem:[%s149 + $0x90] sm:$0xff] %v186
                %v188 = vld [vmem:[%s148 + $0x488] sm:$0xff]
                %189 = vst [vmem:[%s149 + $0x98] sm:$0xff] %v188
                %v190 = vld [vmem:[%s148 + $0x500] sm:$0xff]
                %191 = vst [vmem:[%s149 + $0xa0] sm:$0xff] %v190
                %v192 = vld [vmem:[%s148 + $0x508] sm:$0xff]
                %193 = vst [vmem:[%s149 + $0xa8] sm:$0xff] %v192
                %v194 = vld [vmem:[%s148 + $0x580] sm:$0xff]
                %195 = vst [vmem:[%s149 + $0xb0] sm:$0xff] %v194
                %v196 = vld [vmem:[%s148 + $0x588] sm:$0xff]
                %197 = vst [vmem:[%s149 + $0xb8] sm:$0xff] %v196
                %v198 = vld [vmem:[%s148 + $0x600] sm:$0xff]
                %199 = vst [vmem:[%s149 + $0xc0] sm:$0xff] %v198
                %v200 = vld [vmem:[%s148 + $0x608] sm:$0xff]
                %201 = vst [vmem:[%s149 + $0xc8] sm:$0xff] %v200
                %v202 = vld [vmem:[%s148 + $0x680] sm:$0xff]
                %203 = vst [vmem:[%s149 + $0xd0] sm:$0xff] %v202
                %v204 = vld [vmem:[%s148 + $0x688] sm:$0xff]
                %205 = vst [vmem:[%s149 + $0xd8] sm:$0xff] %v204
                %v206 = vld [vmem:[%s148 + $0x700] sm:$0xff]
                %207 = vst [vmem:[%s149 + $0xe0] sm:$0xff] %v206
                %v208 = vld [vmem:[%s148 + $0x708] sm:$0xff]
                %209 = vst [vmem:[%s149 + $0xe8] sm:$0xff] %v208
                %v210 = vld [vmem:[%s148 + $0x780] sm:$0xff]
                %211 = vst [vmem:[%s149 + $0xf0] sm:$0xff] %v210
                %v212 = vld [vmem:[%s148 + $0x788] sm:$0xff]
                %213 = vst [vmem:[%s149 + $0xf8] sm:$0xff] %v212
                %v214 = vld [vmem:[%s148 + $0x800] sm:$0xff]
                %215 = vst [vmem:[%s149 + $0x100] sm:$0xff] %v214
                %v216 = vld [vmem:[%s148 + $0x808] sm:$0xff]
                %217 = vst [vmem:[%s149 + $0x108] sm:$0xff] %v216
                %v218 = vld [vmem:[%s148 + $0x880] sm:$0xff]
                %219 = vst [vmem:[%s149 + $0x110] sm:$0xff] %v218
                %v220 = vld [vmem:[%s148 + $0x888] sm:$0xff]
                %221 = vst [vmem:[%s149 + $0x118] sm:$0xff] %v220
                %v222 = vld [vmem:[%s148 + $0x900] sm:$0xff]
                %223 = vst [vmem:[%s149 + $0x120] sm:$0xff] %v222
                %v224 = vld [vmem:[%s148 + $0x908] sm:$0xff]
                %225 = vst [vmem:[%s149 + $0x128] sm:$0xff] %v224
              $region41: #{resnet_generator_forward.19} parent=35 // loop_footer
                %s147 = sadd.s32 1, %s143
              $region42: #{resnet_generator_forward.19} parent=35 // loop_footer_branch
                %142 = sbr.rel target = $region38
              $region43: #{resnet_generator_forward.19} parent=35 // loop_exit
                _
            $region36: #{resnet_generator_forward.19} parent=31 // pred_fallthru
              _
            // Predicated region
            $region44: #{resnet_generator_forward.19} parent=31 // pred_check
              _
            $region45: #{resnet_generator_forward.19} parent=31 // pred_check_branch
              %227 = sbr.rel target = $region47
            $region46: #{resnet_generator_forward.19} parent=31 // pred_region
              _
            $region47: #{resnet_generator_forward.19} parent=31 // pred_fallthru
              _
          $region32: #{resnet_generator_forward.19} parent=27 // pred_fallthru
            _
          %228 = vnop
        $region28: #{resnet_generator_forward.19} parent=23 // pred_fallthru
          _
      $region24: #{resnet_generator_forward.19} parent=5 // pred_fallthru
        _
      %p229 = scmp.le.s32.totalorder 1, %s9
      %p230 = scmp.lt.s32.totalorder %s9, 9
      %p231 = pnand %p229, %p230
      %p232 = pneg %p231
      // Predicated region
      $region48: #{resnet_generator_forward.19} parent=5 // pred_check
        _
      $region49: #{resnet_generator_forward.19} parent=5 // pred_check_branch
        %234 = sbr.rel (%p231) target = $region51
      $region50: #{resnet_generator_forward.19} parent=5 // pred_region
        %s235 = ssub.s32 %s9, 1
        %s236 = sand.u32 %s22, 1
        %s237 = sand.u32 %s22, 1
        %s238 = smul.addr %s237, 304
        %s239 = scalar_lea.vmem [#allocation2], %s238
        // Predicated region
        $region52: #{resnet_generator_forward.19} parent=50 // pred_check
          %p240 = pneg %p35
        $region53: #{resnet_generator_forward.19} parent=50 // pred_check_branch
          %242 = sbr.rel (%p240) target = $region55
        $region54: #{resnet_generator_forward.19} parent=50 // pred_region
          _
        $region55: #{resnet_generator_forward.19} parent=50 // pred_fallthru
          _
        %s243 = sand.u32 %s22, 1
        %s244 = sand.u32 %s22, 1
        %s245 = smul.addr %s244, 304
        %s246 = scalar_lea.vmem [#allocation2], %s245
        %p247 = pneg %p35
        %p248 = pneg %p32
        %p249 = pneg %p56
        %p250 = pneg %p53
        %p251 = pneg %p77
        %p252 = pneg %p74
        %p253 = pneg %p103
        %p254 = pneg %p100
        %s255 = smul.u32 2, %s14
        %p256 = scmp.lt.s32.totalorder %s255, 15
        %s257 = scalar_select %p256, %s255, 15
        %s258 = smul.addr %s257, 8
        %s259 = scalar_lea.vmem %s3, %s258
        %s260 = smul.u32 2, %s14
        %s261 = smul.u32 2, %s14
        %p262 = scmp.lt.s32.totalorder %s261, 15
        %s263 = scalar_select %p262, %s261, 15
        %s264 = smul.addr %s263, 8
        %s265 = scalar_lea.vmem %s3, %s264
        %s266 = smul.u32 2, %s14
        %v267 = vld [vmem:[%s1] sm:$0xff]
        %v268 = vld [vmem:[%s1 + $0x8] sm:$0xff]
        %v269 = vld [vmem:[%s239] sm:$0xff]
        %v270 = vld [vmem:[%s239 + $0x8] sm:$0xff]
        %v271 = vld [vmem:[%s239 + $0x10] sm:$0xff]
        %v272 = vld [vmem:[%s239 + $0x18] sm:$0xff]
        %v273 = vld [vmem:[%s239 + $0x20] sm:$0xff]
        %v274 = vld [vmem:[%s239 + $0x28] sm:$0xff]
        %v275 = vld [vmem:[%s239 + $0x30] sm:$0xff]
        %v276 = vld [vmem:[%s239 + $0x38] sm:$0xff]
        %v277 = vld [vmem:[%s239 + $0x40] sm:$0xff]
        %v278 = vld [vmem:[%s239 + $0x48] sm:$0xff]
        %v279 = vld [vmem:[%s239 + $0x50] sm:$0xff]
        %v280 = vld [vmem:[%s239 + $0x58] sm:$0xff]
        %v281 = vld [vmem:[%s239 + $0x60] sm:$0xff]
        %v282 = vld [vmem:[%s239 + $0x68] sm:$0xff]
        %v283 = vld [vmem:[%s239 + $0x70] sm:$0xff]
        %v284 = vld [vmem:[%s239 + $0x78] sm:$0xff]
        %v285 = vld [vmem:[%s239 + $0x80] sm:$0xff]
        %v286 = vld [vmem:[%s239 + $0x88] sm:$0xff]
        %v287 = vld [vmem:[%s239 + $0x90] sm:$0xff]
        %v288 = vld [vmem:[%s239 + $0x98] sm:$0xff]
        %v289 = vld [vmem:[%s239 + $0xa0] sm:$0xff]
        %v290 = vld [vmem:[%s239 + $0xa8] sm:$0xff]
        %v291 = vld [vmem:[%s239 + $0xb0] sm:$0xff]
        %v292 = vld [vmem:[%s239 + $0xb8] sm:$0xff]
        %v293 = vld [vmem:[%s239 + $0xc0] sm:$0xff]
        %v294 = vld [vmem:[%s239 + $0xc8] sm:$0xff]
        %v295 = vld [vmem:[%s239 + $0xd0] sm:$0xff]
        %v296 = vld [vmem:[%s239 + $0xd8] sm:$0xff]
        %v297 = vld [vmem:[%s239 + $0xe0] sm:$0xff]
        %v298 = vld [vmem:[%s239 + $0xe8] sm:$0xff]
        %v299 = vld [vmem:[%s239 + $0xf0] sm:$0xff]
        %v300 = vld [vmem:[%s239 + $0xf8] sm:$0xff]
        %v301 = vld [vmem:[%s239 + $0x100] sm:$0xff]
        %v302 = vld [vmem:[%s239 + $0x108] sm:$0xff]
        %v303 = vld [vmem:[%s239 + $0x110] sm:$0xff]
        %v304 = vld [vmem:[%s239 + $0x118] sm:$0xff]
        %v305 = vld [vmem:[%s239 + $0x120] sm:$0x7]
        %v306 = vld [vmem:[%s239 + $0x128] sm:$0x7]
        %v307 = vld [vmem:[%s2] sm:$0xff]
        %309 = vset.pattern.permute.xlu0 0
        %310 = vperm.xlu0 %309, %v307
        %v311 = vpop.permute.xlu0 %310
        %vm313 = vcmask 154624
        %v315 = vsel %vm313, %v268, 0
        %vm317 = vcmask 1042432
        %v319 = vsel %vm317, %v305, 0
        %v322 = vsel %vm317, %v306, 0
        %324 = vmatprep.subr.mxu0 %v270
        %325 = vmatpush1.msra.mxu0 %v269
        %326 = vmatprep.subr.mxu0 %v272
        %327 = vmatpush1.msra.mxu0 %v271
        %328 = vmatprep.subr.mxu0 %v274
        %329 = vmatpush1.msra.mxu0 %v273
        %330 = vmatprep.subr.mxu0 %v276
        %331 = vmatpush1.msra.mxu0 %v275
        %332 = vmatprep.subr.mxu0 %v278
        %333 = vmatpush1.msra.mxu0 %v277
        %334 = vmatprep.subr.mxu0 %v280
        %335 = vmatpush1.msra.mxu0 %v279
        %336 = vmatprep.subr.mxu0 %v282
        %337 = vmatpush1.msra.mxu0 %v281
        %338 = vmatprep.subr.mxu0 %v284
        %339 = vmatpush1.msra.mxu0 %v283
        %340 = vmatprep.subr.mxu0 %v286
        %341 = vmatpush1.msra.mxu0 %v285
        %342 = vmatprep.subr.mxu0 %v288
        %343 = vmatpush1.msra.mxu0 %v287
        %344 = vmatprep.subr.mxu0 %v290
        %345 = vmatpush1.msra.mxu0 %v289
        %346 = vmatprep.subr.mxu0 %v292
        %347 = vmatpush1.msra.mxu0 %v291
        %348 = vmatprep.subr.mxu0 %v294
        %349 = vmatpush1.msra.mxu0 %v293
        %350 = vmatprep.subr.mxu0 %v296
        %351 = vmatpush1.msra.mxu0 %v295
        %352 = vmatprep.subr.mxu0 %v298
        %353 = vmatpush1.msra.mxu0 %v297
        %354 = vmatprep.subr.mxu0 %v300
        %355 = vmatpush1.msra.mxu0 %v299
        %356 = vmatprep.subr.mxu0 %v302
        %357 = vmatpush1.msra.mxu0 %v301
        %358 = vmatprep.subr.mxu0 %v304
        %359 = vmatpush1.msra.mxu0 %v303
        %360 = vmatprep.subr.mxu0 %v322
        %361 = vmatpush1.msra.mxu0 %v319
        %362 = vmatprep.subr.mxu0 0.0
        %363 = vmatpush1.msra.mxu0 0.0
        %364 = vmatprep.subr.mxu0 0.0
        %365 = vmatpush1.msra.mxu0 0.0
        %366 = vmatprep.subr.mxu0 0.0
        %367 = vmatpush1.msra.mxu0 0.0
        %368 = vmatprep.subr.mxu0 0.0
        %369 = vmatpush1.msra.mxu0 0.0
        %370 = vmatprep.subr.mxu0 0.0
        %371 = vmatpush1.msra.mxu0 0.0
        %372 = vmatprep.subr.mxu0 0.0
        %373 = vmatpush1.msra.mxu0 0.0
        %374 = vmatprep.subr.mxu0 0.0
        %375 = vmatpush1.msra.mxu0 0.0
        %376 = vmatprep.subr.mxu0 0.0
        %377 = vmatpush1.msra.mxu0 0.0
        %378 = vmatprep.subr.mxu0 0.0
        %379 = vmatpush1.msra.mxu0 0.0
        %380 = vmatprep.subr.mxu0 0.0
        %381 = vmatpush1.msra.mxu0 0.0
        %382 = vmatprep.subr.mxu0 0.0
        %383 = vmatpush1.msra.mxu0 0.0
        %384 = vmatprep.subr.mxu0 0.0
        %385 = vmatpush1.msra.mxu0 0.0
        %386 = vmatprep.subr.mxu0 0.0
        %387 = vmatpush1.msra.mxu0 0.0
        %388 = vmatprep.mubr.f32.mxu0 %v315
        %389 = vmatmul.mubr.f32.gmra.mrb[0].mxu0 %v267
        %v390 = vpop.f32.mrb[0].mxu0
        %v391 = vadd.f32 %v311, %v390
        %v392 = vpop.f32.mrb[0].mxu0
        %v393 = vadd.f32 %v311, %v392
        %394 = vdwg.mxu0
        %395 = vst [vmem:[%s265] sm:$0xff] %v391
        %396 = vst [vmem:[%s265 + $0x8] sm:$0xff] %v393
        %s397 = smul.u32 2, %s14
        %p398 = scmp.lt.s32.totalorder %s397, 15
        %s399 = scalar_select %p398, %s397, 15
        %s400 = smul.addr %s399, 8
        %s401 = scalar_lea.vmem %s3, %s400
        // Predicated region
        $region56: #{resnet_generator_forward.19} parent=50 // pred_check
          %p402 = pneg %p100
        $region57: #{resnet_generator_forward.19} parent=50 // pred_check_branch
          %404 = sbr.rel (%p402) target = $region59
        $region58: #{resnet_generator_forward.19} parent=50 // pred_region
          %s405 = smul.u32 2, %s14
        $region59: #{resnet_generator_forward.19} parent=50 // pred_fallthru
          _
      $region51: #{resnet_generator_forward.19} parent=5 // pred_fallthru
        _
      %p406 = scmp.le.s32.totalorder 2, %s9
      // Predicated region
      $region60: #{resnet_generator_forward.19} parent=5 // pred_check
        %p407 = pneg %p406
      $region61: #{resnet_generator_forward.19} parent=5 // pred_check_branch
        %409 = sbr.rel (%p407) target = $region63
      $region62: #{resnet_generator_forward.19} parent=5 // pred_region
        %s410 = ssub.s32 %s9, 2
        // Predicated region
        $region64: #{resnet_generator_forward.19} parent=62 // pred_check
          %p411 = pneg %p106
        $region65: #{resnet_generator_forward.19} parent=62 // pred_check_branch
          %413 = sbr.rel (%p411) target = $region67
        $region66: #{resnet_generator_forward.19} parent=62 // pred_region
          %s414 = smul.u32 2, %s15
          %p415 = scmp.lt.s32.totalorder %s414, 15
          %s416 = scalar_select %p415, %s414, 15
          %s417 = smul.addr %s416, 8
          %s418 = scalar_lea.vmem %s3, %s417
        $region67: #{resnet_generator_forward.19} parent=62 // pred_fallthru
          _
      $region63: #{resnet_generator_forward.19} parent=5 // pred_fallthru
        _
    $region6: #{resnet_generator_forward.19} parent=1 // loop_footer
      %s13 = sadd.s32 1, %s9
    $region7: #{resnet_generator_forward.19} parent=1 // loop_footer_branch
      %8 = sbr.rel target = $region3
    $region8: #{resnet_generator_forward.19} parent=1 // loop_exit
      _

// kernel: resnet_generator_forward.21
$region0: #{resnet_generator_forward.21}
  #allocation0 [shape = 'u32[]', space=smem, size = 0x4, offset = 0x4, fixed_abs, tag = 'smem constant byte address 0x4 - core index']
  #allocation1 [shape = 'u32[144,128]{1,0:T(1,128)}', space=vmem, size = 0x12000, scoped, tag = 'internal scratch']
  %s0 = inlined_call_operand.vmem [shape: f32[72,512], index: 0, kind: input, shape index: {}]
  %s1 = inlined_call_operand.vmem [shape: f32[16,72], index: 1, kind: input, shape index: {}]
  %s2 = inlined_call_operand.vmem [shape: f32[16,1], index: 2, kind: input, shape index: {}]
  %s3 = inlined_call_operand.vmem [shape: f32[16,512], index: 3, kind: output, shape index: {}]
  %s4 = sld [smem:[#allocation0]]
  $region87: #{resnet_generator_forward.21} parent=0
    _
  %s6 = ssub.s32 1, %s4
  %s7 = scalar_select 0, %s6, %s4
  $region1: #{resnet_generator_forward.21} parent=0
    #allocation2 [shape = 'u8[147456]{0}', space=vmem, size = 0x24000, scoped, tag = 'input window, operand 0']
    #allocation3 [shape = 'u8[32768]{0}', space=vmem, size = 0x8000, scoped, tag = 'output window, operand 0']
    loop: start=0, step=1, limit=4
    $region2: #{resnet_generator_forward.21} parent=1 // loop_pre_header
      _
    $region3: #{resnet_generator_forward.21} parent=1 // loop_header
      %s9 = sphi 0, %s13
      %p10 = scmp.ge.s32.totalorder %s9, 4
      %s19 = sphi 0, %s21
      %s22 = sphi 0, %s19
      %s23 = sphi 0, %s22
      %s39 = sphi 0, %s23
      %s43 = sphi 0, %s43
      %s45 = sphi 0, %s43
      %s46 = sphi 0, %s45
      %s60 = sphi 0, %s46
      %s64 = sphi 0, %s64
      %s66 = sphi 0, %s64
      %s67 = sphi 0, %s66
      %s81 = sphi 0, %s67
      %s87 = sphi 0, %s89
      %s90 = sphi 0, %s87
      %s91 = sphi 0, %s90
      %s107 = sphi 0, %s91
    $region4: #{resnet_generator_forward.21} parent=1 // loop_header_branch
      %12 = sbr.rel (%p10) target = $region8
    $region5: #{resnet_generator_forward.21} parent=1 // loop_body
      %s14 = ssub.s32 %s9, 1
      %s15 = ssub.s32 %s9, 2
      %s16 = sadd.s32 %s9, 1
      %s17 = ssub.s32 %s9, %s16
      %p18 = scmp.eq.s32.totalorder %s17, 0
      %s20 = sadd.s32 %s19, 1
      %s21 = scalar_select %p18, %s19, %s20
      %p24 = pneg %p18
      %p25 = scmp.eq.s32.totalorder %s9, 1
      %p26 = por %p24, %p25
      %p27 = scmp.ne.s32.totalorder %s19, %s22
      %p28 = scmp.eq.s32.totalorder %s9, 0
      %p29 = por %p27, %p28
      %p30 = scmp.ne.s32.totalorder %s19, %s22
      %p31 = scmp.eq.s32.totalorder %s14, 1
      %p32 = por %p30, %p31
      %p33 = scmp.ne.s32.totalorder %s22, %s23
      %p34 = scmp.eq.s32.totalorder %s14, 0
      %p35 = por %p33, %p34
      %p36 = scmp.ne.s32.totalorder %s22, %s23
      %p37 = scmp.eq.s32.totalorder %s15, 1
      %p38 = por %p36, %p37
      %p40 = scmp.ne.s32.totalorder %s23, %s39
      %p41 = scmp.eq.s32.totalorder %s15, 0
      %p42 = por %p40, %p41
      %s44 = sadd.s32 %s43, 1
      %p47 = scmp.eq.s32.totalorder %s9, 1
      %p48 = scmp.ne.s32.totalorder %s43, %s45
      %p49 = scmp.eq.s32.totalorder %s9, 0
      %p50 = por %p48, %p49
      %p51 = scmp.ne.s32.totalorder %s43, %s45
      %p52 = scmp.eq.s32.totalorder %s14, 1
      %p53 = por %p51, %p52
      %p54 = scmp.ne.s32.totalorder %s45, %s46
      %p55 = scmp.eq.s32.totalorder %s14, 0
      %p56 = por %p54, %p55
      %p57 = scmp.ne.s32.totalorder %s45, %s46
      %p58 = scmp.eq.s32.totalorder %s15, 1
      %p59 = por %p57, %p58
      %p61 = scmp.ne.s32.totalorder %s46, %s60
      %p62 = scmp.eq.s32.totalorder %s15, 0
      %p63 = por %p61, %p62
      %s65 = sadd.s32 %s64, 1
      %p68 = scmp.eq.s32.totalorder %s9, 1
      %p69 = scmp.ne.s32.totalorder %s64, %s66
      %p70 = scmp.eq.s32.totalorder %s9, 0
      %p71 = por %p69, %p70
      %p72 = scmp.ne.s32.totalorder %s64, %s66
      %p73 = scmp.eq.s32.totalorder %s14, 1
      %p74 = por %p72, %p73
      %p75 = scmp.ne.s32.totalorder %s66, %s67
      %p76 = scmp.eq.s32.totalorder %s14, 0
      %p77 = por %p75, %p76
      %p78 = scmp.ne.s32.totalorder %s66, %s67
      %p79 = scmp.eq.s32.totalorder %s15, 1
      %p80 = por %p78, %p79
      %p82 = scmp.ne.s32.totalorder %s67, %s81
      %p83 = scmp.eq.s32.totalorder %s15, 0
      %p84 = por %p82, %p83
      %s85 = ssub.s32 %s9, %s16
      %p86 = scmp.eq.s32.totalorder %s85, 0
      %s88 = sadd.s32 %s87, 1
      %s89 = scalar_select %p86, %s87, %s88
      %p92 = pneg %p86
      %p93 = scmp.eq.s32.totalorder %s9, 1
      %p94 = por %p92, %p93
      %p95 = scmp.ne.s32.totalorder %s87, %s90
      %p96 = scmp.eq.s32.totalorder %s9, 0
      %p97 = por %p95, %p96
      %p98 = scmp.ne.s32.totalorder %s87, %s90
      %p99 = scmp.eq.s32.totalorder %s14, 1
      %p100 = por %p98, %p99
      %p101 = scmp.ne.s32.totalorder %s90, %s91
      %p102 = scmp.eq.s32.totalorder %s14, 0
      %p103 = por %p101, %p102
      %p104 = scmp.ne.s32.totalorder %s90, %s91
      %p105 = scmp.eq.s32.totalorder %s15, 1
      %p106 = por %p104, %p105
      %p108 = scmp.ne.s32.totalorder %s91, %s107
      %p109 = scmp.eq.s32.totalorder %s15, 0
      %p110 = por %p108, %p109
      %p111 = scmp.le.s32.totalorder 1, %s9
      %p112 = scmp.lt.s32.totalorder %s9, 3
      %p113 = pnand %p111, %p112
      %p114 = pneg %p113
      // Predicated region
      $region9: #{resnet_generator_forward.21} parent=5 // pred_check
        _
      $region10: #{resnet_generator_forward.21} parent=5 // pred_check_branch
        %116 = sbr.rel (%p113) target = $region12
      $region11: #{resnet_generator_forward.21} parent=5 // pred_region
        %s117 = ssub.s32 %s9, 1
        // Predicated region
        $region13: #{resnet_generator_forward.21} parent=11 // pred_check
          %p118 = pneg %p56
        $region14: #{resnet_generator_forward.21} parent=11 // pred_check_branch
          %120 = sbr.rel (%p118) target = $region16
        $region15: #{resnet_generator_forward.21} parent=11 // pred_region
          _
        $region16: #{resnet_generator_forward.21} parent=11 // pred_fallthru
          _
        // Predicated region
        $region17: #{resnet_generator_forward.21} parent=11 // pred_check
          %p121 = pneg %p77
        $region18: #{resnet_generator_forward.21} parent=11 // pred_check_branch
          %123 = sbr.rel (%p121) target = $region20
        $region19: #{resnet_generator_forward.21} parent=11 // pred_region
          _
        $region20: #{resnet_generator_forward.21} parent=11 // pred_fallthru
          _
      $region12: #{resnet_generator_forward.21} parent=5 // pred_fallthru
        _
      %p124 = scmp.lt.s32.totalorder %s9, 2
      // Predicated region
      $region21: #{resnet_generator_forward.21} parent=5 // pred_check
        %p125 = pneg %p124
      $region22: #{resnet_generator_forward.21} parent=5 // pred_check_branch
        %127 = sbr.rel (%p125) target = $region24
      $region23: #{resnet_generator_forward.21} parent=5 // pred_region
        // Predicated region
        $region25: #{resnet_generator_forward.21} parent=23 // pred_check
          %p128 = pneg %p29
        $region26: #{resnet_generator_forward.21} parent=23 // pred_check_branch
          %130 = sbr.rel (%p128) target = $region28
        $region27: #{resnet_generator_forward.21} parent=23 // pred_region
          %s131 = sand.u32 %s19, 1
          %s132 = sand.u32 %s19, 1
          %s133 = smul.addr %s132, 144
          %s134 = scalar_lea.vmem [#allocation2], %s133
          %s135 = smul.u32 2, %s9
          %s136 = smul.addr %s135, 8
          %s137 = scalar_lea.vmem %s0, %s136
          // Predicated region
          $region29: #{resnet_generator_forward.21} parent=27 // pred_check
            _
          $region30: #{resnet_generator_forward.21} parent=27 // pred_check_branch
            %139 = sbr.rel (0) target = $region32
          $region31: #{resnet_generator_forward.21} parent=27 // pred_region
            // Predicated region
            $region33: #{resnet_generator_forward.21} parent=31 // pred_check
              _
            $region34: #{resnet_generator_forward.21} parent=31 // pred_check_branch
              %141 = sbr.rel (0) target = $region36
            $region35: #{resnet_generator_forward.21} parent=31 // pred_region
              loop: start=0, step=1, limit=1
              $region37: #{resnet_generator_forward.21} parent=35 // loop_pre_header
                _
              $region38: #{resnet_generator_forward.21} parent=35 // loop_header
                %s143 = sphi 0, %s147
                %p144 = scmp.ge.s32.totalorder %s143, 1
                %s148 = sphi %s137, %s137
                %s149 = sphi %s134, %s134
              $region39: #{resnet_generator_forward.21} parent=35 // loop_header_branch
                %146 = sbr.rel (%p144) target = $region43
              $region40: #{resnet_generator_forward.21} parent=35 // loop_body
                %v150 = vld [vmem:[%s148] sm:$0xff]
                %151 = vst [vmem:[%s149] sm:$0xff] %v150
                %v152 = vld [vmem:[%s148 + $0x8] sm:$0xff]
                %153 = vst [vmem:[%s149 + $0x8] sm:$0xff] %v152
                %v154 = vld [vmem:[%s148 + $0x20] sm:$0xff]
                %155 = vst [vmem:[%s149 + $0x10] sm:$0xff] %v154
                %v156 = vld [vmem:[%s148 + $0x28] sm:$0xff]
                %157 = vst [vmem:[%s149 + $0x18] sm:$0xff] %v156
                %v158 = vld [vmem:[%s148 + $0x40] sm:$0xff]
                %159 = vst [vmem:[%s149 + $0x20] sm:$0xff] %v158
                %v160 = vld [vmem:[%s148 + $0x48] sm:$0xff]
                %161 = vst [vmem:[%s149 + $0x28] sm:$0xff] %v160
                %v162 = vld [vmem:[%s148 + $0x60] sm:$0xff]
                %163 = vst [vmem:[%s149 + $0x30] sm:$0xff] %v162
                %v164 = vld [vmem:[%s148 + $0x68] sm:$0xff]
                %165 = vst [vmem:[%s149 + $0x38] sm:$0xff] %v164
                %v166 = vld [vmem:[%s148 + $0x80] sm:$0xff]
                %167 = vst [vmem:[%s149 + $0x40] sm:$0xff] %v166
                %v168 = vld [vmem:[%s148 + $0x88] sm:$0xff]
                %169 = vst [vmem:[%s149 + $0x48] sm:$0xff] %v168
                %v170 = vld [vmem:[%s148 + $0xa0] sm:$0xff]
                %171 = vst [vmem:[%s149 + $0x50] sm:$0xff] %v170
                %v172 = vld [vmem:[%s148 + $0xa8] sm:$0xff]
                %173 = vst [vmem:[%s149 + $0x58] sm:$0xff] %v172
                %v174 = vld [vmem:[%s148 + $0xc0] sm:$0xff]
                %175 = vst [vmem:[%s149 + $0x60] sm:$0xff] %v174
                %v176 = vld [vmem:[%s148 + $0xc8] sm:$0xff]
                %177 = vst [vmem:[%s149 + $0x68] sm:$0xff] %v176
                %v178 = vld [vmem:[%s148 + $0xe0] sm:$0xff]
                %179 = vst [vmem:[%s149 + $0x70] sm:$0xff] %v178
                %v180 = vld [vmem:[%s148 + $0xe8] sm:$0xff]
                %181 = vst [vmem:[%s149 + $0x78] sm:$0xff] %v180
                %v182 = vld [vmem:[%s148 + $0x100] sm:$0xff]
                %183 = vst [vmem:[%s149 + $0x80] sm:$0xff] %v182
                %v184 = vld [vmem:[%s148 + $0x108] sm:$0xff]
                %185 = vst [vmem:[%s149 + $0x88] sm:$0xff] %v184
              $region41: #{resnet_generator_forward.21} parent=35 // loop_footer
                %s147 = sadd.s32 1, %s143
              $region42: #{resnet_generator_forward.21} parent=35 // loop_footer_branch
                %142 = sbr.rel target = $region38
              $region43: #{resnet_generator_forward.21} parent=35 // loop_exit
                _
            $region36: #{resnet_generator_forward.21} parent=31 // pred_fallthru
              _
            // Predicated region
            $region44: #{resnet_generator_forward.21} parent=31 // pred_check
              _
            $region45: #{resnet_generator_forward.21} parent=31 // pred_check_branch
              %187 = sbr.rel target = $region47
            $region46: #{resnet_generator_forward.21} parent=31 // pred_region
              _
            $region47: #{resnet_generator_forward.21} parent=31 // pred_fallthru
              _
          $region32: #{resnet_generator_forward.21} parent=27 // pred_fallthru
            _
          %188 = vnop
        $region28: #{resnet_generator_forward.21} parent=23 // pred_fallthru
          _
      $region24: #{resnet_generator_forward.21} parent=5 // pred_fallthru
        _
      %p189 = scmp.le.s32.totalorder 1, %s9
      %p190 = scmp.lt.s32.totalorder %s9, 3
      %p191 = pnand %p189, %p190
      %p192 = pneg %p191
      // Predicated region
      $region48: #{resnet_generator_forward.21} parent=5 // pred_check
        _
      $region49: #{resnet_generator_forward.21} parent=5 // pred_check_branch
        %194 = sbr.rel (%p191) target = $region51
      $region50: #{resnet_generator_forward.21} parent=5 // pred_region
        %s195 = ssub.s32 %s9, 1
        %s196 = sand.u32 %s22, 1
        %s197 = sand.u32 %s22, 1
        %s198 = smul.addr %s197, 144
        %s199 = scalar_lea.vmem [#allocation2], %s198
        // Predicated region
        $region52: #{resnet_generator_forward.21} parent=50 // pred_check
          %p200 = pneg %p35
        $region53: #{resnet_generator_forward.21} parent=50 // pred_check_branch
          %202 = sbr.rel (%p200) target = $region55
        $region54: #{resnet_generator_forward.21} parent=50 // pred_region
          _
        $region55: #{resnet_generator_forward.21} parent=50 // pred_fallthru
          _
        %s203 = sand.u32 %s22, 1
        %s204 = sand.u32 %s22, 1
        %s205 = smul.addr %s204, 144
        %s206 = scalar_lea.vmem [#allocation2], %s205
        %p207 = pneg %p35
        %p208 = pneg %p32
        %p209 = pneg %p56
        %p210 = pneg %p53
        %p211 = pneg %p77
        %p212 = pneg %p74
        %p213 = pneg %p103
        %p214 = pneg %p100
        %s215 = sand.u32 %s90, 1
        %s216 = sand.u32 %s90, 1
        %s217 = smul.addr %s216, 32
        %s218 = scalar_lea.vmem [#allocation3], %s217
        %s219 = smul.u32 2, %s14
        %s220 = smul.u32 2, %s14
        %v221 = vld [vmem:[%s1] sm:$0xff]
        %v222 = vld [vmem:[%s1 + $0x8] sm:$0xff]
        %v223 = vld [vmem:[%s199] sm:$0xff]
        %v224 = vld [vmem:[%s199 + $0x8] sm:$0xff]
        %v225 = vld [vmem:[%s199 + $0x10] sm:$0xff]
        %v226 = vld [vmem:[%s199 + $0x18] sm:$0xff]
        %v227 = vld [vmem:[%s199 + $0x20] sm:$0xff]
        %v228 = vld [vmem:[%s199 + $0x28] sm:$0xff]
        %v229 = vld [vmem:[%s199 + $0x30] sm:$0xff]
        %v230 = vld [vmem:[%s199 + $0x38] sm:$0xff]
        %v231 = vld [vmem:[%s199 + $0x40] sm:$0xff]
        %v232 = vld [vmem:[%s199 + $0x48] sm:$0xff]
        %v233 = vld [vmem:[%s199 + $0x50] sm:$0xff]
        %v234 = vld [vmem:[%s199 + $0x58] sm:$0xff]
        %v235 = vld [vmem:[%s199 + $0x60] sm:$0xff]
        %v236 = vld [vmem:[%s199 + $0x68] sm:$0xff]
        %v237 = vld [vmem:[%s199 + $0x70] sm:$0xff]
        %v238 = vld [vmem:[%s199 + $0x78] sm:$0xff]
        %v239 = vld [vmem:[%s199 + $0x80] sm:$0xff]
        %v240 = vld [vmem:[%s199 + $0x88] sm:$0xff]
        %v241 = vld [vmem:[%s2] sm:$0xff]
        %v242 = vld [vmem:[%s2 + $0x8] sm:$0xff]
        %244 = vset.pattern.permute.xlu0 0
        %245 = vperm.xlu0 %244, %v241
        %v246 = vpop.permute.xlu0 %245
        %249 = vset.pattern.permute.xlu0 0
        %250 = vperm.xlu0 %249, %v242
        %v251 = vpop.permute.xlu0 %250
        %vm253 = vcmask 588800
        %v255 = vsel %vm253, %v221, 0
        %v258 = vsel %vm253, %v222, 0
        %260 = vmatprep.subr.mxu0 %v224
        %261 = vmatpush1.msra.mxu0 %v223
        %262 = vmatprep.subr.mxu0 %v226
        %263 = vmatpush1.msra.mxu0 %v225
        %264 = vmatprep.subr.mxu0 %v228
        %265 = vmatpush1.msra.mxu0 %v227
        %266 = vmatprep.subr.mxu0 %v230
        %267 = vmatpush1.msra.mxu0 %v229
        %268 = vmatprep.subr.mxu0 %v232
        %269 = vmatpush1.msra.mxu0 %v231
        %270 = vmatprep.subr.mxu0 %v234
        %271 = vmatpush1.msra.mxu0 %v233
        %272 = vmatprep.subr.mxu0 %v236
        %273 = vmatpush1.msra.mxu0 %v235
        %274 = vmatprep.subr.mxu0 %v238
        %275 = vmatpush1.msra.mxu0 %v237
        %276 = vmatprep.subr.mxu0 %v240
        %277 = vmatpush1.msra.mxu0 %v239
        %278 = vmatprep.subr.mxu0 0.0
        %279 = vmatpush1.msra.mxu0 0.0
        %280 = vmatprep.subr.mxu0 0.0
        %281 = vmatpush1.msra.mxu0 0.0
        %282 = vmatprep.subr.mxu0 0.0
        %283 = vmatpush1.msra.mxu0 0.0
        %284 = vmatprep.subr.mxu0 0.0
        %285 = vmatpush1.msra.mxu0 0.0
        %286 = vmatprep.subr.mxu0 0.0
        %287 = vmatpush1.msra.mxu0 0.0
        %288 = vmatprep.subr.mxu0 0.0
        %289 = vmatpush1.msra.mxu0 0.0
        %290 = vmatprep.subr.mxu0 0.0
        %291 = vmatpush1.msra.mxu0 0.0
        %292 = vmatprep.subr.mxu0 0.0
        %293 = vmatpush1.msra.mxu0 0.0
        %294 = vmatprep.subr.mxu0 0.0
        %295 = vmatpush1.msra.mxu0 0.0
        %296 = vmatprep.subr.mxu0 0.0
        %297 = vmatpush1.msra.mxu0 0.0
        %298 = vmatprep.subr.mxu0 0.0
        %299 = vmatpush1.msra.mxu0 0.0
        %300 = vmatprep.subr.mxu0 0.0
        %301 = vmatpush1.msra.mxu0 0.0
        %302 = vmatprep.subr.mxu0 0.0
        %303 = vmatpush1.msra.mxu0 0.0
        %304 = vmatprep.subr.mxu0 0.0
        %305 = vmatpush1.msra.mxu0 0.0
        %306 = vmatprep.subr.mxu0 0.0
        %307 = vmatpush1.msra.mxu0 0.0
        %308 = vmatprep.subr.mxu0 0.0
        %309 = vmatpush1.msra.mxu0 0.0
        %310 = vmatprep.subr.mxu0 0.0
        %311 = vmatpush1.msra.mxu0 0.0
        %312 = vmatprep.subr.mxu0 0.0
        %313 = vmatpush1.msra.mxu0 0.0
        %314 = vmatprep.subr.mxu0 0.0
        %315 = vmatpush1.msra.mxu0 0.0
        %316 = vmatprep.subr.mxu0 0.0
        %317 = vmatpush1.msra.mxu0 0.0
        %318 = vmatprep.subr.mxu0 0.0
        %319 = vmatpush1.msra.mxu0 0.0
        %320 = vmatprep.subr.mxu0 0.0
        %321 = vmatpush1.msra.mxu0 0.0
        %322 = vmatprep.subr.mxu0 0.0
        %323 = vmatpush1.msra.mxu0 0.0
        %324 = vmatprep.mubr.f32.mxu0 0.0
        %325 = vmatmul.mubr.f32.gmra.mrb[0].mxu0 %v255
        %v326 = vpop.f32.mrb[0].mxu0
        %v327 = vadd.f32 %v246, %v326
        %v328 = vpop.f32.mrb[0].mxu0
        %v329 = vadd.f32 %v246, %v328
        %330 = vmatprep.mubr.f32.mxu0 0.0
        %331 = vmatmul.mubr.f32.gmra.mrb[0].mxu0 %v258
        %v332 = vpop.f32.mrb[0].mxu0
        %v333 = vadd.f32 %v251, %v332
        %v334 = vpop.f32.mrb[0].mxu0
        %v335 = vadd.f32 %v251, %v334
        %336 = vdwg.mxu0
        %337 = vst [vmem:[%s218] sm:$0xff] %v327
        %338 = vst [vmem:[%s218 + $0x8] sm:$0xff] %v329
        %339 = vst [vmem:[%s218 + $0x10] sm:$0xff] %v333
        %340 = vst [vmem:[%s218 + $0x18] sm:$0xff] %v335
        %s341 = sand.u32 %s90, 1
        %s342 = sand.u32 %s90, 1
        %s343 = smul.addr %s342, 32
        %s344 = scalar_lea.vmem [#allocation3], %s343
        // Predicated region
        $region56: #{resnet_generator_forward.21} parent=50 // pred_check
          %p345 = pneg %p100
        $region57: #{resnet_generator_forward.21} parent=50 // pred_check_branch
          %347 = sbr.rel (%p345) target = $region59
        $region58: #{resnet_generator_forward.21} parent=50 // pred_region
          %s348 = smul.u32 2, %s14
          %s349 = smul.addr %s348, 8
          %s350 = scalar_lea.vmem %s3, %s349
          // Predicated region
          $region60: #{resnet_generator_forward.21} parent=58 // pred_check
            _
          $region61: #{resnet_generator_forward.21} parent=58 // pred_check_branch
            %352 = sbr.rel (0) target = $region63
          $region62: #{resnet_generator_forward.21} parent=58 // pred_region
            // Predicated region
            $region64: #{resnet_generator_forward.21} parent=62 // pred_check
              _
            $region65: #{resnet_generator_forward.21} parent=62 // pred_check_branch
              %354 = sbr.rel (0) target = $region67
            $region66: #{resnet_generator_forward.21} parent=62 // pred_region
              loop: start=0, step=1, limit=1
              $region68: #{resnet_generator_forward.21} parent=66 // loop_pre_header
                _
              $region69: #{resnet_generator_forward.21} parent=66 // loop_header
                %s356 = sphi 0, %s360
                %p357 = scmp.ge.s32.totalorder %s356, 1
                %s361 = sphi %s344, %s344
                %s362 = sphi %s350, %s350
              $region70: #{resnet_generator_forward.21} parent=66 // loop_header_branch
                %359 = sbr.rel (%p357) target = $region74
              $region71: #{resnet_generator_forward.21} parent=66 // loop_body
                %v363 = vld [vmem:[%s361] sm:$0xff]
                %364 = vst [vmem:[%s362] sm:$0xff] %v363
                %v365 = vld [vmem:[%s361 + $0x8] sm:$0xff]
                %366 = vst [vmem:[%s362 + $0x8] sm:$0xff] %v365
                %v367 = vld [vmem:[%s361 + $0x10] sm:$0xff]
                %368 = vst [vmem:[%s362 + $0x20] sm:$0xff] %v367
                %v369 = vld [vmem:[%s361 + $0x18] sm:$0xff]
                %370 = vst [vmem:[%s362 + $0x28] sm:$0xff] %v369
              $region72: #{resnet_generator_forward.21} parent=66 // loop_footer
                %s360 = sadd.s32 1, %s356
              $region73: #{resnet_generator_forward.21} parent=66 // loop_footer_branch
                %355 = sbr.rel target = $region69
              $region74: #{resnet_generator_forward.21} parent=66 // loop_exit
                _
            $region67: #{resnet_generator_forward.21} parent=62 // pred_fallthru
              _
            // Predicated region
            $region75: #{resnet_generator_forward.21} parent=62 // pred_check
              _
            $region76: #{resnet_generator_forward.21} parent=62 // pred_check_branch
              %372 = sbr.rel target = $region78
            $region77: #{resnet_generator_forward.21} parent=62 // pred_region
              _
            $region78: #{resnet_generator_forward.21} parent=62 // pred_fallthru
              _
          $region63: #{resnet_generator_forward.21} parent=58 // pred_fallthru
            _
          %373 = vnop
        $region59: #{resnet_generator_forward.21} parent=50 // pred_fallthru
          _
      $region51: #{resnet_generator_forward.21} parent=5 // pred_fallthru
        _
      %p374 = scmp.le.s32.totalorder 2, %s9
      // Predicated region
      $region79: #{resnet_generator_forward.21} parent=5 // pred_check
        %p375 = pneg %p374
      $region80: #{resnet_generator_forward.21} parent=5 // pred_check_branch
        %377 = sbr.rel (%p375) target = $region82
      $region81: #{resnet_generator_forward.21} parent=5 // pred_region
        %s378 = ssub.s32 %s9, 2
        // Predicated region
        $region83: #{resnet_generator_forward.21} parent=81 // pred_check
          %p379 = pneg %p106
        $region84: #{resnet_generator_forward.21} parent=81 // pred_check_branch
          %381 = sbr.rel (%p379) target = $region86
        $region85: #{resnet_generator_forward.21} parent=81 // pred_region
          %s382 = sand.u32 %s91, 1
          %s383 = sand.u32 %s91, 1
          %s384 = smul.addr %s383, 32
          %s385 = scalar_lea.vmem [#allocation3], %s384
        $region86: #{resnet_generator_forward.21} parent=81 // pred_fallthru
          _
      $region82: #{resnet_generator_forward.21} parent=5 // pred_fallthru
        _
    $region6: #{resnet_generator_forward.21} parent=1 // loop_footer
      %s13 = sadd.s32 1, %s9
    $region7: #{resnet_generator_forward.21} parent=1 // loop_footer_branch
      %8 = sbr.rel target = $region3
    $region8: #{resnet_generator_forward.21} parent=1 // loop_exit
      _

// kernel: resnet_generator_forward.22
$region0: #{resnet_generator_forward.22}
  #allocation0 [shape = 'u32[]', space=smem, size = 0x4, offset = 0x4, fixed_abs, tag = 'smem constant byte address 0x4 - core index']
  #allocation1 [shape = 'u32[144,128]{1,0:T(1,128)}', space=vmem, size = 0x12000, scoped, tag = 'internal scratch']
  %s0 = inlined_call_operand.vmem [shape: f32[16,512], index: 0, kind: input, shape index: {}]
  %s1 = inlined_call_operand.vmem [shape: f32[16,1], index: 1, kind: input, shape index: {}]
  %s2 = inlined_call_operand.vmem [shape: f32[16,1], index: 2, kind: input, shape index: {}]
  %s3 = inlined_call_operand.vmem [shape: f32[16,512], index: 3, kind: output, shape index: {}]
  %s4 = sld [smem:[#allocation0]]
  $region45: #{resnet_generator_forward.22} parent=0
    _
  %s6 = ssub.s32 1, %s4
  %s7 = scalar_select 0, %s6, %s4
  loop: start=0, step=1, limit=4
  $region2: #{resnet_generator_forward.22} parent=0 // loop_pre_header
    _
  $region3: #{resnet_generator_forward.22} parent=0 // loop_header
    %s9 = sphi 0, %s13
    %p10 = scmp.ge.s32.totalorder %s9, 4
    %s19 = sphi 0, %s21
    %s22 = sphi 0, %s19
    %s23 = sphi 0, %s22
    %s39 = sphi 0, %s23
    %s45 = sphi 0, %s47
    %s48 = sphi 0, %s45
    %s49 = sphi 0, %s48
    %s65 = sphi 0, %s49
    %s71 = sphi 0, %s73
    %s74 = sphi 0, %s71
    %s75 = sphi 0, %s74
    %s91 = sphi 0, %s75
    %s97 = sphi 0, %s99
    %s100 = sphi 0, %s97
    %s101 = sphi 0, %s100
    %s117 = sphi 0, %s101
  $region4: #{resnet_generator_forward.22} parent=0 // loop_header_branch
    %12 = sbr.rel (%p10) target = $region8
  $region5: #{resnet_generator_forward.22} parent=0 // loop_body
    %s14 = ssub.s32 %s9, 1
    %s15 = ssub.s32 %s9, 2
    %s16 = sadd.s32 %s9, 1
    %s17 = ssub.s32 %s9, %s16
    %p18 = scmp.eq.s32.totalorder %s17, 0
    %s20 = sadd.s32 %s19, 1
    %s21 = scalar_select %p18, %s19, %s20
    %p24 = pneg %p18
    %p25 = scmp.eq.s32.totalorder %s9, 1
    %p26 = por %p24, %p25
    %p27 = scmp.ne.s32.totalorder %s19, %s22
    %p28 = scmp.eq.s32.totalorder %s9, 0
    %p29 = por %p27, %p28
    %p30 = scmp.ne.s32.totalorder %s19, %s22
    %p31 = scmp.eq.s32.totalorder %s14, 1
    %p32 = por %p30, %p31
    %p33 = scmp.ne.s32.totalorder %s22, %s23
    %p34 = scmp.eq.s32.totalorder %s14, 0
    %p35 = por %p33, %p34
    %p36 = scmp.ne.s32.totalorder %s22, %s23
    %p37 = scmp.eq.s32.totalorder %s15, 1
    %p38 = por %p36, %p37
    %p40 = scmp.ne.s32.totalorder %s23, %s39
    %p41 = scmp.eq.s32.totalorder %s15, 0
    %p42 = por %p40, %p41
    %s43 = ssub.s32 %s9, %s16
    %p44 = scmp.eq.s32.totalorder %s43, 0
    %s46 = sadd.s32 %s45, 1
    %s47 = scalar_select %p44, %s45, %s46
    %p50 = pneg %p44
    %p51 = scmp.eq.s32.totalorder %s9, 1
    %p52 = por %p50, %p51
    %p53 = scmp.ne.s32.totalorder %s45, %s48
    %p54 = scmp.eq.s32.totalorder %s9, 0
    %p55 = por %p53, %p54
    %p56 = scmp.ne.s32.totalorder %s45, %s48
    %p57 = scmp.eq.s32.totalorder %s14, 1
    %p58 = por %p56, %p57
    %p59 = scmp.ne.s32.totalorder %s48, %s49
    %p60 = scmp.eq.s32.totalorder %s14, 0
    %p61 = por %p59, %p60
    %p62 = scmp.ne.s32.totalorder %s48, %s49
    %p63 = scmp.eq.s32.totalorder %s15, 1
    %p64 = por %p62, %p63
    %p66 = scmp.ne.s32.totalorder %s49, %s65
    %p67 = scmp.eq.s32.totalorder %s15, 0
    %p68 = por %p66, %p67
    %s69 = ssub.s32 %s9, %s16
    %p70 = scmp.eq.s32.totalorder %s69, 0
    %s72 = sadd.s32 %s71, 1
    %s73 = scalar_select %p70, %s71, %s72
    %p76 = pneg %p70
    %p77 = scmp.eq.s32.totalorder %s9, 1
    %p78 = por %p76, %p77
    %p79 = scmp.ne.s32.totalorder %s71, %s74
    %p80 = scmp.eq.s32.totalorder %s9, 0
    %p81 = por %p79, %p80
    %p82 = scmp.ne.s32.totalorder %s71, %s74
    %p83 = scmp.eq.s32.totalorder %s14, 1
    %p84 = por %p82, %p83
    %p85 = scmp.ne.s32.totalorder %s74, %s75
    %p86 = scmp.eq.s32.totalorder %s14, 0
    %p87 = por %p85, %p86
    %p88 = scmp.ne.s32.totalorder %s74, %s75
    %p89 = scmp.eq.s32.totalorder %s15, 1
    %p90 = por %p88, %p89
    %p92 = scmp.ne.s32.totalorder %s75, %s91
    %p93 = scmp.eq.s32.totalorder %s15, 0
    %p94 = por %p92, %p93
    %s95 = ssub.s32 %s9, %s16
    %p96 = scmp.eq.s32.totalorder %s95, 0
    %s98 = sadd.s32 %s97, 1
    %s99 = scalar_select %p96, %s97, %s98
    %p102 = pneg %p96
    %p103 = scmp.eq.s32.totalorder %s9, 1
    %p104 = por %p102, %p103
    %p105 = scmp.ne.s32.totalorder %s97, %s100
    %p106 = scmp.eq.s32.totalorder %s9, 0
    %p107 = por %p105, %p106
    %p108 = scmp.ne.s32.totalorder %s97, %s100
    %p109 = scmp.eq.s32.totalorder %s14, 1
    %p110 = por %p108, %p109
    %p111 = scmp.ne.s32.totalorder %s100, %s101
    %p112 = scmp.eq.s32.totalorder %s14, 0
    %p113 = por %p111, %p112
    %p114 = scmp.ne.s32.totalorder %s100, %s101
    %p115 = scmp.eq.s32.totalorder %s15, 1
    %p116 = por %p114, %p115
    %p118 = scmp.ne.s32.totalorder %s101, %s117
    %p119 = scmp.eq.s32.totalorder %s15, 0
    %p120 = por %p118, %p119
    %p121 = scmp.le.s32.totalorder 1, %s9
    %p122 = scmp.lt.s32.totalorder %s9, 3
    %p123 = pnand %p121, %p122
    %p124 = pneg %p123
    // Predicated region
    $region9: #{resnet_generator_forward.22} parent=5 // pred_check
      _
    $region10: #{resnet_generator_forward.22} parent=5 // pred_check_branch
      %126 = sbr.rel (%p123) target = $region12
    $region11: #{resnet_generator_forward.22} parent=5 // pred_region
      %s127 = ssub.s32 %s9, 1
    $region12: #{resnet_generator_forward.22} parent=5 // pred_fallthru
      _
    %p128 = scmp.lt.s32.totalorder %s9, 2
    // Predicated region
    $region13: #{resnet_generator_forward.22} parent=5 // pred_check
      %p129 = pneg %p128
    $region14: #{resnet_generator_forward.22} parent=5 // pred_check_branch
      %131 = sbr.rel (%p129) target = $region16
    $region15: #{resnet_generator_forward.22} parent=5 // pred_region
      // Predicated region
      $region17: #{resnet_generator_forward.22} parent=15 // pred_check
        %p132 = pneg %p29
      $region18: #{resnet_generator_forward.22} parent=15 // pred_check_branch
        %134 = sbr.rel (%p132) target = $region20
      $region19: #{resnet_generator_forward.22} parent=15 // pred_region
        %p135 = scmp.lt.s32.totalorder %s9, 1
        %s136 = scalar_select %p135, %s9, 1
        %s137 = smul.addr %s136, 4
        %s138 = smul.addr %s137, 8
        %s139 = scalar_lea.vmem %s0, %s138
      $region20: #{resnet_generator_forward.22} parent=15 // pred_fallthru
        _
      // Predicated region
      $region21: #{resnet_generator_forward.22} parent=15 // pred_check
        %p140 = pneg %p55
      $region22: #{resnet_generator_forward.22} parent=15 // pred_check_branch
        %142 = sbr.rel (%p140) target = $region24
      $region23: #{resnet_generator_forward.22} parent=15 // pred_region
        %p143 = scmp.lt.s32.totalorder %s9, 1
        %s144 = scalar_select %p143, %s9, 1
        %s145 = smul.addr %s144, 8
        %s146 = scalar_lea.vmem %s1, %s145
      $region24: #{resnet_generator_forward.22} parent=15 // pred_fallthru
        _
      // Predicated region
      $region25: #{resnet_generator_forward.22} parent=15 // pred_check
        %p147 = pneg %p81
      $region26: #{resnet_generator_forward.22} parent=15 // pred_check_branch
        %149 = sbr.rel (%p147) target = $region28
      $region27: #{resnet_generator_forward.22} parent=15 // pred_region
        %p150 = scmp.lt.s32.totalorder %s9, 1
        %s151 = scalar_select %p150, %s9, 1
        %s152 = smul.addr %s151, 8
        %s153 = scalar_lea.vmem %s2, %s152
      $region28: #{resnet_generator_forward.22} parent=15 // pred_fallthru
        _
    $region16: #{resnet_generator_forward.22} parent=5 // pred_fallthru
      _
    %p154 = scmp.le.s32.totalorder 1, %s9
    %p155 = scmp.lt.s32.totalorder %s9, 3
    %p156 = pnand %p154, %p155
    %p157 = pneg %p156
    // Predicated region
    $region29: #{resnet_generator_forward.22} parent=5 // pred_check
      _
    $region30: #{resnet_generator_forward.22} parent=5 // pred_check_branch
      %159 = sbr.rel (%p156) target = $region32
    $region31: #{resnet_generator_forward.22} parent=5 // pred_region
      %s160 = ssub.s32 %s9, 1
      %p161 = scmp.lt.s32.totalorder %s14, 1
      %s162 = scalar_select %p161, %s14, 1
      %s163 = smul.addr %s162, 4
      %s164 = smul.addr %s163, 8
      %s165 = scalar_lea.vmem %s0, %s164
      %p166 = pneg %p35
      %p167 = pneg %p32
      %p168 = scmp.lt.s32.totalorder %s14, 1
      %s169 = scalar_select %p168, %s14, 1
      %s170 = smul.addr %s169, 8
      %s171 = scalar_lea.vmem %s1, %s170
      %p172 = pneg %p61
      %p173 = pneg %p58
      %p174 = scmp.lt.s32.totalorder %s14, 1
      %s175 = scalar_select %p174, %s14, 1
      %s176 = smul.addr %s175, 8
      %s177 = scalar_lea.vmem %s2, %s176
      %p178 = pneg %p87
      %p179 = pneg %p84
      %p180 = pneg %p113
      %p181 = pneg %p110
      %p182 = scmp.lt.s32.totalorder %s14, 1
      %s183 = scalar_select %p182, %s14, 1
      %s184 = smul.addr %s183, 4
      %s185 = smul.addr %s184, 8
      %s186 = scalar_lea.vmem %s3, %s185
      %p187 = scmp.lt.s32.totalorder %s14, 1
      %s188 = scalar_select %p187, %s14, 1
      %s189 = smul.addr %s188, 4
      %s190 = smul.addr %s189, 8
      %s191 = scalar_lea.vmem %s0, %s190
      %p192 = scmp.lt.s32.totalorder %s14, 1
      %s193 = scalar_select %p192, %s14, 1
      %s194 = smul.addr %s193, 8
      %s195 = scalar_lea.vmem %s1, %s194
      %p196 = scmp.lt.s32.totalorder %s14, 1
      %s197 = scalar_select %p196, %s14, 1
      %s198 = smul.addr %s197, 8
      %s199 = scalar_lea.vmem %s2, %s198
      %p200 = scmp.lt.s32.totalorder %s14, 1
      %s201 = scalar_select %p200, %s14, 1
      %s202 = smul.addr %s201, 4
      %s203 = smul.addr %s202, 8
      %s204 = scalar_lea.vmem %s3, %s203
      %v205 = vld [vmem:[%s191] sm:$0xff]
      %v206 = vld [vmem:[%s191 + $0x8] sm:$0xff]
      %v207 = vld [vmem:[%s191 + $0x10] sm:$0xff]
      %v208 = vld [vmem:[%s191 + $0x18] sm:$0xff]
      %v209 = vadd.f32 %v205, %v206
      %v210 = vadd.f32 %v209, %v207
      %v211 = vadd.f32 %v210, %v208
      %212 = vadd.xlane.f32.xlu0 %v211
      %v213 = vpop.xlane.xlu0 %212
      %v214 = vmul.f32 %v213, 0.001953125
      %v215 = vsub.f32 %v205, %v214
      %v216 = vsub.f32 %v206, %v214
      %v217 = vsub.f32 %v207, %v214
      %v218 = vsub.f32 %v208, %v214
      %v219 = vmul.f32 %v215, %v215
      %v220 = vmul.f32 %v216, %v216
      %v221 = vmul.f32 %v217, %v217
      %v222 = vmul.f32 %v218, %v218
      %v223 = vadd.f32 %v219, %v220
      %v224 = vadd.f32 %v223, %v221
      %v225 = vadd.f32 %v224, %v222
      %226 = vadd.xlane.f32.xlu0 %v225
      %v227 = vpop.xlane.xlu0 %226
      %v228 = vmul.f32 %v227, 0.001953125
      %v229 = vld [vmem:[%s195] sm:$0xff]
      %v230 = vadd.f32 %v228, 1e-05
      %v231 = vrsqrt.pop %v230
      %v232 = vmul.f32 %v229, %v231
      %v233 = vld [vmem:[%s199] sm:$0xff]
      %v234 = vmul.f32 %v214, %v232
      %v235 = vsub.f32 %v233, %v234
      %237 = vset.pattern.permute.xlu0 0
      %238 = vperm.xlu0 %237, %v232
      %v239 = vpop.permute.xlu0 %238
      %v241 = vmul.f32 %v205, %v239
      %v242 = vmul.f32 %v206, %v239
      %v243 = vmul.f32 %v207, %v239
      %v244 = vmul.f32 %v208, %v239
      %246 = vset.pattern.permute.xlu0 0
      %247 = vperm.xlu0 %246, %v235
      %v248 = vpop.permute.xlu0 %247
      %v250 = vadd.f32 %v241, %v248
      %v251 = vadd.f32 %v242, %v248
      %v252 = vadd.f32 %v243, %v248
      %v253 = vadd.f32 %v244, %v248
      %v254 = vmax.f32 %v250, 0.0
      %v255 = vmax.f32 %v251, 0.0
      %v256 = vmax.f32 %v252, 0.0
      %v257 = vmax.f32 %v253, 0.0
      %258 = vst [vmem:[%s204] sm:$0xff] %v254
      %259 = vst [vmem:[%s204 + $0x8] sm:$0xff] %v255
      %260 = vst [vmem:[%s204 + $0x10] sm:$0xff] %v256
      %261 = vst [vmem:[%s204 + $0x18] sm:$0xff] %v257
      %p262 = scmp.lt.s32.totalorder %s14, 1
      %s263 = scalar_select %p262, %s14, 1
      %s264 = smul.addr %s263, 4
      %s265 = smul.addr %s264, 8
      %s266 = scalar_lea.vmem %s3, %s265
      // Predicated region
      $region33: #{resnet_generator_forward.22} parent=31 // pred_check
        %p267 = pneg %p110
      $region34: #{resnet_generator_forward.22} parent=31 // pred_check_branch
        %269 = sbr.rel (%p267) target = $region36
      $region35: #{resnet_generator_forward.22} parent=31 // pred_region
        _
      $region36: #{resnet_generator_forward.22} parent=31 // pred_fallthru
        _
    $region32: #{resnet_generator_forward.22} parent=5 // pred_fallthru
      _
    %p270 = scmp.le.s32.totalorder 2, %s9
    // Predicated region
    $region37: #{resnet_generator_forward.22} parent=5 // pred_check
      %p271 = pneg %p270
    $region38: #{resnet_generator_forward.22} parent=5 // pred_check_branch
      %273 = sbr.rel (%p271) target = $region40
    $region39: #{resnet_generator_forward.22} parent=5 // pred_region
      %s274 = ssub.s32 %s9, 2
      // Predicated region
      $region41: #{resnet_generator_forward.22} parent=39 // pred_check
        %p275 = pneg %p116
      $region42: #{resnet_generator_forward.22} parent=39 // pred_check_branch
        %277 = sbr.rel (%p275) target = $region44
      $region43: #{resnet_generator_forward.22} parent=39 // pred_region
        %p278 = scmp.lt.s32.totalorder %s15, 1
        %s279 = scalar_select %p278, %s15, 1
        %s280 = smul.addr %s279, 4
        %s281 = smul.addr %s280, 8
        %s282 = scalar_lea.vmem %s3, %s281
      $region44: #{resnet_generator_forward.22} parent=39 // pred_fallthru
        _
    $region40: #{resnet_generator_forward.22} parent=5 // pred_fallthru
      _
  $region6: #{resnet_generator_forward.22} parent=0 // loop_footer
    %s13 = sadd.s32 1, %s9
  $region7: #{resnet_generator_forward.22} parent=0 // loop_footer_branch
    %8 = sbr.rel target = $region3
  $region8: #{resnet_generator_forward.22} parent=0 // loop_exit
    _

// kernel: resnet_generator_forward.23
$region0: #{resnet_generator_forward.23}
  #allocation0 [shape = 'u32[]', space=smem, size = 0x4, offset = 0x4, fixed_abs, tag = 'smem constant byte address 0x4 - core index']
  #allocation1 [shape = 'u32[144,128]{1,0:T(1,128)}', space=vmem, size = 0x12000, scoped, tag = 'internal scratch']
  %s0 = inlined_call_operand.vmem [shape: f32[144,128], index: 0, kind: input, shape index: {}]
  %s1 = inlined_call_operand.vmem [shape: f32[32,144], index: 1, kind: input, shape index: {}]
  %s2 = inlined_call_operand.vmem [shape: f32[32,1], index: 2, kind: input, shape index: {}]
  %s3 = inlined_call_operand.vmem [shape: f32[32,128], index: 3, kind: output, shape index: {}]
  %s4 = sld [smem:[#allocation0]]
  $region22: #{resnet_generator_forward.23} parent=0
    _
  %s6 = ssub.s32 1, %s4
  %s7 = scalar_select 0, %s6, %s4
  // Predicated region
  $region2: #{resnet_generator_forward.23} parent=0 // pred_check
    _
  $region3: #{resnet_generator_forward.23} parent=0 // pred_check_branch
    %9 = sbr.rel (0) target = $region5
  $region4: #{resnet_generator_forward.23} parent=0 // pred_region
    _
  $region5: #{resnet_generator_forward.23} parent=0 // pred_fallthru
    _
  // Predicated region
  $region6: #{resnet_generator_forward.23} parent=0 // pred_check
    _
  $region7: #{resnet_generator_forward.23} parent=0 // pred_check_branch
    %11 = sbr.rel (0) target = $region9
  $region8: #{resnet_generator_forward.23} parent=0 // pred_region
    _
  $region9: #{resnet_generator_forward.23} parent=0 // pred_fallthru
    _
  // Predicated region
  $region10: #{resnet_generator_forward.23} parent=0 // pred_check
    _
  $region11: #{resnet_generator_forward.23} parent=0 // pred_check_branch
    %13 = sbr.rel (0) target = $region13
  $region12: #{resnet_generator_forward.23} parent=0 // pred_region
    _
  $region13: #{resnet_generator_forward.23} parent=0 // pred_fallthru
    _
  %v14 = vld [vmem:[%s1] sm:$0xff]
  %v15 = vld [vmem:[%s1 + $0x8] sm:$0xff]
  %v16 = vld [vmem:[%s1 + $0x10] sm:$0xff]
  %v17 = vld [vmem:[%s1 + $0x18] sm:$0xff]
  %v18 = vld [vmem:[%s1 + $0x20] sm:$0xff]
  %v19 = vld [vmem:[%s1 + $0x28] sm:$0xff]
  %v20 = vld [vmem:[%s1 + $0x30] sm:$0xff]
  %v21 = vld [vmem:[%s1 + $0x38] sm:$0xff]
  %v22 = vld [vmem:[%s0] sm:$0xff]
  %v23 = vld [vmem:[%s0 + $0x8] sm:$0xff]
  %v24 = vld [vmem:[%s0 + $0x10] sm:$0xff]
  %v25 = vld [vmem:[%s0 + $0x18] sm:$0xff]
  %v26 = vld [vmem:[%s0 + $0x20] sm:$0xff]
  %v27 = vld [vmem:[%s0 + $0x28] sm:$0xff]
  %v28 = vld [vmem:[%s0 + $0x30] sm:$0xff]
  %v29 = vld [vmem:[%s0 + $0x38] sm:$0xff]
  %v30 = vld [vmem:[%s0 + $0x40] sm:$0xff]
  %v31 = vld [vmem:[%s0 + $0x48] sm:$0xff]
  %v32 = vld [vmem:[%s0 + $0x50] sm:$0xff]
  %v33 = vld [vmem:[%s0 + $0x58] sm:$0xff]
  %v34 = vld [vmem:[%s0 + $0x60] sm:$0xff]
  %v35 = vld [vmem:[%s0 + $0x68] sm:$0xff]
  %v36 = vld [vmem:[%s0 + $0x70] sm:$0xff]
  %v37 = vld [vmem:[%s0 + $0x78] sm:$0xff]
  %v38 = vld [vmem:[%s0 + $0x80] sm:$0xff]
  %v39 = vld [vmem:[%s0 + $0x88] sm:$0xff]
  %v40 = vld [vmem:[%s2] sm:$0xff]
  %v41 = vld [vmem:[%s2 + $0x8] sm:$0xff]
  %v42 = vld [vmem:[%s2 + $0x10] sm:$0xff]
  %v43 = vld [vmem:[%s2 + $0x18] sm:$0xff]
  %45 = vset.pattern.permute.xlu0 0
  %46 = vperm.xlu0 %45, %v40
  %v47 = vpop.permute.xlu0 %46
  %50 = vset.pattern.permute.xlu0 0
  %51 = vperm.xlu0 %50, %v41
  %v52 = vpop.permute.xlu0 %51
  %55 = vset.pattern.permute.xlu0 0
  %56 = vperm.xlu0 %55, %v42
  %v57 = vpop.permute.xlu0 %56
  %60 = vset.pattern.permute.xlu0 0
  %61 = vperm.xlu0 %60, %v43
  %v62 = vpop.permute.xlu0 %61
  %vm64 = vcmask 130048
  %v66 = vsel %vm64, %v15, 0
  %v69 = vsel %vm64, %v17, 0
  %v72 = vsel %vm64, %v19, 0
  %v75 = vsel %vm64, %v21, 0
  %77 = vmatprep.subr.mxu0 0.0
  %78 = vmatpush1.msra.mxu0 %v22
  %79 = vmatprep.subr.mxu0 0.0
  %80 = vmatpush1.msra.mxu0 %v23
  %81 = vmatprep.subr.mxu0 0.0
  %82 = vmatpush1.msra.mxu0 %v24
  %83 = vmatprep.subr.mxu0 0.0
  %84 = vmatpush1.msra.mxu0 %v25
  %85 = vmatprep.subr.mxu0 0.0
  %86 = vmatpush1.msra.mxu0 %v26
  %87 = vmatprep.subr.mxu0 0.0
  %88 = vmatpush1.msra.mxu0 %v27
  %89 = vmatprep.subr.mxu0 0.0
  %90 = vmatpush1.msra.mxu0 %v28
  %91 = vmatprep.subr.mxu0 0.0
  %92 = vmatpush1.msra.mxu0 %v29
  %93 = vmatprep.subr.mxu0 0.0
  %94 = vmatpush1.msra.mxu0 %v30
  %95 = vmatprep.subr.mxu0 0.0
  %96 = vmatpush1.msra.mxu0 %v31
  %97 = vmatprep.subr.mxu0 0.0
  %98 = vmatpush1.msra.mxu0 %v32
  %99 = vmatprep.subr.mxu0 0.0
  %100 = vmatpush1.msra.mxu0 %v33
  %101 = vmatprep.subr.mxu0 0.0
  %102 = vmatpush1.msra.mxu0 %v34
  %103 = vmatprep.subr.mxu0 0.0
  %104 = vmatpush1.msra.mxu0 %v35
  %105 = vmatprep.subr.mxu0 0.0
  %106 = vmatpush1.msra.mxu0 %v36
  %107 = vmatprep.subr.mxu0 0.0
  %108 = vmatpush1.msra.mxu0 %v37
  %109 = vmatprep.subr.mxu0 0.0
  %110 = vmatpush1.msra.mxu0 %v38
  %111 = vmatprep.subr.mxu0 0.0
  %112 = vmatpush1.msra.mxu0 %v39
  %113 = vmatprep.subr.mxu0 0.0
  %114 = vmatpush1.msra.mxu0 0.0
  %115 = vmatprep.subr.mxu0 0.0
  %116 = vmatpush1.msra.mxu0 0.0
  %117 = vmatprep.subr.mxu0 0.0
  %118 = vmatpush1.msra.mxu0 0.0
  %119 = vmatprep.subr.mxu0 0.0
  %120 = vmatpush1.msra.mxu0 0.0
  %121 = vmatprep.subr.mxu0 0.0
  %122 = vmatpush1.msra.mxu0 0.0
  %123 = vmatprep.subr.mxu0 0.0
  %124 = vmatpush1.msra.mxu0 0.0
  %125 = vmatprep.subr.mxu0 0.0
  %126 = vmatpush1.msra.mxu0 0.0
  %127 = vmatprep.subr.mxu0 0.0
  %128 = vmatpush1.msra.mxu0 0.0
  %129 = vmatprep.subr.mxu0 0.0
  %130 = vmatpush1.msra.mxu0 0.0
  %131 = vmatprep.subr.mxu0 0.0
  %132 = vmatpush1.msra.mxu0 0.0
  %133 = vmatprep.subr.mxu0 0.0
  %134 = vmatpush1.msra.mxu0 0.0
  %135 = vmatprep.subr.mxu0 0.0
  %136 = vmatpush1.msra.mxu0 0.0
  %137 = vmatprep.subr.mxu0 0.0
  %138 = vmatpush1.msra.mxu0 0.0
  %139 = vmatprep.subr.mxu0 0.0
  %140 = vmatpush1.msra.mxu0 0.0
  %141 = vmatprep.mubr.f32.mxu0 %v66
  %142 = vmatmul.mubr.f32.gmra.mrb[0].mxu0 %v14
  %v143 = vpop.f32.mrb[0].mxu0
  %v144 = vadd.f32 %v47, %v143
  %v145 = vpop.f32.mrb[0].mxu0
  %146 = vmatprep.mubr.f32.mxu0 %v69
  %147 = vmatmul.mubr.f32.gmra.mrb[0].mxu0 %v16
  %v148 = vpop.f32.mrb[0].mxu0
  %v149 = vadd.f32 %v52, %v148
  %v150 = vpop.f32.mrb[0].mxu0
  %151 = vmatprep.mubr.f32.mxu0 %v72
  %152 = vmatmul.mubr.f32.gmra.mrb[0].mxu0 %v18
  %v153 = vpop.f32.mrb[0].mxu0
  %v154 = vadd.f32 %v57, %v153
  %v155 = vpop.f32.mrb[0].mxu0
  %156 = vmatprep.mubr.f32.mxu0 %v75
  %157 = vmatmul.mubr.f32.gmra.mrb[0].mxu0 %v20
  %v158 = vpop.f32.mrb[0].mxu0
  %v159 = vadd.f32 %v62, %v158
  %v160 = vpop.f32.mrb[0].mxu0
  %161 = vdwg.mxu0
  %162 = vst [vmem:[%s3] sm:$0xff] %v144
  %163 = vst [vmem:[%s3 + $0x8] sm:$0xff] %v149
  %164 = vst [vmem:[%s3 + $0x10] sm:$0xff] %v154
  %165 = vst [vmem:[%s3 + $0x18] sm:$0xff] %v159
  // Predicated region
  $region14: #{resnet_generator_forward.23} parent=0 // pred_check
    _
  $region15: #{resnet_generator_forward.23} parent=0 // pred_check_branch
    %167 = sbr.rel (0) target = $region17
  $region16: #{resnet_generator_forward.23} parent=0 // pred_region
    _
  $region17: #{resnet_generator_forward.23} parent=0 // pred_fallthru
    _
  // Predicated region
  $region18: #{resnet_generator_forward.23} parent=0 // pred_check
    _
  $region19: #{resnet_generator_forward.23} parent=0 // pred_check_branch
    %169 = sbr.rel (0) target = $region21
  $region20: #{resnet_generator_forward.23} parent=0 // pred_region
    _
  $region21: #{resnet_generator_forward.23} parent=0 // pred_fallthru
    _

// kernel: resnet_generator_forward.24
$region0: #{resnet_generator_forward.24}
  #allocation0 [shape = 'u32[]', space=smem, size = 0x4, offset = 0x4, fixed_abs, tag = 'smem constant byte address 0x4 - core index']
  #allocation1 [shape = 'u32[144,128]{1,0:T(1,128)}', space=vmem, size = 0x12000, scoped, tag = 'internal scratch']
  %s0 = inlined_call_operand.vmem [shape: f32[32,128], index: 0, kind: input, shape index: {}]
  %s1 = inlined_call_operand.vmem [shape: f32[32,1], index: 1, kind: input, shape index: {}]
  %s2 = inlined_call_operand.vmem [shape: f32[32,1], index: 2, kind: input, shape index: {}]
  %s3 = inlined_call_operand.vmem [shape: f32[32,128], index: 3, kind: output, shape index: {}]
  %s4 = sld [smem:[#allocation0]]
  $region45: #{resnet_generator_forward.24} parent=0
    _
  %s6 = ssub.s32 1, %s4
  %s7 = scalar_select 0, %s6, %s4
  loop: start=0, step=1, limit=6
  $region2: #{resnet_generator_forward.24} parent=0 // loop_pre_header
    _
  $region3: #{resnet_generator_forward.24} parent=0 // loop_header
    %s9 = sphi 0, %s13
    %p10 = scmp.ge.s32.totalorder %s9, 6
    %s19 = sphi 0, %s21
    %s22 = sphi 0, %s19
    %s23 = sphi 0, %s22
    %s39 = sphi 0, %s23
    %s45 = sphi 0, %s47
    %s48 = sphi 0, %s45
    %s49 = sphi 0, %s48
    %s65 = sphi 0, %s49
    %s71 = sphi 0, %s73
    %s74 = sphi 0, %s71
    %s75 = sphi 0, %s74
    %s91 = sphi 0, %s75
    %s97 = sphi 0, %s99
    %s100 = sphi 0, %s97
    %s101 = sphi 0, %s100
    %s117 = sphi 0, %s101
  $region4: #{resnet_generator_forward.24} parent=0 // loop_header_branch
    %12 = sbr.rel (%p10) target = $region8
  $region5: #{resnet_generator_forward.24} parent=0 // loop_body
    %s14 = ssub.s32 %s9, 1
    %s15 = ssub.s32 %s9, 2
    %s16 = sadd.s32 %s9, 1
    %s17 = ssub.s32 %s9, %s16
    %p18 = scmp.eq.s32.totalorder %s17, 0
    %s20 = sadd.s32 %s19, 1
    %s21 = scalar_select %p18, %s19, %s20
    %p24 = pneg %p18
    %p25 = scmp.eq.s32.totalorder %s9, 3
    %p26 = por %p24, %p25
    %p27 = scmp.ne.s32.totalorder %s19, %s22
    %p28 = scmp.eq.s32.totalorder %s9, 0
    %p29 = por %p27, %p28
    %p30 = scmp.ne.s32.totalorder %s19, %s22
    %p31 = scmp.eq.s32.totalorder %s14, 3
    %p32 = por %p30, %p31
    %p33 = scmp.ne.s32.totalorder %s22, %s23
    %p34 = scmp.eq.s32.totalorder %s14, 0
    %p35 = por %p33, %p34
    %p36 = scmp.ne.s32.totalorder %s22, %s23
    %p37 = scmp.eq.s32.totalorder %s15, 3
    %p38 = por %p36, %p37
    %p40 = scmp.ne.s32.totalorder %s23, %s39
    %p41 = scmp.eq.s32.totalorder %s15, 0
    %p42 = por %p40, %p41
    %s43 = ssub.s32 %s9, %s16
    %p44 = scmp.eq.s32.totalorder %s43, 0
    %s46 = sadd.s32 %s45, 1
    %s47 = scalar_select %p44, %s45, %s46
    %p50 = pneg %p44
    %p51 = scmp.eq.s32.totalorder %s9, 3
    %p52 = por %p50, %p51
    %p53 = scmp.ne.s32.totalorder %s45, %s48
    %p54 = scmp.eq.s32.totalorder %s9, 0
    %p55 = por %p53, %p54
    %p56 = scmp.ne.s32.totalorder %s45, %s48
    %p57 = scmp.eq.s32.totalorder %s14, 3
    %p58 = por %p56, %p57
    %p59 = scmp.ne.s32.totalorder %s48, %s49
    %p60 = scmp.eq.s32.totalorder %s14, 0
    %p61 = por %p59, %p60
    %p62 = scmp.ne.s32.totalorder %s48, %s49
    %p63 = scmp.eq.s32.totalorder %s15, 3
    %p64 = por %p62, %p63
    %p66 = scmp.ne.s32.totalorder %s49, %s65
    %p67 = scmp.eq.s32.totalorder %s15, 0
    %p68 = por %p66, %p67
    %s69 = ssub.s32 %s9, %s16
    %p70 = scmp.eq.s32.totalorder %s69, 0
    %s72 = sadd.s32 %s71, 1
    %s73 = scalar_select %p70, %s71, %s72
    %p76 = pneg %p70
    %p77 = scmp.eq.s32.totalorder %s9, 3
    %p78 = por %p76, %p77
    %p79 = scmp.ne.s32.totalorder %s71, %s74
    %p80 = scmp.eq.s32.totalorder %s9, 0
    %p81 = por %p79, %p80
    %p82 = scmp.ne.s32.totalorder %s71, %s74
    %p83 = scmp.eq.s32.totalorder %s14, 3
    %p84 = por %p82, %p83
    %p85 = scmp.ne.s32.totalorder %s74, %s75
    %p86 = scmp.eq.s32.totalorder %s14, 0
    %p87 = por %p85, %p86
    %p88 = scmp.ne.s32.totalorder %s74, %s75
    %p89 = scmp.eq.s32.totalorder %s15, 3
    %p90 = por %p88, %p89
    %p92 = scmp.ne.s32.totalorder %s75, %s91
    %p93 = scmp.eq.s32.totalorder %s15, 0
    %p94 = por %p92, %p93
    %s95 = ssub.s32 %s9, %s16
    %p96 = scmp.eq.s32.totalorder %s95, 0
    %s98 = sadd.s32 %s97, 1
    %s99 = scalar_select %p96, %s97, %s98
    %p102 = pneg %p96
    %p103 = scmp.eq.s32.totalorder %s9, 3
    %p104 = por %p102, %p103
    %p105 = scmp.ne.s32.totalorder %s97, %s100
    %p106 = scmp.eq.s32.totalorder %s9, 0
    %p107 = por %p105, %p106
    %p108 = scmp.ne.s32.totalorder %s97, %s100
    %p109 = scmp.eq.s32.totalorder %s14, 3
    %p110 = por %p108, %p109
    %p111 = scmp.ne.s32.totalorder %s100, %s101
    %p112 = scmp.eq.s32.totalorder %s14, 0
    %p113 = por %p111, %p112
    %p114 = scmp.ne.s32.totalorder %s100, %s101
    %p115 = scmp.eq.s32.totalorder %s15, 3
    %p116 = por %p114, %p115
    %p118 = scmp.ne.s32.totalorder %s101, %s117
    %p119 = scmp.eq.s32.totalorder %s15, 0
    %p120 = por %p118, %p119
    %p121 = scmp.le.s32.totalorder 1, %s9
    %p122 = scmp.lt.s32.totalorder %s9, 5
    %p123 = pnand %p121, %p122
    %p124 = pneg %p123
    // Predicated region
    $region9: #{resnet_generator_forward.24} parent=5 // pred_check
      _
    $region10: #{resnet_generator_forward.24} parent=5 // pred_check_branch
      %126 = sbr.rel (%p123) target = $region12
    $region11: #{resnet_generator_forward.24} parent=5 // pred_region
      %s127 = ssub.s32 %s9, 1
    $region12: #{resnet_generator_forward.24} parent=5 // pred_fallthru
      _
    %p128 = scmp.lt.s32.totalorder %s9, 4
    // Predicated region
    $region13: #{resnet_generator_forward.24} parent=5 // pred_check
      %p129 = pneg %p128
    $region14: #{resnet_generator_forward.24} parent=5 // pred_check_branch
      %131 = sbr.rel (%p129) target = $region16
    $region15: #{resnet_generator_forward.24} parent=5 // pred_region
      // Predicated region
      $region17: #{resnet_generator_forward.24} parent=15 // pred_check
        %p132 = pneg %p29
      $region18: #{resnet_generator_forward.24} parent=15 // pred_check_branch
        %134 = sbr.rel (%p132) target = $region20
      $region19: #{resnet_generator_forward.24} parent=15 // pred_region
        %p135 = scmp.lt.s32.totalorder %s9, 3
        %s136 = scalar_select %p135, %s9, 3
        %s137 = smul.addr %s136, 8
        %s138 = scalar_lea.vmem %s0, %s137
      $region20: #{resnet_generator_forward.24} parent=15 // pred_fallthru
        _
      // Predicated region
      $region21: #{resnet_generator_forward.24} parent=15 // pred_check
        %p139 = pneg %p55
      $region22: #{resnet_generator_forward.24} parent=15 // pred_check_branch
        %141 = sbr.rel (%p139) target = $region24
      $region23: #{resnet_generator_forward.24} parent=15 // pred_region
        %p142 = scmp.lt.s32.totalorder %s9, 3
        %s143 = scalar_select %p142, %s9, 3
        %s144 = smul.addr %s143, 8
        %s145 = scalar_lea.vmem %s1, %s144
      $region24: #{resnet_generator_forward.24} parent=15 // pred_fallthru
        _
      // Predicated region
      $region25: #{resnet_generator_forward.24} parent=15 // pred_check
        %p146 = pneg %p81
      $region26: #{resnet_generator_forward.24} parent=15 // pred_check_branch
        %148 = sbr.rel (%p146) target = $region28
      $region27: #{resnet_generator_forward.24} parent=15 // pred_region
        %p149 = scmp.lt.s32.totalorder %s9, 3
        %s150 = scalar_select %p149, %s9, 3
        %s151 = smul.addr %s150, 8
        %s152 = scalar_lea.vmem %s2, %s151
      $region28: #{resnet_generator_forward.24} parent=15 // pred_fallthru
        _
    $region16: #{resnet_generator_forward.24} parent=5 // pred_fallthru
      _
    %p153 = scmp.le.s32.totalorder 1, %s9
    %p154 = scmp.lt.s32.totalorder %s9, 5
    %p155 = pnand %p153, %p154
    %p156 = pneg %p155
    // Predicated region
    $region29: #{resnet_generator_forward.24} parent=5 // pred_check
      _
    $region30: #{resnet_generator_forward.24} parent=5 // pred_check_branch
      %158 = sbr.rel (%p155) target = $region32
    $region31: #{resnet_generator_forward.24} parent=5 // pred_region
      %s159 = ssub.s32 %s9, 1
      %p160 = scmp.lt.s32.totalorder %s14, 3
      %s161 = scalar_select %p160, %s14, 3
      %s162 = smul.addr %s161, 8
      %s163 = scalar_lea.vmem %s0, %s162
      %p164 = pneg %p35
      %p165 = pneg %p32
      %p166 = scmp.lt.s32.totalorder %s14, 3
      %s167 = scalar_select %p166, %s14, 3
      %s168 = smul.addr %s167, 8
      %s169 = scalar_lea.vmem %s1, %s168
      %p170 = pneg %p61
      %p171 = pneg %p58
      %p172 = scmp.lt.s32.totalorder %s14, 3
      %s173 = scalar_select %p172, %s14, 3
      %s174 = smul.addr %s173, 8
      %s175 = scalar_lea.vmem %s2, %s174
      %p176 = pneg %p87
      %p177 = pneg %p84
      %p178 = pneg %p113
      %p179 = pneg %p110
      %p180 = scmp.lt.s32.totalorder %s14, 3
      %s181 = scalar_select %p180, %s14, 3
      %s182 = smul.addr %s181, 8
      %s183 = scalar_lea.vmem %s3, %s182
      %p184 = scmp.lt.s32.totalorder %s14, 3
      %s185 = scalar_select %p184, %s14, 3
      %s186 = smul.addr %s185, 8
      %s187 = scalar_lea.vmem %s0, %s186
      %p188 = scmp.lt.s32.totalorder %s14, 3
      %s189 = scalar_select %p188, %s14, 3
      %s190 = smul.addr %s189, 8
      %s191 = scalar_lea.vmem %s1, %s190
      %p192 = scmp.lt.s32.totalorder %s14, 3
      %s193 = scalar_select %p192, %s14, 3
      %s194 = smul.addr %s193, 8
      %s195 = scalar_lea.vmem %s2, %s194
      %p196 = scmp.lt.s32.totalorder %s14, 3
      %s197 = scalar_select %p196, %s14, 3
      %s198 = smul.addr %s197, 8
      %s199 = scalar_lea.vmem %s3, %s198
      %v200 = vld [vmem:[%s187] sm:$0xff]
      %201 = vadd.xlane.f32.xlu0 %v200
      %v202 = vpop.xlane.xlu0 %201
      %v203 = vmul.f32 %v202, 0.0078125
      %v204 = vsub.f32 %v200, %v203
      %v205 = vmul.f32 %v204, %v204
      %206 = vadd.xlane.f32.xlu0 %v205
      %v207 = vpop.xlane.xlu0 %206
      %v208 = vmul.f32 %v207, 0.0078125
      %v209 = vld [vmem:[%s191] sm:$0xff]
      %v210 = vadd.f32 %v208, 1e-05
      %v211 = vrsqrt.pop %v210
      %v212 = vmul.f32 %v209, %v211
      %v213 = vld [vmem:[%s195] sm:$0xff]
      %v214 = vmul.f32 %v203, %v212
      %v215 = vsub.f32 %v213, %v214
      %217 = vset.pattern.permute.xlu0 0
      %218 = vperm.xlu0 %217, %v212
      %v219 = vpop.permute.xlu0 %218
      %v221 = vmul.f32 %v200, %v219
      %223 = vset.pattern.permute.xlu0 0
      %224 = vperm.xlu0 %223, %v215
      %v225 = vpop.permute.xlu0 %224
      %v227 = vadd.f32 %v221, %v225
      %v228 = vmax.f32 %v227, 0.0
      %229 = vst [vmem:[%s199] sm:$0xff] %v228
      %p230 = scmp.lt.s32.totalorder %s14, 3
      %s231 = scalar_select %p230, %s14, 3
      %s232 = smul.addr %s231, 8
      %s233 = scalar_lea.vmem %s3, %s232
      // Predicated region
      $region33: #{resnet_generator_forward.24} parent=31 // pred_check
        %p234 = pneg %p110
      $region34: #{resnet_generator_forward.24} parent=31 // pred_check_branch
        %236 = sbr.rel (%p234) target = $region36
      $region35: #{resnet_generator_forward.24} parent=31 // pred_region
        _
      $region36: #{resnet_generator_forward.24} parent=31 // pred_fallthru
        _
    $region32: #{resnet_generator_forward.24} parent=5 // pred_fallthru
      _
    %p237 = scmp.le.s32.totalorder 2, %s9
    // Predicated region
    $region37: #{resnet_generator_forward.24} parent=5 // pred_check
      %p238 = pneg %p237
    $region38: #{resnet_generator_forward.24} parent=5 // pred_check_branch
      %240 = sbr.rel (%p238) target = $region40
    $region39: #{resnet_generator_forward.24} parent=5 // pred_region
      %s241 = ssub.s32 %s9, 2
      // Predicated region
      $region41: #{resnet_generator_forward.24} parent=39 // pred_check
        %p242 = pneg %p116
      $region42: #{resnet_generator_forward.24} parent=39 // pred_check_branch
        %244 = sbr.rel (%p242) target = $region44
      $region43: #{resnet_generator_forward.24} parent=39 // pred_region
        %p245 = scmp.lt.s32.totalorder %s15, 3
        %s246 = scalar_select %p245, %s15, 3
        %s247 = smul.addr %s246, 8
        %s248 = scalar_lea.vmem %s3, %s247
      $region44: #{resnet_generator_forward.24} parent=39 // pred_fallthru
        _
    $region40: #{resnet_generator_forward.24} parent=5 // pred_fallthru
      _
  $region6: #{resnet_generator_forward.24} parent=0 // loop_footer
    %s13 = sadd.s32 1, %s9
  $region7: #{resnet_generator_forward.24} parent=0 // loop_footer_branch
    %8 = sbr.rel target = $region3
  $region8: #{resnet_generator_forward.24} parent=0 // loop_exit
    _

// kernel: resnet_generator_forward.25
$region0: #{resnet_generator_forward.25}
  #allocation0 [shape = 'u32[]', space=smem, size = 0x4, offset = 0x4, fixed_abs, tag = 'smem constant byte address 0x4 - core index']
  #allocation1 [shape = 'u32[144,128]{1,0:T(1,128)}', space=vmem, size = 0x12000, scoped, tag = 'internal scratch']
  %s0 = inlined_call_operand.vmem [shape: f32[288,128], index: 0, kind: input, shape index: {}]
  %s1 = inlined_call_operand.vmem [shape: f32[32,288], index: 1, kind: input, shape index: {}]
  %s2 = inlined_call_operand.vmem [shape: f32[32,1], index: 2, kind: input, shape index: {}]
  %s3 = inlined_call_operand.vmem [shape: f32[32,128], index: 3, kind: output, shape index: {}]
  %s4 = sld [smem:[#allocation0]]
  $region22: #{resnet_generator_forward.25} parent=0
    _
  %s6 = ssub.s32 1, %s4
  %s7 = scalar_select 0, %s6, %s4
  // Predicated region
  $region2: #{resnet_generator_forward.25} parent=0 // pred_check
    _
  $region3: #{resnet_generator_forward.25} parent=0 // pred_check_branch
    %9 = sbr.rel (0) target = $region5
  $region4: #{resnet_generator_forward.25} parent=0 // pred_region
    _
  $region5: #{resnet_generator_forward.25} parent=0 // pred_fallthru
    _
  // Predicated region
  $region6: #{resnet_generator_forward.25} parent=0 // pred_check
    _
  $region7: #{resnet_generator_forward.25} parent=0 // pred_check_branch
    %11 = sbr.rel (0) target = $region9
  $region8: #{resnet_generator_forward.25} parent=0 // pred_region
    _
  $region9: #{resnet_generator_forward.25} parent=0 // pred_fallthru
    _
  // Predicated region
  $region10: #{resnet_generator_forward.25} parent=0 // pred_check
    _
  $region11: #{resnet_generator_forward.25} parent=0 // pred_check_branch
    %13 = sbr.rel (0) target = $region13
  $region12: #{resnet_generator_forward.25} parent=0 // pred_region
    _
  $region13: #{resnet_generator_forward.25} parent=0 // pred_fallthru
    _
  %v14 = vld [vmem:[%s1] sm:$0xff]
  %v15 = vld [vmem:[%s1 + $0x8] sm:$0xff]
  %v16 = vld [vmem:[%s1 + $0x10] sm:$0xff]
  %v17 = vld [vmem:[%s1 + $0x18] sm:$0xff]
  %v18 = vld [vmem:[%s1 + $0x20] sm:$0xff]
  %v19 = vld [vmem:[%s1 + $0x28] sm:$0xff]
  %v20 = vld [vmem:[%s1 + $0x30] sm:$0xff]
  %v21 = vld [vmem:[%s1 + $0x38] sm:$0xff]
  %v22 = vld [vmem:[%s1 + $0x40] sm:$0xff]
  %v23 = vld [vmem:[%s1 + $0x48] sm:$0xff]
  %v24 = vld [vmem:[%s1 + $0x50] sm:$0xff]
  %v25 = vld [vmem:[%s1 + $0x58] sm:$0xff]
  %v26 = vld [vmem:[%s0] sm:$0xff]
  %v27 = vld [vmem:[%s0 + $0x8] sm:$0xff]
  %v28 = vld [vmem:[%s0 + $0x10] sm:$0xff]
  %v29 = vld [vmem:[%s0 + $0x18] sm:$0xff]
  %v30 = vld [vmem:[%s0 + $0x20] sm:$0xff]
  %v31 = vld [vmem:[%s0 + $0x28] sm:$0xff]
  %v32 = vld [vmem:[%s0 + $0x30] sm:$0xff]
  %v33 = vld [vmem:[%s0 + $0x38] sm:$0xff]
  %v34 = vld [vmem:[%s0 + $0x40] sm:$0xff]
  %v35 = vld [vmem:[%s0 + $0x48] sm:$0xff]
  %v36 = vld [vmem:[%s0 + $0x50] sm:$0xff]
  %v37 = vld [vmem:[%s0 + $0x58] sm:$0xff]
  %v38 = vld [vmem:[%s0 + $0x60] sm:$0xff]
  %v39 = vld [vmem:[%s0 + $0x68] sm:$0xff]
  %v40 = vld [vmem:[%s0 + $0x70] sm:$0xff]
  %v41 = vld [vmem:[%s0 + $0x78] sm:$0xff]
  %v42 = vld [vmem:[%s0 + $0x80] sm:$0xff]
  %v43 = vld [vmem:[%s0 + $0x88] sm:$0xff]
  %v44 = vld [vmem:[%s0 + $0x90] sm:$0xff]
  %v45 = vld [vmem:[%s0 + $0x98] sm:$0xff]
  %v46 = vld [vmem:[%s0 + $0xa0] sm:$0xff]
  %v47 = vld [vmem:[%s0 + $0xa8] sm:$0xff]
  %v48 = vld [vmem:[%s0 + $0xb0] sm:$0xff]
  %v49 = vld [vmem:[%s0 + $0xb8] sm:$0xff]
  %v50 = vld [vmem:[%s0 + $0xc0] sm:$0xff]
  %v51 = vld [vmem:[%s0 + $0xc8] sm:$0xff]
  %v52 = vld [vmem:[%s0 + $0xd0] sm:$0xff]
  %v53 = vld [vmem:[%s0 + $0xd8] sm:$0xff]
  %v54 = vld [vmem:[%s0 + $0xe0] sm:$0xff]
  %v55 = vld [vmem:[%s0 + $0xe8] sm:$0xff]
  %v56 = vld [vmem:[%s0 + $0xf0] sm:$0xff]
  %v57 = vld [vmem:[%s0 + $0xf8] sm:$0xff]
  %v58 = vld [vmem:[%s0 + $0x100] sm:$0xff]
  %v59 = vld [vmem:[%s0 + $0x108] sm:$0xff]
  %v60 = vld [vmem:[%s0 + $0x110] sm:$0xff]
  %v61 = vld [vmem:[%s0 + $0x118] sm:$0xff]
  %v62 = vld [vmem:[%s2] sm:$0xff]
  %v63 = vld [vmem:[%s2 + $0x8] sm:$0xff]
  %v64 = vld [vmem:[%s2 + $0x10] sm:$0xff]
  %v65 = vld [vmem:[%s2 + $0x18] sm:$0xff]
  %67 = vset.pattern.permute.xlu0 0
  %68 = vperm.xlu0 %67, %v62
  %v69 = vpop.permute.xlu0 %68
  %72 = vset.pattern.permute.xlu0 0
  %73 = vperm.xlu0 %72, %v63
  %v74 = vpop.permute.xlu0 %73
  %77 = vset.pattern.permute.xlu0 0
  %78 = vperm.xlu0 %77, %v64
  %v79 = vpop.permute.xlu0 %78
  %82 = vset.pattern.permute.xlu0 0
  %83 = vperm.xlu0 %82, %v65
  %v84 = vpop.permute.xlu0 %83
  %vm86 = vcmask 261120
  %v88 = vsel %vm86, %v16, 0
  %v91 = vsel %vm86, %v19, 0
  %v94 = vsel %vm86, %v22, 0
  %v97 = vsel %vm86, %v25, 0
  %99 = vmatprep.subr.mxu0 0.0
  %100 = vmatpush1.msra.mxu0 %v26
  %101 = vmatprep.subr.mxu0 0.0
  %102 = vmatpush1.msra.mxu0 %v27
  %103 = vmatprep.subr.mxu0 0.0
  %104 = vmatpush1.msra.mxu0 %v28
  %105 = vmatprep.subr.mxu0 0.0
  %106 = vmatpush1.msra.mxu0 %v29
  %107 = vmatprep.subr.mxu0 0.0
  %108 = vmatpush1.msra.mxu0 %v30
  %109 = vmatprep.subr.mxu0 0.0
  %110 = vmatpush1.msra.mxu0 %v31
  %111 = vmatprep.subr.mxu0 0.0
  %112 = vmatpush1.msra.mxu0 %v32
  %113 = vmatprep.subr.mxu0 0.0
  %114 = vmatpush1.msra.mxu0 %v33
  %115 = vmatprep.subr.mxu0 0.0
  %116 = vmatpush1.msra.mxu0 %v34
  %117 = vmatprep.subr.mxu0 0.0
  %118 = vmatpush1.msra.mxu0 %v35
  %119 = vmatprep.subr.mxu0 0.0
  %120 = vmatpush1.msra.mxu0 %v36
  %121 = vmatprep.subr.mxu0 0.0
  %122 = vmatpush1.msra.mxu0 %v37
  %123 = vmatprep.subr.mxu0 0.0
  %124 = vmatpush1.msra.mxu0 %v38
  %125 = vmatprep.subr.mxu0 0.0
  %126 = vmatpush1.msra.mxu0 %v39
  %127 = vmatprep.subr.mxu0 0.0
  %128 = vmatpush1.msra.mxu0 %v40
  %129 = vmatprep.subr.mxu0 0.0
  %130 = vmatpush1.msra.mxu0 %v41
  %131 = vmatprep.subr.mxu0 0.0
  %132 = vmatpush1.msra.mxu0 %v42
  %133 = vmatprep.subr.mxu0 0.0
  %134 = vmatpush1.msra.mxu0 %v43
  %135 = vmatprep.subr.mxu0 0.0
  %136 = vmatpush1.msra.mxu0 %v44
  %137 = vmatprep.subr.mxu0 0.0
  %138 = vmatpush1.msra.mxu0 %v45
  %139 = vmatprep.subr.mxu0 0.0
  %140 = vmatpush1.msra.mxu0 %v46
  %141 = vmatprep.subr.mxu0 0.0
  %142 = vmatpush1.msra.mxu0 %v47
  %143 = vmatprep.subr.mxu0 0.0
  %144 = vmatpush1.msra.mxu0 %v48
  %145 = vmatprep.subr.mxu0 0.0
  %146 = vmatpush1.msra.mxu0 %v49
  %147 = vmatprep.subr.mxu0 0.0
  %148 = vmatpush1.msra.mxu0 %v50
  %149 = vmatprep.subr.mxu0 0.0
  %150 = vmatpush1.msra.mxu0 %v51
  %151 = vmatprep.subr.mxu0 0.0
  %152 = vmatpush1.msra.mxu0 %v52
  %153 = vmatprep.subr.mxu0 0.0
  %154 = vmatpush1.msra.mxu0 %v53
  %155 = vmatprep.subr.mxu0 0.0
  %156 = vmatpush1.msra.mxu0 %v54
  %157 = vmatprep.subr.mxu0 0.0
  %158 = vmatpush1.msra.mxu0 %v55
  %159 = vmatprep.subr.mxu0 0.0
  %160 = vmatpush1.msra.mxu0 %v56
  %161 = vmatprep.subr.mxu0 0.0
  %162 = vmatpush1.msra.mxu0 %v57
  %163 = vmatprep.mubr.f32.mxu0 %v15
  %164 = vmatmul.mubr.f32.gmra.mrb[0].mxu0 %v14
  %v165 = vpop.f32.mrb[0].mxu0
  %v166 = vadd.f32 %v69, %v165
  %v167 = vpop.f32.mrb[0].mxu0
  %168 = vmatprep.mubr.f32.mxu0 %v18
  %169 = vmatmul.mubr.f32.gmra.mrb[0].mxu0 %v17
  %v170 = vpop.f32.mrb[0].mxu0
  %v171 = vadd.f32 %v74, %v170
  %v172 = vpop.f32.mrb[0].mxu0
  %173 = vmatprep.mubr.f32.mxu0 %v21
  %174 = vmatmul.mubr.f32.gmra.mrb[0].mxu0 %v20
  %v175 = vpop.f32.mrb[0].mxu0
  %v176 = vadd.f32 %v79, %v175
  %v177 = vpop.f32.mrb[0].mxu0
  %178 = vmatprep.mubr.f32.mxu0 %v24
  %179 = vmatmul.mubr.f32.gmra.mrb[0].mxu0 %v23
  %v180 = vpop.f32.mrb[0].mxu0
  %v181 = vadd.f32 %v84, %v180
  %v182 = vpop.f32.mrb[0].mxu0
  %183 = vdwg.mxu0
  %184 = vmatprep.subr.mxu0 0.0
  %185 = vmatpush1.msra.mxu0 %v58
  %186 = vmatprep.subr.mxu0 0.0
  %187 = vmatpush1.msra.mxu0 %v59
  %188 = vmatprep.subr.mxu0 0.0
  %189 = vmatpush1.msra.mxu0 %v60
  %190 = vmatprep.subr.mxu0 0.0
  %191 = vmatpush1.msra.mxu0 %v61
  %192 = vmatprep.subr.mxu0 0.0
  %193 = vmatpush1.msra.mxu0 0.0
  %194 = vmatprep.subr.mxu0 0.0
  %195 = vmatpush1.msra.mxu0 0.0
  %196 = vmatprep.subr.mxu0 0.0
  %197 = vmatpush1.msra.mxu0 0.0
  %198 = vmatprep.subr.mxu0 0.0
  %199 = vmatpush1.msra.mxu0 0.0
  %200 = vmatprep.subr.mxu0 0.0
  %201 = vmatpush1.msra.mxu0 0.0
  %202 = vmatprep.subr.mxu0 0.0
  %203 = vmatpush1.msra.mxu0 0.0
  %204 = vmatprep.subr.mxu0 0.0
  %205 = vmatpush1.msra.mxu0 0.0
  %206 = vmatprep.subr.mxu0 0.0
  %207 = vmatpush1.msra.mxu0 0.0
  %208 = vmatprep.subr.mxu0 0.0
  %209 = vmatpush1.msra.mxu0 0.0
  %210 = vmatprep.subr.mxu0 0.0
  %211 = vmatpush1.msra.mxu0 0.0
  %212 = vmatprep.subr.mxu0 0.0
  %213 = vmatpush1.msra.mxu0 0.0
  %214 = vmatprep.subr.mxu0 0.0
  %215 = vmatpush1.msra.mxu0 0.0
  %216 = vmatprep.subr.mxu0 0.0
  %217 = vmatpush1.msra.mxu0 0.0
  %218 = vmatprep.subr.mxu0 0.0
  %219 = vmatpush1.msra.mxu0 0.0
  %220 = vmatprep.subr.mxu0 0.0
  %221 = vmatpush1.msra.mxu0 0.0
  %222 = vmatprep.subr.mxu0 0.0
  %223 = vmatpush1.msra.mxu0 0.0
  %224 = vmatprep.subr.mxu0 0.0
  %225 = vmatpush1.msra.mxu0 0.0
  %226 = vmatprep.subr.mxu0 0.0
  %227 = vmatpush1.msra.mxu0 0.0
  %228 = vmatprep.subr.mxu0 0.0
  %229 = vmatpush1.msra.mxu0 0.0
  %230 = vmatprep.subr.mxu0 0.0
  %231 = vmatpush1.msra.mxu0 0.0
  %232 = vmatprep.subr.mxu0 0.0
  %233 = vmatpush1.msra.mxu0 0.0
  %234 = vmatprep.subr.mxu0 0.0
  %235 = vmatpush1.msra.mxu0 0.0
  %236 = vmatprep.subr.mxu0 0.0
  %237 = vmatpush1.msra.mxu0 0.0
  %238 = vmatprep.subr.mxu0 0.0
  %239 = vmatpush1.msra.mxu0 0.0
  %240 = vmatprep.subr.mxu0 0.0
  %241 = vmatpush1.msra.mxu0 0.0
  %242 = vmatprep.subr.mxu0 0.0
  %243 = vmatpush1.msra.mxu0 0.0
  %244 = vmatprep.subr.mxu0 0.0
  %245 = vmatpush1.msra.mxu0 0.0
  %246 = vmatprep.subr.mxu0 0.0
  %247 = vmatpush1.msra.mxu0 0.0
  %248 = vmatprep.mubr.f32.mxu0 0.0
  %249 = vmatmul.mubr.f32.gmra.mrb[0].mxu0 %v88
  %v250 = vpop.f32.mrb[0].mxu0
  %v251 = vadd.f32 %v166, %v250
  %v252 = vpop.f32.mrb[0].mxu0
  %253 = vmatprep.mubr.f32.mxu0 0.0
  %254 = vmatmul.mubr.f32.gmra.mrb[0].mxu0 %v91
  %v255 = vpop.f32.mrb[0].mxu0
  %v256 = vadd.f32 %v171, %v255
  %v257 = vpop.f32.mrb[0].mxu0
  %258 = vmatprep.mubr.f32.mxu0 0.0
  %259 = vmatmul.mubr.f32.gmra.mrb[0].mxu0 %v94
  %v260 = vpop.f32.mrb[0].mxu0
  %v261 = vadd.f32 %v176, %v260
  %v262 = vpop.f32.mrb[0].mxu0
  %263 = vmatprep.mubr.f32.mxu0 0.0
  %264 = vmatmul.mubr.f32.gmra.mrb[0].mxu0 %v97
  %v265 = vpop.f32.mrb[0].mxu0
  %v266 = vadd.f32 %v181, %v265
  %v267 = vpop.f32.mrb[0].mxu0
  %268 = vdwg.mxu0
  %269 = vst [vmem:[%s3] sm:$0xff] %v251
  %270 = vst [vmem:[%s3 + $0x8] sm:$0xff] %v256
  %271 = vst [vmem:[%s3 + $0x10] sm:$0xff] %v261
  %272 = vst [vmem:[%s3 + $0x18] sm:$0xff] %v266
  // Predicated region
  $region14: #{resnet_generator_forward.25} parent=0 // pred_check
    _
  $region15: #{resnet_generator_forward.25} parent=0 // pred_check_branch
    %274 = sbr.rel (0) target = $region17
  $region16: #{resnet_generator_forward.25} parent=0 // pred_region
    _
  $region17: #{resnet_generator_forward.25} parent=0 // pred_fallthru
    _
  // Predicated region
  $region18: #{resnet_generator_forward.25} parent=0 // pred_check
    _
  $region19: #{resnet_generator_forward.25} parent=0 // pred_check_branch
    %276 = sbr.rel (0) target = $region21
  $region20: #{resnet_generator_forward.25} parent=0 // pred_region
    _
  $region21: #{resnet_generator_forward.25} parent=0 // pred_fallthru
    _

// kernel: resnet_generator_forward.28
$region0: #{resnet_generator_forward.28}
  #allocation0 [shape = 'u32[]', space=smem, size = 0x4, offset = 0x4, fixed_abs, tag = 'smem constant byte address 0x4 - core index']
  #allocation1 [shape = 'u32[144,128]{1,0:T(1,128)}', space=vmem, size = 0x12000, scoped, tag = 'internal scratch']
  %s0 = inlined_call_operand.vmem [shape: f32[32,128], index: 0, kind: input, shape index: {}]
  %s1 = inlined_call_operand.vmem [shape: f32[32,1], index: 1, kind: input, shape index: {}]
  %s2 = inlined_call_operand.vmem [shape: f32[32,1], index: 2, kind: input, shape index: {}]
  %s3 = inlined_call_operand.vmem [shape: f32[32,128], index: 3, kind: input, shape index: {}]
  %s4 = inlined_call_operand.vmem [shape: f32[32,128], index: 4, kind: output, shape index: {}]
  %s5 = sld [smem:[#allocation0]]
  $region49: #{resnet_generator_forward.28} parent=0
    _
  %s7 = ssub.s32 1, %s5
  %s8 = scalar_select 0, %s7, %s5
  loop: start=0, step=1, limit=6
  $region2: #{resnet_generator_forward.28} parent=0 // loop_pre_header
    _
  $region3: #{resnet_generator_forward.28} parent=0 // loop_header
    %s10 = sphi 0, %s14
    %p11 = scmp.ge.s32.totalorder %s10, 6
    %s20 = sphi 0, %s22
    %s23 = sphi 0, %s20
    %s24 = sphi 0, %s23
    %s40 = sphi 0, %s24
    %s46 = sphi 0, %s48
    %s49 = sphi 0, %s46
    %s50 = sphi 0, %s49
    %s66 = sphi 0, %s50
    %s72 = sphi 0, %s74
    %s75 = sphi 0, %s72
    %s76 = sphi 0, %s75
    %s92 = sphi 0, %s76
    %s98 = sphi 0, %s100
    %s101 = sphi 0, %s98
    %s102 = sphi 0, %s101
    %s118 = sphi 0, %s102
    %s124 = sphi 0, %s126
    %s127 = sphi 0, %s124
    %s128 = sphi 0, %s127
    %s144 = sphi 0, %s128
  $region4: #{resnet_generator_forward.28} parent=0 // loop_header_branch
    %13 = sbr.rel (%p11) target = $region8
  $region5: #{resnet_generator_forward.28} parent=0 // loop_body
    %s15 = ssub.s32 %s10, 1
    %s16 = ssub.s32 %s10, 2
    %s17 = sadd.s32 %s10, 1
    %s18 = ssub.s32 %s10, %s17
    %p19 = scmp.eq.s32.totalorder %s18, 0
    %s21 = sadd.s32 %s20, 1
    %s22 = scalar_select %p19, %s20, %s21
    %p25 = pneg %p19
    %p26 = scmp.eq.s32.totalorder %s10, 3
    %p27 = por %p25, %p26
    %p28 = scmp.ne.s32.totalorder %s20, %s23
    %p29 = scmp.eq.s32.totalorder %s10, 0
    %p30 = por %p28, %p29
    %p31 = scmp.ne.s32.totalorder %s20, %s23
    %p32 = scmp.eq.s32.totalorder %s15, 3
    %p33 = por %p31, %p32
    %p34 = scmp.ne.s32.totalorder %s23, %s24
    %p35 = scmp.eq.s32.totalorder %s15, 0
    %p36 = por %p34, %p35
    %p37 = scmp.ne.s32.totalorder %s23, %s24
    %p38 = scmp.eq.s32.totalorder %s16, 3
    %p39 = por %p37, %p38
    %p41 = scmp.ne.s32.totalorder %s24, %s40
    %p42 = scmp.eq.s32.totalorder %s16, 0
    %p43 = por %p41, %p42
    %s44 = ssub.s32 %s10, %s17
    %p45 = scmp.eq.s32.totalorder %s44, 0
    %s47 = sadd.s32 %s46, 1
    %s48 = scalar_select %p45, %s46, %s47
    %p51 = pneg %p45
    %p52 = scmp.eq.s32.totalorder %s10, 3
    %p53 = por %p51, %p52
    %p54 = scmp.ne.s32.totalorder %s46, %s49
    %p55 = scmp.eq.s32.totalorder %s10, 0
    %p56 = por %p54, %p55
    %p57 = scmp.ne.s32.totalorder %s46, %s49
    %p58 = scmp.eq.s32.totalorder %s15, 3
    %p59 = por %p57, %p58
    %p60 = scmp.ne.s32.totalorder %s49, %s50
    %p61 = scmp.eq.s32.totalorder %s15, 0
    %p62 = por %p60, %p61
    %p63 = scmp.ne.s32.totalorder %s49, %s50
    %p64 = scmp.eq.s32.totalorder %s16, 3
    %p65 = por %p63, %p64
    %p67 = scmp.ne.s32.totalorder %s50, %s66
    %p68 = scmp.eq.s32.totalorder %s16, 0
    %p69 = por %p67, %p68
    %s70 = ssub.s32 %s10, %s17
    %p71 = scmp.eq.s32.totalorder %s70, 0
    %s73 = sadd.s32 %s72, 1
    %s74 = scalar_select %p71, %s72, %s73
    %p77 = pneg %p71
    %p78 = scmp.eq.s32.totalorder %s10, 3
    %p79 = por %p77, %p78
    %p80 = scmp.ne.s32.totalorder %s72, %s75
    %p81 = scmp.eq.s32.totalorder %s10, 0
    %p82 = por %p80, %p81
    %p83 = scmp.ne.s32.totalorder %s72, %s75
    %p84 = scmp.eq.s32.totalorder %s15, 3
    %p85 = por %p83, %p84
    %p86 = scmp.ne.s32.totalorder %s75, %s76
    %p87 = scmp.eq.s32.totalorder %s15, 0
    %p88 = por %p86, %p87
    %p89 = scmp.ne.s32.totalorder %s75, %s76
    %p90 = scmp.eq.s32.totalorder %s16, 3
    %p91 = por %p89, %p90
    %p93 = scmp.ne.s32.totalorder %s76, %s92
    %p94 = scmp.eq.s32.totalorder %s16, 0
    %p95 = por %p93, %p94
    %s96 = ssub.s32 %s10, %s17
    %p97 = scmp.eq.s32.totalorder %s96, 0
    %s99 = sadd.s32 %s98, 1
    %s100 = scalar_select %p97, %s98, %s99
    %p103 = pneg %p97
    %p104 = scmp.eq.s32.totalorder %s10, 3
    %p105 = por %p103, %p104
    %p106 = scmp.ne.s32.totalorder %s98, %s101
    %p107 = scmp.eq.s32.totalorder %s10, 0
    %p108 = por %p106, %p107
    %p109 = scmp.ne.s32.totalorder %s98, %s101
    %p110 = scmp.eq.s32.totalorder %s15, 3
    %p111 = por %p109, %p110
    %p112 = scmp.ne.s32.totalorder %s101, %s102
    %p113 = scmp.eq.s32.totalorder %s15, 0
    %p114 = por %p112, %p113
    %p115 = scmp.ne.s32.totalorder %s101, %s102
    %p116 = scmp.eq.s32.totalorder %s16, 3
    %p117 = por %p115, %p116
    %p119 = scmp.ne.s32.totalorder %s102, %s118
    %p120 = scmp.eq.s32.totalorder %s16, 0
    %p121 = por %p119, %p120
    %s122 = ssub.s32 %s10, %s17
    %p123 = scmp.eq.s32.totalorder %s122, 0
    %s125 = sadd.s32 %s124, 1
    %s126 = scalar_select %p123, %s124, %s125
    %p129 = pneg %p123
    %p130 = scmp.eq.s32.totalorder %s10, 3
    %p131 = por %p129, %p130
    %p132 = scmp.ne.s32.totalorder %s124, %s127
    %p133 = scmp.eq.s32.totalorder %s10, 0
    %p134 = por %p132, %p133
    %p135 = scmp.ne.s32.totalorder %s124, %s127
    %p136 = scmp.eq.s32.totalorder %s15, 3
    %p137 = por %p135, %p136
    %p138 = scmp.ne.s32.totalorder %s127, %s128
    %p139 = scmp.eq.s32.totalorder %s15, 0
    %p140 = por %p138, %p139
    %p141 = scmp.ne.s32.totalorder %s127, %s128
    %p142 = scmp.eq.s32.totalorder %s16, 3
    %p143 = por %p141, %p142
    %p145 = scmp.ne.s32.totalorder %s128, %s144
    %p146 = scmp.eq.s32.totalorder %s16, 0
    %p147 = por %p145, %p146
    %p148 = scmp.le.s32.totalorder 1, %s10
    %p149 = scmp.lt.s32.totalorder %s10, 5
    %p150 = pnand %p148, %p149
    %p151 = pneg %p150
    // Predicated region
    $region9: #{resnet_generator_forward.28} parent=5 // pred_check
      _
    $region10: #{resnet_generator_forward.28} parent=5 // pred_check_branch
      %153 = sbr.rel (%p150) target = $region12
    $region11: #{resnet_generator_forward.28} parent=5 // pred_region
      %s154 = ssub.s32 %s10, 1
    $region12: #{resnet_generator_forward.28} parent=5 // pred_fallthru
      _
    %p155 = scmp.lt.s32.totalorder %s10, 4
    // Predicated region
    $region13: #{resnet_generator_forward.28} parent=5 // pred_check
      %p156 = pneg %p155
    $region14: #{resnet_generator_forward.28} parent=5 // pred_check_branch
      %158 = sbr.rel (%p156) target = $region16
    $region15: #{resnet_generator_forward.28} parent=5 // pred_region
      // Predicated region
      $region17: #{resnet_generator_forward.28} parent=15 // pred_check
        %p159 = pneg %p30
      $region18: #{resnet_generator_forward.28} parent=15 // pred_check_branch
        %161 = sbr.rel (%p159) target = $region20
      $region19: #{resnet_generator_forward.28} parent=15 // pred_region
        %p162 = scmp.lt.s32.totalorder %s10, 3
        %s163 = scalar_select %p162, %s10, 3
        %s164 = smul.addr %s163, 8
        %s165 = scalar_lea.vmem %s0, %s164
      $region20: #{resnet_generator_forward.28} parent=15 // pred_fallthru
        _
      // Predicated region
      $region21: #{resnet_generator_forward.28} parent=15 // pred_check
        %p166 = pneg %p56
      $region22: #{resnet_generator_forward.28} parent=15 // pred_check_branch
        %168 = sbr.rel (%p166) target = $region24
      $region23: #{resnet_generator_forward.28} parent=15 // pred_region
        %p169 = scmp.lt.s32.totalorder %s10, 3
        %s170 = scalar_select %p169, %s10, 3
        %s171 = smul.addr %s170, 8
        %s172 = scalar_lea.vmem %s1, %s171
      $region24: #{resnet_generator_forward.28} parent=15 // pred_fallthru
        _
      // Predicated region
      $region25: #{resnet_generator_forward.28} parent=15 // pred_check
        %p173 = pneg %p82
      $region26: #{resnet_generator_forward.28} parent=15 // pred_check_branch
        %175 = sbr.rel (%p173) target = $region28
      $region27: #{resnet_generator_forward.28} parent=15 // pred_region
        %p176 = scmp.lt.s32.totalorder %s10, 3
        %s177 = scalar_select %p176, %s10, 3
        %s178 = smul.addr %s177, 8
        %s179 = scalar_lea.vmem %s2, %s178
      $region28: #{resnet_generator_forward.28} parent=15 // pred_fallthru
        _
      // Predicated region
      $region29: #{resnet_generator_forward.28} parent=15 // pred_check
        %p180 = pneg %p108
      $region30: #{resnet_generator_forward.28} parent=15 // pred_check_branch
        %182 = sbr.rel (%p180) target = $region32
      $region31: #{resnet_generator_forward.28} parent=15 // pred_region
        %p183 = scmp.lt.s32.totalorder %s10, 3
        %s184 = scalar_select %p183, %s10, 3
        %s185 = smul.addr %s184, 8
        %s186 = scalar_lea.vmem %s3, %s185
      $region32: #{resnet_generator_forward.28} parent=15 // pred_fallthru
        _
    $region16: #{resnet_generator_forward.28} parent=5 // pred_fallthru
      _
    %p187 = scmp.le.s32.totalorder 1, %s10
    %p188 = scmp.lt.s32.totalorder %s10, 5
    %p189 = pnand %p187, %p188
    %p190 = pneg %p189
    // Predicated region
    $region33: #{resnet_generator_forward.28} parent=5 // pred_check
      _
    $region34: #{resnet_generator_forward.28} parent=5 // pred_check_branch
      %192 = sbr.rel (%p189) target = $region36
    $region35: #{resnet_generator_forward.28} parent=5 // pred_region
      %s193 = ssub.s32 %s10, 1
      %p194 = scmp.lt.s32.totalorder %s15, 3
      %s195 = scalar_select %p194, %s15, 3
      %s196 = smul.addr %s195, 8
      %s197 = scalar_lea.vmem %s0, %s196
      %p198 = pneg %p36
      %p199 = pneg %p33
      %p200 = scmp.lt.s32.totalorder %s15, 3
      %s201 = scalar_select %p200, %s15, 3
      %s202 = smul.addr %s201, 8
      %s203 = scalar_lea.vmem %s1, %s202
      %p204 = pneg %p62
      %p205 = pneg %p59
      %p206 = scmp.lt.s32.totalorder %s15, 3
      %s207 = scalar_select %p206, %s15, 3
      %s208 = smul.addr %s207, 8
      %s209 = scalar_lea.vmem %s2, %s208
      %p210 = pneg %p88
      %p211 = pneg %p85
      %p212 = scmp.lt.s32.totalorder %s15, 3
      %s213 = scalar_select %p212, %s15, 3
      %s214 = smul.addr %s213, 8
      %s215 = scalar_lea.vmem %s3, %s214
      %p216 = pneg %p114
      %p217 = pneg %p111
      %p218 = pneg %p140
      %p219 = pneg %p137
      %p220 = scmp.lt.s32.totalorder %s15, 3
      %s221 = scalar_select %p220, %s15, 3
      %s222 = smul.addr %s221, 8
      %s223 = scalar_lea.vmem %s4, %s222
      %p224 = scmp.lt.s32.totalorder %s15, 3
      %s225 = scalar_select %p224, %s15, 3
      %s226 = smul.addr %s225, 8
      %s227 = scalar_lea.vmem %s0, %s226
      %p228 = scmp.lt.s32.totalorder %s15, 3
      %s229 = scalar_select %p228, %s15, 3
      %s230 = smul.addr %s229, 8
      %s231 = scalar_lea.vmem %s1, %s230
      %p232 = scmp.lt.s32.totalorder %s15, 3
      %s233 = scalar_select %p232, %s15, 3
      %s234 = smul.addr %s233, 8
      %s235 = scalar_lea.vmem %s2, %s234
      %p236 = scmp.lt.s32.totalorder %s15, 3
      %s237 = scalar_select %p236, %s15, 3
      %s238 = smul.addr %s237, 8
      %s239 = scalar_lea.vmem %s3, %s238
      %p240 = scmp.lt.s32.totalorder %s15, 3
      %s241 = scalar_select %p240, %s15, 3
      %s242 = smul.addr %s241, 8
      %s243 = scalar_lea.vmem %s4, %s242
      %v244 = vld [vmem:[%s227] sm:$0xff]
      %245 = vadd.xlane.f32.xlu0 %v244
      %v246 = vpop.xlane.xlu0 %245
      %v247 = vmul.f32 %v246, 0.0078125
      %v248 = vsub.f32 %v244, %v247
      %v249 = vmul.f32 %v248, %v248
      %250 = vadd.xlane.f32.xlu0 %v249
      %v251 = vpop.xlane.xlu0 %250
      %v252 = vmul.f32 %v251, 0.0078125
      %v253 = vld [vmem:[%s231] sm:$0xff]
      %v254 = vadd.f32 %v252, 1e-05
      %v255 = vrsqrt.pop %v254
      %v256 = vmul.f32 %v253, %v255
      %v257 = vld [vmem:[%s235] sm:$0xff]
      %v258 = vmul.f32 %v247, %v256
      %v259 = vsub.f32 %v257, %v258
      %261 = vset.pattern.permute.xlu0 0
      %262 = vperm.xlu0 %261, %v256
      %v263 = vpop.permute.xlu0 %262
      %v265 = vmul.f32 %v244, %v263
      %267 = vset.pattern.permute.xlu0 0
      %268 = vperm.xlu0 %267, %v259
      %v269 = vpop.permute.xlu0 %268
      %v271 = vadd.f32 %v265, %v269
      %v272 = vld [vmem:[%s239] sm:$0xff]
      %v273 = vadd.f32 %v271, %v272
      %274 = vst [vmem:[%s243] sm:$0xff] %v273
      %p275 = scmp.lt.s32.totalorder %s15, 3
      %s276 = scalar_select %p275, %s15, 3
      %s277 = smul.addr %s276, 8
      %s278 = scalar_lea.vmem %s4, %s277
      // Predicated region
      $region37: #{resnet_generator_forward.28} parent=35 // pred_check
        %p279 = pneg %p137
      $region38: #{resnet_generator_forward.28} parent=35 // pred_check_branch
        %281 = sbr.rel (%p279) target = $region40
      $region39: #{resnet_generator_forward.28} parent=35 // pred_region
        _
      $region40: #{resnet_generator_forward.28} parent=35 // pred_fallthru
        _
    $region36: #{resnet_generator_forward.28} parent=5 // pred_fallthru
      _
    %p282 = scmp.le.s32.totalorder 2, %s10
    // Predicated region
    $region41: #{resnet_generator_forward.28} parent=5 // pred_check
      %p283 = pneg %p282
    $region42: #{resnet_generator_forward.28} parent=5 // pred_check_branch
      %285 = sbr.rel (%p283) target = $region44
    $region43: #{resnet_generator_forward.28} parent=5 // pred_region
      %s286 = ssub.s32 %s10, 2
      // Predicated region
      $region45: #{resnet_generator_forward.28} parent=43 // pred_check
        %p287 = pneg %p143
      $region46: #{resnet_generator_forward.28} parent=43 // pred_check_branch
        %289 = sbr.rel (%p287) target = $region48
      $region47: #{resnet_generator_forward.28} parent=43 // pred_region
        %p290 = scmp.lt.s32.totalorder %s16, 3
        %s291 = scalar_select %p290, %s16, 3
        %s292 = smul.addr %s291, 8
        %s293 = scalar_lea.vmem %s4, %s292
      $region48: #{resnet_generator_forward.28} parent=43 // pred_fallthru
        _
    $region44: #{resnet_generator_forward.28} parent=5 // pred_fallthru
      _
  $region6: #{resnet_generator_forward.28} parent=0 // loop_footer
    %s14 = sadd.s32 1, %s10
  $region7: #{resnet_generator_forward.28} parent=0 // loop_footer_branch
    %9 = sbr.rel target = $region3
  $region8: #{resnet_generator_forward.28} parent=0 // loop_exit
    _

// kernel: resnet_generator_forward.33
$region0: #{resnet_generator_forward.33}
  #allocation0 [shape = 'u32[]', space=smem, size = 0x4, offset = 0x4, fixed_abs, tag = 'smem constant byte address 0x4 - core index']
  #allocation1 [shape = 'u32[144,128]{1,0:T(1,128)}', space=vmem, size = 0x12000, scoped, tag = 'internal scratch']
  %s0 = inlined_call_operand.vmem [shape: f32[128,128], index: 0, kind: input, shape index: {}]
  %s1 = inlined_call_operand.vmem [shape: f32[64,128], index: 1, kind: input, shape index: {}]
  %s2 = inlined_call_operand.vmem [shape: f32[64,1], index: 2, kind: input, shape index: {}]
  %s3 = inlined_call_operand.vmem [shape: f32[64,128], index: 3, kind: output, shape index: {}]
  %s4 = sld [smem:[#allocation0]]
  $region22: #{resnet_generator_forward.33} parent=0
    _
  %s6 = ssub.s32 1, %s4
  %s7 = scalar_select 0, %s6, %s4
  // Predicated region
  $region2: #{resnet_generator_forward.33} parent=0 // pred_check
    _
  $region3: #{resnet_generator_forward.33} parent=0 // pred_check_branch
    %9 = sbr.rel (0) target = $region5
  $region4: #{resnet_generator_forward.33} parent=0 // pred_region
    _
  $region5: #{resnet_generator_forward.33} parent=0 // pred_fallthru
    _
  // Predicated region
  $region6: #{resnet_generator_forward.33} parent=0 // pred_check
    _
  $region7: #{resnet_generator_forward.33} parent=0 // pred_check_branch
    %11 = sbr.rel (0) target = $region9
  $region8: #{resnet_generator_forward.33} parent=0 // pred_region
    _
  $region9: #{resnet_generator_forward.33} parent=0 // pred_fallthru
    _
  // Predicated region
  $region10: #{resnet_generator_forward.33} parent=0 // pred_check
    _
  $region11: #{resnet_generator_forward.33} parent=0 // pred_check_branch
    %13 = sbr.rel (0) target = $region13
  $region12: #{resnet_generator_forward.33} parent=0 // pred_region
    _
  $region13: #{resnet_generator_forward.33} parent=0 // pred_fallthru
    _
  %v14 = vld [vmem:[%s1] sm:$0xff]
  %v15 = vld [vmem:[%s1 + $0x8] sm:$0xff]
  %v16 = vld [vmem:[%s1 + $0x10] sm:$0xff]
  %v17 = vld [vmem:[%s1 + $0x18] sm:$0xff]
  %v18 = vld [vmem:[%s1 + $0x20] sm:$0xff]
  %v19 = vld [vmem:[%s1 + $0x28] sm:$0xff]
  %v20 = vld [vmem:[%s1 + $0x30] sm:$0xff]
  %v21 = vld [vmem:[%s1 + $0x38] sm:$0xff]
  %v22 = vld [vmem:[%s0] sm:$0xff]
  %v23 = vld [vmem:[%s0 + $0x8] sm:$0xff]
  %v24 = vld [vmem:[%s0 + $0x10] sm:$0xff]
  %v25 = vld [vmem:[%s0 + $0x18] sm:$0xff]
  %v26 = vld [vmem:[%s0 + $0x20] sm:$0xff]
  %v27 = vld [vmem:[%s0 + $0x28] sm:$0xff]
  %v28 = vld [vmem:[%s0 + $0x30] sm:$0xff]
  %v29 = vld [vmem:[%s0 + $0x38] sm:$0xff]
  %v30 = vld [vmem:[%s0 + $0x40] sm:$0xff]
  %v31 = vld [vmem:[%s0 + $0x48] sm:$0xff]
  %v32 = vld [vmem:[%s0 + $0x50] sm:$0xff]
  %v33 = vld [vmem:[%s0 + $0x58] sm:$0xff]
  %v34 = vld [vmem:[%s0 + $0x60] sm:$0xff]
  %v35 = vld [vmem:[%s0 + $0x68] sm:$0xff]
  %v36 = vld [vmem:[%s0 + $0x70] sm:$0xff]
  %v37 = vld [vmem:[%s0 + $0x78] sm:$0xff]
  %v38 = vld [vmem:[%s2] sm:$0xff]
  %v39 = vld [vmem:[%s2 + $0x8] sm:$0xff]
  %v40 = vld [vmem:[%s2 + $0x10] sm:$0xff]
  %v41 = vld [vmem:[%s2 + $0x18] sm:$0xff]
  %v42 = vld [vmem:[%s2 + $0x20] sm:$0xff]
  %v43 = vld [vmem:[%s2 + $0x28] sm:$0xff]
  %v44 = vld [vmem:[%s2 + $0x30] sm:$0xff]
  %v45 = vld [vmem:[%s2 + $0x38] sm:$0xff]
  %47 = vset.pattern.permute.xlu0 0
  %48 = vperm.xlu0 %47, %v38
  %v49 = vpop.permute.xlu0 %48
  %52 = vset.pattern.permute.xlu0 0
  %53 = vperm.xlu0 %52, %v39
  %v54 = vpop.permute.xlu0 %53
  %57 = vset.pattern.permute.xlu0 0
  %58 = vperm.xlu0 %57, %v40
  %v59 = vpop.permute.xlu0 %58
  %62 = vset.pattern.permute.xlu0 0
  %63 = vperm.xlu0 %62, %v41
  %v64 = vpop.permute.xlu0 %63
  %67 = vset.pattern.permute.xlu0 0
  %68 = vperm.xlu0 %67, %v42
  %v69 = vpop.permute.xlu0 %68
  %72 = vset.pattern.permute.xlu0 0
  %73 = vperm.xlu0 %72, %v43
  %v74 = vpop.permute.xlu0 %73
  %77 = vset.pattern.permute.xlu0 0
  %78 = vperm.xlu0 %77, %v44
  %v79 = vpop.permute.xlu0 %78
  %82 = vset.pattern.permute.xlu0 0
  %83 = vperm.xlu0 %82, %v45
  %v84 = vpop.permute.xlu0 %83
  %86 = vmatprep.subr.mxu0 0.0
  %87 = vmatpush1.msra.mxu0 %v22
  %88 = vmatprep.subr.mxu0 0.0
  %89 = vmatpush1.msra.mxu0 %v23
  %90 = vmatprep.subr.mxu0 0.0
  %91 = vmatpush1.msra.mxu0 %v24
  %92 = vmatprep.subr.mxu0 0.0
  %93 = vmatpush1.msra.mxu0 %v25
  %94 = vmatprep.subr.mxu0 0.0
  %95 = vmatpush1.msra.mxu0 %v26
  %96 = vmatprep.subr.mxu0 0.0
  %97 = vmatpush1.msra.mxu0 %v27
  %98 = vmatprep.subr.mxu0 0.0
  %99 = vmatpush1.msra.mxu0 %v28
  %100 = vmatprep.subr.mxu0 0.0
  %101 = vmatpush1.msra.mxu0 %v29
  %102 = vmatprep.subr.mxu0 0.0
  %103 = vmatpush1.msra.mxu0 %v30
  %104 = vmatprep.subr.mxu0 0.0
  %105 = vmatpush1.msra.mxu0 %v31
  %106 = vmatprep.subr.mxu0 0.0
  %107 = vmatpush1.msra.mxu0 %v32
  %108 = vmatprep.subr.mxu0 0.0
  %109 = vmatpush1.msra.mxu0 %v33
  %110 = vmatprep.subr.mxu0 0.0
  %111 = vmatpush1.msra.mxu0 %v34
  %112 = vmatprep.subr.mxu0 0.0
  %113 = vmatpush1.msra.mxu0 %v35
  %114 = vmatprep.subr.mxu0 0.0
  %115 = vmatpush1.msra.mxu0 %v36
  %116 = vmatprep.subr.mxu0 0.0
  %117 = vmatpush1.msra.mxu0 %v37
  %118 = vmatprep.subr.mxu0 0.0
  %119 = vmatpush1.msra.mxu0 0.0
  %120 = vmatprep.subr.mxu0 0.0
  %121 = vmatpush1.msra.mxu0 0.0
  %122 = vmatprep.subr.mxu0 0.0
  %123 = vmatpush1.msra.mxu0 0.0
  %124 = vmatprep.subr.mxu0 0.0
  %125 = vmatpush1.msra.mxu0 0.0
  %126 = vmatprep.subr.mxu0 0.0
  %127 = vmatpush1.msra.mxu0 0.0
  %128 = vmatprep.subr.mxu0 0.0
  %129 = vmatpush1.msra.mxu0 0.0
  %130 = vmatprep.subr.mxu0 0.0
  %131 = vmatpush1.msra.mxu0 0.0
  %132 = vmatprep.subr.mxu0 0.0
  %133 = vmatpush1.msra.mxu0 0.0
  %134 = vmatprep.subr.mxu0 0.0
  %135 = vmatpush1.msra.mxu0 0.0
  %136 = vmatprep.subr.mxu0 0.0
  %137 = vmatpush1.msra.mxu0 0.0
  %138 = vmatprep.subr.mxu0 0.0
  %139 = vmatpush1.msra.mxu0 0.0
  %140 = vmatprep.subr.mxu0 0.0
  %141 = vmatpush1.msra.mxu0 0.0
  %142 = vmatprep.subr.mxu0 0.0
  %143 = vmatpush1.msra.mxu0 0.0
  %144 = vmatprep.subr.mxu0 0.0
  %145 = vmatpush1.msra.mxu0 0.0
  %146 = vmatprep.subr.mxu0 0.0
  %147 = vmatpush1.msra.mxu0 0.0
  %148 = vmatprep.subr.mxu0 0.0
  %149 = vmatpush1.msra.mxu0 0.0
  %150 = vmatprep.mubr.f32.mxu0 0.0
  %151 = vmatmul.mubr.f32.gmra.mrb[0].mxu0 %v14
  %v152 = vpop.f32.mrb[0].mxu0
  %v153 = vadd.f32 %v49, %v152
  %v154 = vpop.f32.mrb[0].mxu0
  %155 = vmatprep.mubr.f32.mxu0 0.0
  %156 = vmatmul.mubr.f32.gmra.mrb[0].mxu0 %v15
  %v157 = vpop.f32.mrb[0].mxu0
  %v158 = vadd.f32 %v54, %v157
  %v159 = vpop.f32.mrb[0].mxu0
  %160 = vmatprep.mubr.f32.mxu0 0.0
  %161 = vmatmul.mubr.f32.gmra.mrb[0].mxu0 %v16
  %v162 = vpop.f32.mrb[0].mxu0
  %v163 = vadd.f32 %v59, %v162
  %v164 = vpop.f32.mrb[0].mxu0
  %165 = vmatprep.mubr.f32.mxu0 0.0
  %166 = vmatmul.mubr.f32.gmra.mrb[0].mxu0 %v17
  %v167 = vpop.f32.mrb[0].mxu0
  %v168 = vadd.f32 %v64, %v167
  %v169 = vpop.f32.mrb[0].mxu0
  %170 = vmatprep.mubr.f32.mxu0 0.0
  %171 = vmatmul.mubr.f32.gmra.mrb[0].mxu0 %v18
  %v172 = vpop.f32.mrb[0].mxu0
  %v173 = vadd.f32 %v69, %v172
  %v174 = vpop.f32.mrb[0].mxu0
  %175 = vmatprep.mubr.f32.mxu0 0.0
  %176 = vmatmul.mubr.f32.gmra.mrb[0].mxu0 %v19
  %v177 = vpop.f32.mrb[0].mxu0
  %v178 = vadd.f32 %v74, %v177
  %v179 = vpop.f32.mrb[0].mxu0
  %180 = vmatprep.mubr.f32.mxu0 0.0
  %181 = vmatmul.mubr.f32.gmra.mrb[0].mxu0 %v20
  %v182 = vpop.f32.mrb[0].mxu0
  %v183 = vadd.f32 %v79, %v182
  %v184 = vpop.f32.mrb[0].mxu0
  %185 = vmatprep.mubr.f32.mxu0 0.0
  %186 = vmatmul.mubr.f32.gmra.mrb[0].mxu0 %v21
  %v187 = vpop.f32.mrb[0].mxu0
  %v188 = vadd.f32 %v84, %v187
  %v189 = vpop.f32.mrb[0].mxu0
  %190 = vdwg.mxu0
  %191 = vst [vmem:[%s3] sm:$0xff] %v153
  %192 = vst [vmem:[%s3 + $0x8] sm:$0xff] %v158
  %193 = vst [vmem:[%s3 + $0x10] sm:$0xff] %v163
  %194 = vst [vmem:[%s3 + $0x18] sm:$0xff] %v168
  %195 = vst [vmem:[%s3 + $0x20] sm:$0xff] %v173
  %196 = vst [vmem:[%s3 + $0x28] sm:$0xff] %v178
  %197 = vst [vmem:[%s3 + $0x30] sm:$0xff] %v183
  %198 = vst [vmem:[%s3 + $0x38] sm:$0xff] %v188
  // Predicated region
  $region14: #{resnet_generator_forward.33} parent=0 // pred_check
    _
  $region15: #{resnet_generator_forward.33} parent=0 // pred_check_branch
    %200 = sbr.rel (0) target = $region17
  $region16: #{resnet_generator_forward.33} parent=0 // pred_region
    _
  $region17: #{resnet_generator_forward.33} parent=0 // pred_fallthru
    _
  // Predicated region
  $region18: #{resnet_generator_forward.33} parent=0 // pred_check
    _
  $region19: #{resnet_generator_forward.33} parent=0 // pred_check_branch
    %202 = sbr.rel (0) target = $region21
  $region20: #{resnet_generator_forward.33} parent=0 // pred_region
    _
  $region21: #{resnet_generator_forward.33} parent=0 // pred_fallthru
    _

// kernel: resnet_generator_forward.35
$region0: #{resnet_generator_forward.35}
  #allocation0 [shape = 'u32[]', space=smem, size = 0x4, offset = 0x4, fixed_abs, tag = 'smem constant byte address 0x4 - core index']
  #allocation1 [shape = 'u32[144,128]{1,0:T(1,128)}', space=vmem, size = 0x12000, scoped, tag = 'internal scratch']
  %s0 = inlined_call_operand.vmem [shape: f32[64,512], index: 0, kind: input, shape index: {}]
  %s1 = inlined_call_operand.vmem [shape: f32[32,64], index: 1, kind: input, shape index: {}]
  %s2 = inlined_call_operand.vmem [shape: f32[32,1], index: 2, kind: input, shape index: {}]
  %s3 = inlined_call_operand.vmem [shape: f32[32,512], index: 3, kind: output, shape index: {}]
  %s4 = sld [smem:[#allocation0]]
  $region87: #{resnet_generator_forward.35} parent=0
    _
  %s6 = ssub.s32 1, %s4
  %s7 = scalar_select 0, %s6, %s4
  $region1: #{resnet_generator_forward.35} parent=0
    #allocation2 [shape = 'u8[131072]{0}', space=vmem, size = 0x20000, scoped, tag = 'input window, operand 0']
    #allocation3 [shape = 'u8[65536]{0}', space=vmem, size = 0x10000, scoped, tag = 'output window, operand 0']
    loop: start=0, step=1, limit=4
    $region2: #{resnet_generator_forward.35} parent=1 // loop_pre_header
      _
    $region3: #{resnet_generator_forward.35} parent=1 // loop_header
      %s9 = sphi 0, %s13
      %p10 = scmp.ge.s32.totalorder %s9, 4
      %s19 = sphi 0, %s21
      %s22 = sphi 0, %s19
      %s23 = sphi 0, %s22
      %s39 = sphi 0, %s23
      %s43 = sphi 0, %s43
      %s45 = sphi 0, %s43
      %s46 = sphi 0, %s45
      %s60 = sphi 0, %s46
      %s64 = sphi 0, %s64
      %s66 = sphi 0, %s64
      %s67 = sphi 0, %s66
      %s81 = sphi 0, %s67
      %s87 = sphi 0, %s89
      %s90 = sphi 0, %s87
      %s91 = sphi 0, %s90
      %s107 = sphi 0, %s91
    $region4: #{resnet_generator_forward.35} parent=1 // loop_header_branch
      %12 = sbr.rel (%p10) target = $region8
    $region5: #{resnet_generator_forward.35} parent=1 // loop_body
      %s14 = ssub.s32 %s9, 1
      %s15 = ssub.s32 %s9, 2
      %s16 = sadd.s32 %s9, 1
      %s17 = ssub.s32 %s9, %s16
      %p18 = scmp.eq.s32.totalorder %s17, 0
      %s20 = sadd.s32 %s19, 1
      %s21 = scalar_select %p18, %s19, %s20
      %p24 = pneg %p18
      %p25 = scmp.eq.s32.totalorder %s9, 1
      %p26 = por %p24, %p25
      %p27 = scmp.ne.s32.totalorder %s19, %s22
      %p28 = scmp.eq.s32.totalorder %s9, 0
      %p29 = por %p27, %p28
      %p30 = scmp.ne.s32.totalorder %s19, %s22
      %p31 = scmp.eq.s32.totalorder %s14, 1
      %p32 = por %p30, %p31
      %p33 = scmp.ne.s32.totalorder %s22, %s23
      %p34 = scmp.eq.s32.totalorder %s14, 0
      %p35 = por %p33, %p34
      %p36 = scmp.ne.s32.totalorder %s22, %s23
      %p37 = scmp.eq.s32.totalorder %s15, 1
      %p38 = por %p36, %p37
      %p40 = scmp.ne.s32.totalorder %s23, %s39
      %p41 = scmp.eq.s32.totalorder %s15, 0
      %p42 = por %p40, %p41
      %s44 = sadd.s32 %s43, 1
      %p47 = scmp.eq.s32.totalorder %s9, 1
      %p48 = scmp.ne.s32.totalorder %s43, %s45
      %p49 = scmp.eq.s32.totalorder %s9, 0
      %p50 = por %p48, %p49
      %p51 = scmp.ne.s32.totalorder %s43, %s45
      %p52 = scmp.eq.s32.totalorder %s14, 1
      %p53 = por %p51, %p52
      %p54 = scmp.ne.s32.totalorder %s45, %s46
      %p55 = scmp.eq.s32.totalorder %s14, 0
      %p56 = por %p54, %p55
      %p57 = scmp.ne.s32.totalorder %s45, %s46
      %p58 = scmp.eq.s32.totalorder %s15, 1
      %p59 = por %p57, %p58
      %p61 = scmp.ne.s32.totalorder %s46, %s60
      %p62 = scmp.eq.s32.totalorder %s15, 0
      %p63 = por %p61, %p62
      %s65 = sadd.s32 %s64, 1
      %p68 = scmp.eq.s32.totalorder %s9, 1
      %p69 = scmp.ne.s32.totalorder %s64, %s66
      %p70 = scmp.eq.s32.totalorder %s9, 0
      %p71 = por %p69, %p70
      %p72 = scmp.ne.s32.totalorder %s64, %s66
      %p73 = scmp.eq.s32.totalorder %s14, 1
      %p74 = por %p72, %p73
      %p75 = scmp.ne.s32.totalorder %s66, %s67
      %p76 = scmp.eq.s32.totalorder %s14, 0
      %p77 = por %p75, %p76
      %p78 = scmp.ne.s32.totalorder %s66, %s67
      %p79 = scmp.eq.s32.totalorder %s15, 1
      %p80 = por %p78, %p79
      %p82 = scmp.ne.s32.totalorder %s67, %s81
      %p83 = scmp.eq.s32.totalorder %s15, 0
      %p84 = por %p82, %p83
      %s85 = ssub.s32 %s9, %s16
      %p86 = scmp.eq.s32.totalorder %s85, 0
      %s88 = sadd.s32 %s87, 1
      %s89 = scalar_select %p86, %s87, %s88
      %p92 = pneg %p86
      %p93 = scmp.eq.s32.totalorder %s9, 1
      %p94 = por %p92, %p93
      %p95 = scmp.ne.s32.totalorder %s87, %s90
      %p96 = scmp.eq.s32.totalorder %s9, 0
      %p97 = por %p95, %p96
      %p98 = scmp.ne.s32.totalorder %s87, %s90
      %p99 = scmp.eq.s32.totalorder %s14, 1
      %p100 = por %p98, %p99
      %p101 = scmp.ne.s32.totalorder %s90, %s91
      %p102 = scmp.eq.s32.totalorder %s14, 0
      %p103 = por %p101, %p102
      %p104 = scmp.ne.s32.totalorder %s90, %s91
      %p105 = scmp.eq.s32.totalorder %s15, 1
      %p106 = por %p104, %p105
      %p108 = scmp.ne.s32.totalorder %s91, %s107
      %p109 = scmp.eq.s32.totalorder %s15, 0
      %p110 = por %p108, %p109
      %p111 = scmp.le.s32.totalorder 1, %s9
      %p112 = scmp.lt.s32.totalorder %s9, 3
      %p113 = pnand %p111, %p112
      %p114 = pneg %p113
      // Predicated region
      $region9: #{resnet_generator_forward.35} parent=5 // pred_check
        _
      $region10: #{resnet_generator_forward.35} parent=5 // pred_check_branch
        %116 = sbr.rel (%p113) target = $region12
      $region11: #{resnet_generator_forward.35} parent=5 // pred_region
        %s117 = ssub.s32 %s9, 1
        // Predicated region
        $region13: #{resnet_generator_forward.35} parent=11 // pred_check
          %p118 = pneg %p56
        $region14: #{resnet_generator_forward.35} parent=11 // pred_check_branch
          %120 = sbr.rel (%p118) target = $region16
        $region15: #{resnet_generator_forward.35} parent=11 // pred_region
          _
        $region16: #{resnet_generator_forward.35} parent=11 // pred_fallthru
          _
        // Predicated region
        $region17: #{resnet_generator_forward.35} parent=11 // pred_check
          %p121 = pneg %p77
        $region18: #{resnet_generator_forward.35} parent=11 // pred_check_branch
          %123 = sbr.rel (%p121) target = $region20
        $region19: #{resnet_generator_forward.35} parent=11 // pred_region
          _
        $region20: #{resnet_generator_forward.35} parent=11 // pred_fallthru
          _
      $region12: #{resnet_generator_forward.35} parent=5 // pred_fallthru
        _
      %p124 = scmp.lt.s32.totalorder %s9, 2
      // Predicated region
      $region21: #{resnet_generator_forward.35} parent=5 // pred_check
        %p125 = pneg %p124
      $region22: #{resnet_generator_forward.35} parent=5 // pred_check_branch
        %127 = sbr.rel (%p125) target = $region24
      $region23: #{resnet_generator_forward.35} parent=5 // pred_region
        // Predicated region
        $region25: #{resnet_generator_forward.35} parent=23 // pred_check
          %p128 = pneg %p29
        $region26: #{resnet_generator_forward.35} parent=23 // pred_check_branch
          %130 = sbr.rel (%p128) target = $region28
        $region27: #{resnet_generator_forward.35} parent=23 // pred_region
          %s131 = sand.u32 %s19, 1
          %s132 = sand.u32 %s19, 1
          %s133 = smul.addr %s132, 128
          %s134 = scalar_lea.vmem [#allocation2], %s133
          %s135 = smul.u32 2, %s9
          %s136 = smul.addr %s135, 8
          %s137 = scalar_lea.vmem %s0, %s136
          // Predicated region
          $region29: #{resnet_generator_forward.35} parent=27 // pred_check
            _
          $region30: #{resnet_generator_forward.35} parent=27 // pred_check_branch
            %139 = sbr.rel (0) target = $region32
          $region31: #{resnet_generator_forward.35} parent=27 // pred_region
            // Predicated region
            $region33: #{resnet_generator_forward.35} parent=31 // pred_check
              _
            $region34: #{resnet_generator_forward.35} parent=31 // pred_check_branch
              %141 = sbr.rel (0) target = $region36
            $region35: #{resnet_generator_forward.35} parent=31 // pred_region
              loop: start=0, step=1, limit=1
              $region37: #{resnet_generator_forward.35} parent=35 // loop_pre_header
                _
              $region38: #{resnet_generator_forward.35} parent=35 // loop_header
                %s143 = sphi 0, %s147
                %p144 = scmp.ge.s32.totalorder %s143, 1
                %s148 = sphi %s137, %s137
                %s149 = sphi %s134, %s134
              $region39: #{resnet_generator_forward.35} parent=35 // loop_header_branch
                %146 = sbr.rel (%p144) target = $region43
              $region40: #{resnet_generator_forward.35} parent=35 // loop_body
                %v150 = vld [vmem:[%s148] sm:$0xff]
                %151 = vst [vmem:[%s149] sm:$0xff] %v150
                %v152 = vld [vmem:[%s148 + $0x8] sm:$0xff]
                %153 = vst [vmem:[%s149 + $0x8] sm:$0xff] %v152
                %v154 = vld [vmem:[%s148 + $0x20] sm:$0xff]
                %155 = vst [vmem:[%s149 + $0x10] sm:$0xff] %v154
                %v156 = vld [vmem:[%s148 + $0x28] sm:$0xff]
                %157 = vst [vmem:[%s149 + $0x18] sm:$0xff] %v156
                %v158 = vld [vmem:[%s148 + $0x40] sm:$0xff]
                %159 = vst [vmem:[%s149 + $0x20] sm:$0xff] %v158
                %v160 = vld [vmem:[%s148 + $0x48] sm:$0xff]
                %161 = vst [vmem:[%s149 + $0x28] sm:$0xff] %v160
                %v162 = vld [vmem:[%s148 + $0x60] sm:$0xff]
                %163 = vst [vmem:[%s149 + $0x30] sm:$0xff] %v162
                %v164 = vld [vmem:[%s148 + $0x68] sm:$0xff]
                %165 = vst [vmem:[%s149 + $0x38] sm:$0xff] %v164
                %v166 = vld [vmem:[%s148 + $0x80] sm:$0xff]
                %167 = vst [vmem:[%s149 + $0x40] sm:$0xff] %v166
                %v168 = vld [vmem:[%s148 + $0x88] sm:$0xff]
                %169 = vst [vmem:[%s149 + $0x48] sm:$0xff] %v168
                %v170 = vld [vmem:[%s148 + $0xa0] sm:$0xff]
                %171 = vst [vmem:[%s149 + $0x50] sm:$0xff] %v170
                %v172 = vld [vmem:[%s148 + $0xa8] sm:$0xff]
                %173 = vst [vmem:[%s149 + $0x58] sm:$0xff] %v172
                %v174 = vld [vmem:[%s148 + $0xc0] sm:$0xff]
                %175 = vst [vmem:[%s149 + $0x60] sm:$0xff] %v174
                %v176 = vld [vmem:[%s148 + $0xc8] sm:$0xff]
                %177 = vst [vmem:[%s149 + $0x68] sm:$0xff] %v176
                %v178 = vld [vmem:[%s148 + $0xe0] sm:$0xff]
                %179 = vst [vmem:[%s149 + $0x70] sm:$0xff] %v178
                %v180 = vld [vmem:[%s148 + $0xe8] sm:$0xff]
                %181 = vst [vmem:[%s149 + $0x78] sm:$0xff] %v180
              $region41: #{resnet_generator_forward.35} parent=35 // loop_footer
                %s147 = sadd.s32 1, %s143
              $region42: #{resnet_generator_forward.35} parent=35 // loop_footer_branch
                %142 = sbr.rel target = $region38
              $region43: #{resnet_generator_forward.35} parent=35 // loop_exit
                _
            $region36: #{resnet_generator_forward.35} parent=31 // pred_fallthru
              _
            // Predicated region
            $region44: #{resnet_generator_forward.35} parent=31 // pred_check
              _
            $region45: #{resnet_generator_forward.35} parent=31 // pred_check_branch
              %183 = sbr.rel target = $region47
            $region46: #{resnet_generator_forward.35} parent=31 // pred_region
              _
            $region47: #{resnet_generator_forward.35} parent=31 // pred_fallthru
              _
          $region32: #{resnet_generator_forward.35} parent=27 // pred_fallthru
            _
          %184 = vnop
        $region28: #{resnet_generator_forward.35} parent=23 // pred_fallthru
          _
      $region24: #{resnet_generator_forward.35} parent=5 // pred_fallthru
        _
      %p185 = scmp.le.s32.totalorder 1, %s9
      %p186 = scmp.lt.s32.totalorder %s9, 3
      %p187 = pnand %p185, %p186
      %p188 = pneg %p187
      // Predicated region
      $region48: #{resnet_generator_forward.35} parent=5 // pred_check
        _
      $region49: #{resnet_generator_forward.35} parent=5 // pred_check_branch
        %190 = sbr.rel (%p187) target = $region51
      $region50: #{resnet_generator_forward.35} parent=5 // pred_region
        %s191 = ssub.s32 %s9, 1
        %s192 = sand.u32 %s22, 1
        %s193 = sand.u32 %s22, 1
        %s194 = smul.addr %s193, 128
        %s195 = scalar_lea.vmem [#allocation2], %s194
        // Predicated region
        $region52: #{resnet_generator_forward.35} parent=50 // pred_check
          %p196 = pneg %p35
        $region53: #{resnet_generator_forward.35} parent=50 // pred_check_branch
          %198 = sbr.rel (%p196) target = $region55
        $region54: #{resnet_generator_forward.35} parent=50 // pred_region
          _
        $region55: #{resnet_generator_forward.35} parent=50 // pred_fallthru
          _
        %s199 = sand.u32 %s22, 1
        %s200 = sand.u32 %s22, 1
        %s201 = smul.addr %s200, 128
        %s202 = scalar_lea.vmem [#allocation2], %s201
        %p203 = pneg %p35
        %p204 = pneg %p32
        %p205 = pneg %p56
        %p206 = pneg %p53
        %p207 = pneg %p77
        %p208 = pneg %p74
        %p209 = pneg %p103
        %p210 = pneg %p100
        %s211 = sand.u32 %s90, 1
        %s212 = sand.u32 %s90, 1
        %s213 = smul.addr %s212, 64
        %s214 = scalar_lea.vmem [#allocation3], %s213
        %s215 = smul.u32 2, %s14
        %s216 = smul.u32 2, %s14
        %v217 = vld [vmem:[%s1] sm:$0xff]
        %v218 = vld [vmem:[%s1 + $0x8] sm:$0xff]
        %v219 = vld [vmem:[%s1 + $0x10] sm:$0xff]
        %v220 = vld [vmem:[%s1 + $0x18] sm:$0xff]
        %v221 = vld [vmem:[%s195] sm:$0xff]
        %v222 = vld [vmem:[%s195 + $0x8] sm:$0xff]
        %v223 = vld [vmem:[%s195 + $0x10] sm:$0xff]
        %v224 = vld [vmem:[%s195 + $0x18] sm:$0xff]
        %v225 = vld [vmem:[%s195 + $0x20] sm:$0xff]
        %v226 = vld [vmem:[%s195 + $0x28] sm:$0xff]
        %v227 = vld [vmem:[%s195 + $0x30] sm:$0xff]
        %v228 = vld [vmem:[%s195 + $0x38] sm:$0xff]
        %v229 = vld [vmem:[%s195 + $0x40] sm:$0xff]
        %v230 = vld [vmem:[%s195 + $0x48] sm:$0xff]
        %v231 = vld [vmem:[%s195 + $0x50] sm:$0xff]
        %v232 = vld [vmem:[%s195 + $0x58] sm:$0xff]
        %v233 = vld [vmem:[%s195 + $0x60] sm:$0xff]
        %v234 = vld [vmem:[%s195 + $0x68] sm:$0xff]
        %v235 = vld [vmem:[%s195 + $0x70] sm:$0xff]
        %v236 = vld [vmem:[%s195 + $0x78] sm:$0xff]
        %v237 = vld [vmem:[%s2] sm:$0xff]
        %v238 = vld [vmem:[%s2 + $0x8] sm:$0xff]
        %v239 = vld [vmem:[%s2 + $0x10] sm:$0xff]
        %v240 = vld [vmem:[%s2 + $0x18] sm:$0xff]
        %242 = vset.pattern.permute.xlu0 0
        %243 = vperm.xlu0 %242, %v237
        %v244 = vpop.permute.xlu0 %243
        %247 = vset.pattern.permute.xlu0 0
        %248 = vperm.xlu0 %247, %v238
        %v249 = vpop.permute.xlu0 %248
        %252 = vset.pattern.permute.xlu0 0
        %253 = vperm.xlu0 %252, %v239
        %v254 = vpop.permute.xlu0 %253
        %257 = vset.pattern.permute.xlu0 0
        %258 = vperm.xlu0 %257, %v240
        %v259 = vpop.permute.xlu0 %258
        %vm261 = vcmask 523264
        %v263 = vsel %vm261, %v217, 0
        %v266 = vsel %vm261, %v218, 0
        %v269 = vsel %vm261, %v219, 0
        %v272 = vsel %vm261, %v220, 0
        %274 = vmatprep.subr.mxu0 %v222
        %275 = vmatpush1.msra.mxu0 %v221
        %276 = vmatprep.subr.mxu0 %v224
        %277 = vmatpush1.msra.mxu0 %v223
        %278 = vmatprep.subr.mxu0 %v226
        %279 = vmatpush1.msra.mxu0 %v225
        %280 = vmatprep.subr.mxu0 %v228
        %281 = vmatpush1.msra.mxu0 %v227
        %282 = vmatprep.subr.mxu0 %v230
        %283 = vmatpush1.msra.mxu0 %v229
        %284 = vmatprep.subr.mxu0 %v232
        %285 = vmatpush1.msra.mxu0 %v231
        %286 = vmatprep.subr.mxu0 %v234
        %287 = vmatpush1.msra.mxu0 %v233
        %288 = vmatprep.subr.mxu0 %v236
        %289 = vmatpush1.msra.mxu0 %v235
        %290 = vmatprep.subr.mxu0 0.0
        %291 = vmatpush1.msra.mxu0 0.0
        %292 = vmatprep.subr.mxu0 0.0
        %293 = vmatpush1.msra.mxu0 0.0
        %294 = vmatprep.subr.mxu0 0.0
        %295 = vmatpush1.msra.mxu0 0.0
        %296 = vmatprep.subr.mxu0 0.0
        %297 = vmatpush1.msra.mxu0 0.0
        %298 = vmatprep.subr.mxu0 0.0
        %299 = vmatpush1.msra.mxu0 0.0
        %300 = vmatprep.subr.mxu0 0.0
        %301 = vmatpush1.msra.mxu0 0.0
        %302 = vmatprep.subr.mxu0 0.0
        %303 = vmatpush1.msra.mxu0 0.0
        %304 = vmatprep.subr.mxu0 0.0
        %305 = vmatpush1.msra.mxu0 0.0
        %306 = vmatprep.subr.mxu0 0.0
        %307 = vmatpush1.msra.mxu0 0.0
        %308 = vmatprep.subr.mxu0 0.0
        %309 = vmatpush1.msra.mxu0 0.0
        %310 = vmatprep.subr.mxu0 0.0
        %311 = vmatpush1.msra.mxu0 0.0
        %312 = vmatprep.subr.mxu0 0.0
        %313 = vmatpush1.msra.mxu0 0.0
        %314 = vmatprep.subr.mxu0 0.0
        %315 = vmatpush1.msra.mxu0 0.0
        %316 = vmatprep.subr.mxu0 0.0
        %317 = vmatpush1.msra.mxu0 0.0
        %318 = vmatprep.subr.mxu0 0.0
        %319 = vmatpush1.msra.mxu0 0.0
        %320 = vmatprep.subr.mxu0 0.0
        %321 = vmatpush1.msra.mxu0 0.0
        %322 = vmatprep.subr.mxu0 0.0
        %323 = vmatpush1.msra.mxu0 0.0
        %324 = vmatprep.subr.mxu0 0.0
        %325 = vmatpush1.msra.mxu0 0.0
        %326 = vmatprep.subr.mxu0 0.0
        %327 = vmatpush1.msra.mxu0 0.0
        %328 = vmatprep.subr.mxu0 0.0
        %329 = vmatpush1.msra.mxu0 0.0
        %330 = vmatprep.subr.mxu0 0.0
        %331 = vmatpush1.msra.mxu0 0.0
        %332 = vmatprep.subr.mxu0 0.0
        %333 = vmatpush1.msra.mxu0 0.0
        %334 = vmatprep.subr.mxu0 0.0
        %335 = vmatpush1.msra.mxu0 0.0
        %336 = vmatprep.subr.mxu0 0.0
        %337 = vmatpush1.msra.mxu0 0.0
        %338 = vmatprep.mubr.f32.mxu0 0.0
        %339 = vmatmul.mubr.f32.gmra.mrb[0].mxu0 %v263
        %v340 = vpop.f32.mrb[0].mxu0
        %v341 = vadd.f32 %v244, %v340
        %v342 = vpop.f32.mrb[0].mxu0
        %v343 = vadd.f32 %v244, %v342
        %344 = vmatprep.mubr.f32.mxu0 0.0
        %345 = vmatmul.mubr.f32.gmra.mrb[0].mxu0 %v266
        %v346 = vpop.f32.mrb[0].mxu0
        %v347 = vadd.f32 %v249, %v346
        %v348 = vpop.f32.mrb[0].mxu0
        %v349 = vadd.f32 %v249, %v348
        %350 = vmatprep.mubr.f32.mxu0 0.0
        %351 = vmatmul.mubr.f32.gmra.mrb[0].mxu0 %v269
        %v352 = vpop.f32.mrb[0].mxu0
        %v353 = vadd.f32 %v254, %v352
        %v354 = vpop.f32.mrb[0].mxu0
        %v355 = vadd.f32 %v254, %v354
        %356 = vmatprep.mubr.f32.mxu0 0.0
        %357 = vmatmul.mubr.f32.gmra.mrb[0].mxu0 %v272
        %v358 = vpop.f32.mrb[0].mxu0
        %v359 = vadd.f32 %v259, %v358
        %v360 = vpop.f32.mrb[0].mxu0
        %v361 = vadd.f32 %v259, %v360
        %362 = vdwg.mxu0
        %363 = vst [vmem:[%s214] sm:$0xff] %v341
        %364 = vst [vmem:[%s214 + $0x8] sm:$0xff] %v343
        %365 = vst [vmem:[%s214 + $0x10] sm:$0xff] %v347
        %366 = vst [vmem:[%s214 + $0x18] sm:$0xff] %v349
        %367 = vst [vmem:[%s214 + $0x20] sm:$0xff] %v353
        %368 = vst [vmem:[%s214 + $0x28] sm:$0xff] %v355
        %369 = vst [vmem:[%s214 + $0x30] sm:$0xff] %v359
        %370 = vst [vmem:[%s214 + $0x38] sm:$0xff] %v361
        %s371 = sand.u32 %s90, 1
        %s372 = sand.u32 %s90, 1
        %s373 = smul.addr %s372, 64
        %s374 = scalar_lea.vmem [#allocation3], %s373
        // Predicated region
        $region56: #{resnet_generator_forward.35} parent=50 // pred_check
          %p375 = pneg %p100
        $region57: #{resnet_generator_forward.35} parent=50 // pred_check_branch
          %377 = sbr.rel (%p375) target = $region59
        $region58: #{resnet_generator_forward.35} parent=50 // pred_region
          %s378 = smul.u32 2, %s14
          %s379 = smul.addr %s378, 8
          %s380 = scalar_lea.vmem %s3, %s379
          // Predicated region
          $region60: #{resnet_generator_forward.35} parent=58 // pred_check
            _
          $region61: #{resnet_generator_forward.35} parent=58 // pred_check_branch
            %382 = sbr.rel (0) target = $region63
          $region62: #{resnet_generator_forward.35} parent=58 // pred_region
            // Predicated region
            $region64: #{resnet_generator_forward.35} parent=62 // pred_check
              _
            $region65: #{resnet_generator_forward.35} parent=62 // pred_check_branch
              %384 = sbr.rel (0) target = $region67
            $region66: #{resnet_generator_forward.35} parent=62 // pred_region
              loop: start=0, step=1, limit=1
              $region68: #{resnet_generator_forward.35} parent=66 // loop_pre_header
                _
              $region69: #{resnet_generator_forward.35} parent=66 // loop_header
                %s386 = sphi 0, %s390
                %p387 = scmp.ge.s32.totalorder %s386, 1
                %s391 = sphi %s374, %s374
                %s392 = sphi %s380, %s380
              $region70: #{resnet_generator_forward.35} parent=66 // loop_header_branch
                %389 = sbr.rel (%p387) target = $region74
              $region71: #{resnet_generator_forward.35} parent=66 // loop_body
                %v393 = vld [vmem:[%s391] sm:$0xff]
                %394 = vst [vmem:[%s392] sm:$0xff] %v393
                %v395 = vld [vmem:[%s391 + $0x8] sm:$0xff]
                %396 = vst [vmem:[%s392 + $0x8] sm:$0xff] %v395
                %v397 = vld [vmem:[%s391 + $0x10] sm:$0xff]
                %398 = vst [vmem:[%s392 + $0x20] sm:$0xff] %v397
                %v399 = vld [vmem:[%s391 + $0x18] sm:$0xff]
                %400 = vst [vmem:[%s392 + $0x28] sm:$0xff] %v399
                %v401 = vld [vmem:[%s391 + $0x20] sm:$0xff]
                %402 = vst [vmem:[%s392 + $0x40] sm:$0xff] %v401
                %v403 = vld [vmem:[%s391 + $0x28] sm:$0xff]
                %404 = vst [vmem:[%s392 + $0x48] sm:$0xff] %v403
                %v405 = vld [vmem:[%s391 + $0x30] sm:$0xff]
                %406 = vst [vmem:[%s392 + $0x60] sm:$0xff] %v405
                %v407 = vld [vmem:[%s391 + $0x38] sm:$0xff]
                %408 = vst [vmem:[%s392 + $0x68] sm:$0xff] %v407
              $region72: #{resnet_generator_forward.35} parent=66 // loop_footer
                %s390 = sadd.s32 1, %s386
              $region73: #{resnet_generator_forward.35} parent=66 // loop_footer_branch
                %385 = sbr.rel target = $region69
              $region74: #{resnet_generator_forward.35} parent=66 // loop_exit
                _
            $region67: #{resnet_generator_forward.35} parent=62 // pred_fallthru
              _
            // Predicated region
            $region75: #{resnet_generator_forward.35} parent=62 // pred_check
              _
            $region76: #{resnet_generator_forward.35} parent=62 // pred_check_branch
              %410 = sbr.rel target = $region78
            $region77: #{resnet_generator_forward.35} parent=62 // pred_region
              _
            $region78: #{resnet_generator_forward.35} parent=62 // pred_fallthru
              _
          $region63: #{resnet_generator_forward.35} parent=58 // pred_fallthru
            _
          %411 = vnop
        $region59: #{resnet_generator_forward.35} parent=50 // pred_fallthru
          _
      $region51: #{resnet_generator_forward.35} parent=5 // pred_fallthru
        _
      %p412 = scmp.le.s32.totalorder 2, %s9
      // Predicated region
      $region79: #{resnet_generator_forward.35} parent=5 // pred_check
        %p413 = pneg %p412
      $region80: #{resnet_generator_forward.35} parent=5 // pred_check_branch
        %415 = sbr.rel (%p413) target = $region82
      $region81: #{resnet_generator_forward.35} parent=5 // pred_region
        %s416 = ssub.s32 %s9, 2
        // Predicated region
        $region83: #{resnet_generator_forward.35} parent=81 // pred_check
          %p417 = pneg %p106
        $region84: #{resnet_generator_forward.35} parent=81 // pred_check_branch
          %419 = sbr.rel (%p417) target = $region86
        $region85: #{resnet_generator_forward.35} parent=81 // pred_region
          %s420 = sand.u32 %s91, 1
          %s421 = sand.u32 %s91, 1
          %s422 = smul.addr %s421, 64
          %s423 = scalar_lea.vmem [#allocation3], %s422
        $region86: #{resnet_generator_forward.35} parent=81 // pred_fallthru
          _
      $region82: #{resnet_generator_forward.35} parent=5 // pred_fallthru
        _
    $region6: #{resnet_generator_forward.35} parent=1 // loop_footer
      %s13 = sadd.s32 1, %s9
    $region7: #{resnet_generator_forward.35} parent=1 // loop_footer_branch
      %8 = sbr.rel target = $region3
    $region8: #{resnet_generator_forward.35} parent=1 // loop_exit
      _

// kernel: resnet_generator_forward.37
$region0: #{resnet_generator_forward.37}
  #allocation0 [shape = 'u32[]', space=smem, size = 0x4, offset = 0x4, fixed_abs, tag = 'smem constant byte address 0x4 - core index']
  #allocation1 [shape = 'u32[144,128]{1,0:T(1,128)}', space=vmem, size = 0x12000, scoped, tag = 'internal scratch']
  %s0 = inlined_call_operand.vmem [shape: f32[392,2048], index: 0, kind: input, shape index: {}]
  %s1 = inlined_call_operand.vmem [shape: f32[8,392], index: 1, kind: input, shape index: {}]
  %s2 = inlined_call_operand.vmem [shape: f32[8,1], index: 2, kind: input, shape index: {}]
  %s3 = inlined_call_operand.vmem [shape: f32[8,2048], index: 3, kind: output, shape index: {}]
  %s4 = sld [smem:[#allocation0]]
  $region68: #{resnet_generator_forward.37} parent=0
    _
  %s6 = ssub.s32 1, %s4
  %s7 = scalar_select 0, %s6, %s4
  $region1: #{resnet_generator_forward.37} parent=0
    #allocation2 [shape = 'u8[802816]{0}', space=vmem, size = 0xc4000, scoped, tag = 'input window, operand 0']
    loop: start=0, step=1, limit=10
    $region2: #{resnet_generator_forward.37} parent=1 // loop_pre_header
      _
    $region3: #{resnet_generator_forward.37} parent=1 // loop_header
      %s9 = sphi 0, %s13
      %p10 = scmp.ge.s32.totalorder %s9, 10
      %s19 = sphi 0, %s21
      %s22 = sphi 0, %s19
      %s23 = sphi 0, %s22
      %s39 = sphi 0, %s23
      %s43 = sphi 0, %s43
      %s45 = sphi 0, %s43
      %s46 = sphi 0, %s45
      %s60 = sphi 0, %s46
      %s64 = sphi 0, %s64
      %s66 = sphi 0, %s64
      %s67 = sphi 0, %s66
      %s81 = sphi 0, %s67
      %s87 = sphi 0, %s89
      %s90 = sphi 0, %s87
      %s91 = sphi 0, %s90
      %s107 = sphi 0, %s91
    $region4: #{resnet_generator_forward.37} parent=1 // loop_header_branch
      %12 = sbr.rel (%p10) target = $region8
    $region5: #{resnet_generator_forward.37} parent=1 // loop_body
      %s14 = ssub.s32 %s9, 1
      %s15 = ssub.s32 %s9, 2
      %s16 = sadd.s32 %s9, 1
      %s17 = ssub.s32 %s9, %s16
      %p18 = scmp.eq.s32.totalorder %s17, 0
      %s20 = sadd.s32 %s19, 1
      %s21 = scalar_select %p18, %s19, %s20
      %p24 = pneg %p18
      %p25 = scmp.eq.s32.totalorder %s9, 7
      %p26 = por %p24, %p25
      %p27 = scmp.ne.s32.totalorder %s19, %s22
      %p28 = scmp.eq.s32.totalorder %s9, 0
      %p29 = por %p27, %p28
      %p30 = scmp.ne.s32.totalorder %s19, %s22
      %p31 = scmp.eq.s32.totalorder %s14, 7
      %p32 = por %p30, %p31
      %p33 = scmp.ne.s32.totalorder %s22, %s23
      %p34 = scmp.eq.s32.totalorder %s14, 0
      %p35 = por %p33, %p34
      %p36 = scmp.ne.s32.totalorder %s22, %s23
      %p37 = scmp.eq.s32.totalorder %s15, 7
      %p38 = por %p36, %p37
      %p40 = scmp.ne.s32.totalorder %s23, %s39
      %p41 = scmp.eq.s32.totalorder %s15, 0
      %p42 = por %p40, %p41
      %s44 = sadd.s32 %s43, 1
      %p47 = scmp.eq.s32.totalorder %s9, 7
      %p48 = scmp.ne.s32.totalorder %s43, %s45
      %p49 = scmp.eq.s32.totalorder %s9, 0
      %p50 = por %p48, %p49
      %p51 = scmp.ne.s32.totalorder %s43, %s45
      %p52 = scmp.eq.s32.totalorder %s14, 7
      %p53 = por %p51, %p52
      %p54 = scmp.ne.s32.totalorder %s45, %s46
      %p55 = scmp.eq.s32.totalorder %s14, 0
      %p56 = por %p54, %p55
      %p57 = scmp.ne.s32.totalorder %s45, %s46
      %p58 = scmp.eq.s32.totalorder %s15, 7
      %p59 = por %p57, %p58
      %p61 = scmp.ne.s32.totalorder %s46, %s60
      %p62 = scmp.eq.s32.totalorder %s15, 0
      %p63 = por %p61, %p62
      %s65 = sadd.s32 %s64, 1
      %p68 = scmp.eq.s32.totalorder %s9, 7
      %p69 = scmp.ne.s32.totalorder %s64, %s66
      %p70 = scmp.eq.s32.totalorder %s9, 0
      %p71 = por %p69, %p70
      %p72 = scmp.ne.s32.totalorder %s64, %s66
      %p73 = scmp.eq.s32.totalorder %s14, 7
      %p74 = por %p72, %p73
      %p75 = scmp.ne.s32.totalorder %s66, %s67
      %p76 = scmp.eq.s32.totalorder %s14, 0
      %p77 = por %p75, %p76
      %p78 = scmp.ne.s32.totalorder %s66, %s67
      %p79 = scmp.eq.s32.totalorder %s15, 7
      %p80 = por %p78, %p79
      %p82 = scmp.ne.s32.totalorder %s67, %s81
      %p83 = scmp.eq.s32.totalorder %s15, 0
      %p84 = por %p82, %p83
      %s85 = ssub.s32 %s9, %s16
      %p86 = scmp.eq.s32.totalorder %s85, 0
      %s88 = sadd.s32 %s87, 1
      %s89 = scalar_select %p86, %s87, %s88
      %p92 = pneg %p86
      %p93 = scmp.eq.s32.totalorder %s9, 7
      %p94 = por %p92, %p93
      %p95 = scmp.ne.s32.totalorder %s87, %s90
      %p96 = scmp.eq.s32.totalorder %s9, 0
      %p97 = por %p95, %p96
      %p98 = scmp.ne.s32.totalorder %s87, %s90
      %p99 = scmp.eq.s32.totalorder %s14, 7
      %p100 = por %p98, %p99
      %p101 = scmp.ne.s32.totalorder %s90, %s91
      %p102 = scmp.eq.s32.totalorder %s14, 0
      %p103 = por %p101, %p102
      %p104 = scmp.ne.s32.totalorder %s90, %s91
      %p105 = scmp.eq.s32.totalorder %s15, 7
      %p106 = por %p104, %p105
      %p108 = scmp.ne.s32.totalorder %s91, %s107
      %p109 = scmp.eq.s32.totalorder %s15, 0
      %p110 = por %p108, %p109
      %p111 = scmp.le.s32.totalorder 1, %s9
      %p112 = scmp.lt.s32.totalorder %s9, 9
      %p113 = pnand %p111, %p112
      %p114 = pneg %p113
      // Predicated region
      $region9: #{resnet_generator_forward.37} parent=5 // pred_check
        _
      $region10: #{resnet_generator_forward.37} parent=5 // pred_check_branch
        %116 = sbr.rel (%p113) target = $region12
      $region11: #{resnet_generator_forward.37} parent=5 // pred_region
        %s117 = ssub.s32 %s9, 1
        // Predicated region
        $region13: #{resnet_generator_forward.37} parent=11 // pred_check
          %p118 = pneg %p56
        $region14: #{resnet_generator_forward.37} parent=11 // pred_check_branch
          %120 = sbr.rel (%p118) target = $region16
        $region15: #{resnet_generator_forward.37} parent=11 // pred_region
          _
        $region16: #{resnet_generator_forward.37} parent=11 // pred_fallthru
          _
        // Predicated region
        $region17: #{resnet_generator_forward.37} parent=11 // pred_check
          %p121 = pneg %p77
        $region18: #{resnet_generator_forward.37} parent=11 // pred_check_branch
          %123 = sbr.rel (%p121) target = $region20
        $region19: #{resnet_generator_forward.37} parent=11 // pred_region
          _
        $region20: #{resnet_generator_forward.37} parent=11 // pred_fallthru
          _
      $region12: #{resnet_generator_forward.37} parent=5 // pred_fallthru
        _
      %p124 = scmp.lt.s32.totalorder %s9, 8
      // Predicated region
      $region21: #{resnet_generator_forward.37} parent=5 // pred_check
        %p125 = pneg %p124
      $region22: #{resnet_generator_forward.37} parent=5 // pred_check_branch
        %127 = sbr.rel (%p125) target = $region24
      $region23: #{resnet_generator_forward.37} parent=5 // pred_region
        // Predicated region
        $region25: #{resnet_generator_forward.37} parent=23 // pred_check
          %p128 = pneg %p29
        $region26: #{resnet_generator_forward.37} parent=23 // pred_check_branch
          %130 = sbr.rel (%p128) target = $region28
        $region27: #{resnet_generator_forward.37} parent=23 // pred_region
          %s131 = sand.u32 %s19, 1
          %s132 = sand.u32 %s19, 1
          %s133 = smul.addr %s132, 784
          %s134 = scalar_lea.vmem [#allocation2], %s133
          %s135 = smul.u32 2, %s9
          %s136 = smul.addr %s135, 8
          %s137 = scalar_lea.vmem %s0, %s136
          // Predicated region
          $region29: #{resnet_generator_forward.37} parent=27 // pred_check
            _
          $region30: #{resnet_generator_forward.37} parent=27 // pred_check_branch
            %139 = sbr.rel (0) target = $region32
          $region31: #{resnet_generator_forward.37} parent=27 // pred_region
            // Predicated region
            $region33: #{resnet_generator_forward.37} parent=31 // pred_check
              _
            $region34: #{resnet_generator_forward.37} parent=31 // pred_check_branch
              %141 = sbr.rel (0) target = $region36
            $region35: #{resnet_generator_forward.37} parent=31 // pred_region
              loop: start=0, step=1, limit=1
              $region37: #{resnet_generator_forward.37} parent=35 // loop_pre_header
                _
              $region38: #{resnet_generator_forward.37} parent=35 // loop_header
                %s143 = sphi 0, %s147
                %p144 = scmp.ge.s32.totalorder %s143, 1
                %s148 = sphi %s137, %s137
                %s149 = sphi %s134, %s134
              $region39: #{resnet_generator_forward.37} parent=35 // loop_header_branch
                %146 = sbr.rel (%p144) target = $region43
              $region40: #{resnet_generator_forward.37} parent=35 // loop_body
                %v150 = vld [vmem:[%s148] sm:$0xff]
                %151 = vst [vmem:[%s149] sm:$0xff] %v150
                %v152 = vld [vmem:[%s148 + $0x8] sm:$0xff]
                %153 = vst [vmem:[%s149 + $0x8] sm:$0xff] %v152
                %v154 = vld [vmem:[%s148 + $0x80] sm:$0xff]
                %155 = vst [vmem:[%s149 + $0x10] sm:$0xff] %v154
                %v156 = vld [vmem:[%s148 + $0x88] sm:$0xff]
                %157 = vst [vmem:[%s149 + $0x18] sm:$0xff] %v156
                %v158 = vld [vmem:[%s148 + $0x100] sm:$0xff]
                %159 = vst [vmem:[%s149 + $0x20] sm:$0xff] %v158
                %v160 = vld [vmem:[%s148 + $0x108] sm:$0xff]
                %161 = vst [vmem:[%s149 + $0x28] sm:$0xff] %v160
                %v162 = vld [vmem:[%s148 + $0x180] sm:$0xff]
                %163 = vst [vmem:[%s149 + $0x30] sm:$0xff] %v162
                %v164 = vld [vmem:[%s148 + $0x188] sm:$0xff]
                %165 = vst [vmem:[%s149 + $0x38] sm:$0xff] %v164
                %v166 = vld [vmem:[%s148 + $0x200] sm:$0xff]
                %167 = vst [vmem:[%s149 + $0x40] sm:$0xff] %v166
                %v168 = vld [vmem:[%s148 + $0x208] sm:$0xff]
                %169 = vst [vmem:[%s149 + $0x48] sm:$0xff] %v168
                %v170 = vld [vmem:[%s148 + $0x280] sm:$0xff]
                %171 = vst [vmem:[%s149 + $0x50] sm:$0xff] %v170
                %v172 = vld [vmem:[%s148 + $0x288] sm:$0xff]
                %173 = vst [vmem:[%s149 + $0x58] sm:$0xff] %v172
                %v174 = vld [vmem:[%s148 + $0x300] sm:$0xff]
                %175 = vst [vmem:[%s149 + $0x60] sm:$0xff] %v174
                %v176 = vld [vmem:[%s148 + $0x308] sm:$0xff]
                %177 = vst [vmem:[%s149 + $0x68] sm:$0xff] %v176
                %v178 = vld [vmem:[%s148 + $0x380] sm:$0xff]
                %179 = vst [vmem:[%s149 + $0x70] sm:$0xff] %v178
                %v180 = vld [vmem:[%s148 + $0x388] sm:$0xff]
                %181 = vst [vmem:[%s149 + $0x78] sm:$0xff] %v180
                %v182 = vld [vmem:[%s148 + $0x400] sm:$0xff]
                %183 = vst [vmem:[%s149 + $0x80] sm:$0xff] %v182
                %v184 = vld [vmem:[%s148 + $0x408] sm:$0xff]
                %185 = vst [vmem:[%s149 + $0x88] sm:$0xff] %v184
                %v186 = vld [vmem:[%s148 + $0x480] sm:$0xff]
                %187 = vst [vmem:[%s149 + $0x90] sm:$0xff] %v186
                %v188 = vld [vmem:[%s148 + $0x488] sm:$0xff]
                %189 = vst [vmem:[%s149 + $0x98] sm:$0xff] %v188
                %v190 = vld [vmem:[%s148 + $0x500] sm:$0xff]
                %191 = vst [vmem:[%s149 + $0xa0] sm:$0xff] %v190
                %v192 = vld [vmem:[%s148 + $0x508] sm:$0xff]
                %193 = vst [vmem:[%s149 + $0xa8] sm:$0xff] %v192
                %v194 = vld [vmem:[%s148 + $0x580] sm:$0xff]
                %195 = vst [vmem:[%s149 + $0xb0] sm:$0xff] %v194
                %v196 = vld [vmem:[%s148 + $0x588] sm:$0xff]
                %197 = vst [vmem:[%s149 + $0xb8] sm:$0xff] %v196
                %v198 = vld [vmem:[%s148 + $0x600] sm:$0xff]
                %199 = vst [vmem:[%s149 + $0xc0] sm:$0xff] %v198
                %v200 = vld [vmem:[%s148 + $0x608] sm:$0xff]
                %201 = vst [vmem:[%s149 + $0xc8] sm:$0xff] %v200
                %v202 = vld [vmem:[%s148 + $0x680] sm:$0xff]
                %203 = vst [vmem:[%s149 + $0xd0] sm:$0xff] %v202
                %v204 = vld [vmem:[%s148 + $0x688] sm:$0xff]
                %205 = vst [vmem:[%s149 + $0xd8] sm:$0xff] %v204
                %v206 = vld [vmem:[%s148 + $0x700] sm:$0xff]
                %207 = vst [vmem:[%s149 + $0xe0] sm:$0xff] %v206
                %v208 = vld [vmem:[%s148 + $0x708] sm:$0xff]
                %209 = vst [vmem:[%s149 + $0xe8] sm:$0xff] %v208
                %v210 = vld [vmem:[%s148 + $0x780] sm:$0xff]
                %211 = vst [vmem:[%s149 + $0xf0] sm:$0xff] %v210
                %v212 = vld [vmem:[%s148 + $0x788] sm:$0xff]
                %213 = vst [vmem:[%s149 + $0xf8] sm:$0xff] %v212
                %v214 = vld [vmem:[%s148 + $0x800] sm:$0xff]
                %215 = vst [vmem:[%s149 + $0x100] sm:$0xff] %v214
                %v216 = vld [vmem:[%s148 + $0x808] sm:$0xff]
                %217 = vst [vmem:[%s149 + $0x108] sm:$0xff] %v216
                %v218 = vld [vmem:[%s148 + $0x880] sm:$0xff]
                %219 = vst [vmem:[%s149 + $0x110] sm:$0xff] %v218
                %v220 = vld [vmem:[%s148 + $0x888] sm:$0xff]
                %221 = vst [vmem:[%s149 + $0x118] sm:$0xff] %v220
                %v222 = vld [vmem:[%s148 + $0x900] sm:$0xff]
                %223 = vst [vmem:[%s149 + $0x120] sm:$0xff] %v222
                %v224 = vld [vmem:[%s148 + $0x908] sm:$0xff]
                %225 = vst [vmem:[%s149 + $0x128] sm:$0xff] %v224
                %v226 = vld [vmem:[%s148 + $0x980] sm:$0xff]
                %227 = vst [vmem:[%s149 + $0x130] sm:$0xff] %v226
                %v228 = vld [vmem:[%s148 + $0x988] sm:$0xff]
                %229 = vst [vmem:[%s149 + $0x138] sm:$0xff] %v228
                %v230 = vld [vmem:[%s148 + $0xa00] sm:$0xff]
                %231 = vst [vmem:[%s149 + $0x140] sm:$0xff] %v230
                %v232 = vld [vmem:[%s148 + $0xa08] sm:$0xff]
                %233 = vst [vmem:[%s149 + $0x148] sm:$0xff] %v232
                %v234 = vld [vmem:[%s148 + $0xa80] sm:$0xff]
                %235 = vst [vmem:[%s149 + $0x150] sm:$0xff] %v234
                %v236 = vld [vmem:[%s148 + $0xa88] sm:$0xff]
                %237 = vst [vmem:[%s149 + $0x158] sm:$0xff] %v236
                %v238 = vld [vmem:[%s148 + $0xb00] sm:$0xff]
                %239 = vst [vmem:[%s149 + $0x160] sm:$0xff] %v238
                %v240 = vld [vmem:[%s148 + $0xb08] sm:$0xff]
                %241 = vst [vmem:[%s149 + $0x168] sm:$0xff] %v240
                %v242 = vld [vmem:[%s148 + $0xb80] sm:$0xff]
                %243 = vst [vmem:[%s149 + $0x170] sm:$0xff] %v242
                %v244 = vld [vmem:[%s148 + $0xb88] sm:$0xff]
                %245 = vst [vmem:[%s149 + $0x178] sm:$0xff] %v244
                %v246 = vld [vmem:[%s148 + $0xc00] sm:$0xff]
                %247 = vst [vmem:[%s149 + $0x180] sm:$0xff] %v246
                %v248 = vld [vmem:[%s148 + $0xc08] sm:$0xff]
                %249 = vst [vmem:[%s149 + $0x188] sm:$0xff] %v248
                %v250 = vld [vmem:[%s148 + $0xc80] sm:$0xff]
                %251 = vst [vmem:[%s149 + $0x190] sm:$0xff] %v250
                %v252 = vld [vmem:[%s148 + $0xc88] sm:$0xff]
                %253 = vst [vmem:[%s149 + $0x198] sm:$0xff] %v252
                %v254 = vld [vmem:[%s148 + $0xd00] sm:$0xff]
                %255 = vst [vmem:[%s149 + $0x1a0] sm:$0xff] %v254
                %v256 = vld [vmem:[%s148 + $0xd08] sm:$0xff]
                %257 = vst [vmem:[%s149 + $0x1a8] sm:$0xff] %v256
                %v258 = vld [vmem:[%s148 + $0xd80] sm:$0xff]
                %259 = vst [vmem:[%s149 + $0x1b0] sm:$0xff] %v258
                %v260 = vld [vmem:[%s148 + $0xd88] sm:$0xff]
                %261 = vst [vmem:[%s149 + $0x1b8] sm:$0xff] %v260
                %v262 = vld [vmem:[%s148 + $0xe00] sm:$0xff]
                %263 = vst [vmem:[%s149 + $0x1c0] sm:$0xff] %v262
                %v264 = vld [vmem:[%s148 + $0xe08] sm:$0xff]
                %265 = vst [vmem:[%s149 + $0x1c8] sm:$0xff] %v264
                %v266 = vld [vmem:[%s148 + $0xe80] sm:$0xff]
                %267 = vst [vmem:[%s149 + $0x1d0] sm:$0xff] %v266
                %v268 = vld [vmem:[%s148 + $0xe88] sm:$0xff]
                %269 = vst [vmem:[%s149 + $0x1d8] sm:$0xff] %v268
                %v270 = vld [vmem:[%s148 + $0xf00] sm:$0xff]
                %271 = vst [vmem:[%s149 + $0x1e0] sm:$0xff] %v270
                %v272 = vld [vmem:[%s148 + $0xf08] sm:$0xff]
                %273 = vst [vmem:[%s149 + $0x1e8] sm:$0xff] %v272
                %v274 = vld [vmem:[%s148 + $0xf80] sm:$0xff]
                %275 = vst [vmem:[%s149 + $0x1f0] sm:$0xff] %v274
                %v276 = vld [vmem:[%s148 + $0xf88] sm:$0xff]
                %277 = vst [vmem:[%s149 + $0x1f8] sm:$0xff] %v276
                %v278 = vld [vmem:[%s148 + $0x1000] sm:$0xff]
                %279 = vst [vmem:[%s149 + $0x200] sm:$0xff] %v278
                %v280 = vld [vmem:[%s148 + $0x1008] sm:$0xff]
                %281 = vst [vmem:[%s149 + $0x208] sm:$0xff] %v280
                %v282 = vld [vmem:[%s148 + $0x1080] sm:$0xff]
                %283 = vst [vmem:[%s149 + $0x210] sm:$0xff] %v282
                %v284 = vld [vmem:[%s148 + $0x1088] sm:$0xff]
                %285 = vst [vmem:[%s149 + $0x218] sm:$0xff] %v284
                %v286 = vld [vmem:[%s148 + $0x1100] sm:$0xff]
                %287 = vst [vmem:[%s149 + $0x220] sm:$0xff] %v286
                %v288 = vld [vmem:[%s148 + $0x1108] sm:$0xff]
                %289 = vst [vmem:[%s149 + $0x228] sm:$0xff] %v288
                %v290 = vld [vmem:[%s148 + $0x1180] sm:$0xff]
                %291 = vst [vmem:[%s149 + $0x230] sm:$0xff] %v290
                %v292 = vld [vmem:[%s148 + $0x1188] sm:$0xff]
                %293 = vst [vmem:[%s149 + $0x238] sm:$0xff] %v292
                %v294 = vld [vmem:[%s148 + $0x1200] sm:$0xff]
                %295 = vst [vmem:[%s149 + $0x240] sm:$0xff] %v294
                %v296 = vld [vmem:[%s148 + $0x1208] sm:$0xff]
                %297 = vst [vmem:[%s149 + $0x248] sm:$0xff] %v296
                %v298 = vld [vmem:[%s148 + $0x1280] sm:$0xff]
                %299 = vst [vmem:[%s149 + $0x250] sm:$0xff] %v298
                %v300 = vld [vmem:[%s148 + $0x1288] sm:$0xff]
                %301 = vst [vmem:[%s149 + $0x258] sm:$0xff] %v300
                %v302 = vld [vmem:[%s148 + $0x1300] sm:$0xff]
                %303 = vst [vmem:[%s149 + $0x260] sm:$0xff] %v302
                %v304 = vld [vmem:[%s148 + $0x1308] sm:$0xff]
                %305 = vst [vmem:[%s149 + $0x268] sm:$0xff] %v304
                %v306 = vld [vmem:[%s148 + $0x1380] sm:$0xff]
                %307 = vst [vmem:[%s149 + $0x270] sm:$0xff] %v306
                %v308 = vld [vmem:[%s148 + $0x1388] sm:$0xff]
                %309 = vst [vmem:[%s149 + $0x278] sm:$0xff] %v308
                %v310 = vld [vmem:[%s148 + $0x1400] sm:$0xff]
                %311 = vst [vmem:[%s149 + $0x280] sm:$0xff] %v310
                %v312 = vld [vmem:[%s148 + $0x1408] sm:$0xff]
                %313 = vst [vmem:[%s149 + $0x288] sm:$0xff] %v312
                %v314 = vld [vmem:[%s148 + $0x1480] sm:$0xff]
                %315 = vst [vmem:[%s149 + $0x290] sm:$0xff] %v314
                %v316 = vld [vmem:[%s148 + $0x1488] sm:$0xff]
                %317 = vst [vmem:[%s149 + $0x298] sm:$0xff] %v316
                %v318 = vld [vmem:[%s148 + $0x1500] sm:$0xff]
                %319 = vst [vmem:[%s149 + $0x2a0] sm:$0xff] %v318
                %v320 = vld [vmem:[%s148 + $0x1508] sm:$0xff]
                %321 = vst [vmem:[%s149 + $0x2a8] sm:$0xff] %v320
                %v322 = vld [vmem:[%s148 + $0x1580] sm:$0xff]
                %323 = vst [vmem:[%s149 + $0x2b0] sm:$0xff] %v322
                %v324 = vld [vmem:[%s148 + $0x1588] sm:$0xff]
                %325 = vst [vmem:[%s149 + $0x2b8] sm:$0xff] %v324
                %v326 = vld [vmem:[%s148 + $0x1600] sm:$0xff]
                %327 = vst [vmem:[%s149 + $0x2c0] sm:$0xff] %v326
                %v328 = vld [vmem:[%s148 + $0x1608] sm:$0xff]
                %329 = vst [vmem:[%s149 + $0x2c8] sm:$0xff] %v328
                %v330 = vld [vmem:[%s148 + $0x1680] sm:$0xff]
                %331 = vst [vmem:[%s149 + $0x2d0] sm:$0xff] %v330
                %v332 = vld [vmem:[%s148 + $0x1688] sm:$0xff]
                %333 = vst [vmem:[%s149 + $0x2d8] sm:$0xff] %v332
                %v334 = vld [vmem:[%s148 + $0x1700] sm:$0xff]
                %335 = vst [vmem:[%s149 + $0x2e0] sm:$0xff] %v334
                %v336 = vld [vmem:[%s148 + $0x1708] sm:$0xff]
                %337 = vst [vmem:[%s149 + $0x2e8] sm:$0xff] %v336
                %v338 = vld [vmem:[%s148 + $0x1780] sm:$0xff]
                %339 = vst [vmem:[%s149 + $0x2f0] sm:$0xff] %v338
                %v340 = vld [vmem:[%s148 + $0x1788] sm:$0xff]
                %341 = vst [vmem:[%s149 + $0x2f8] sm:$0xff] %v340
                %v342 = vld [vmem:[%s148 + $0x1800] sm:$0xff]
                %343 = vst [vmem:[%s149 + $0x300] sm:$0xff] %v342
                %v344 = vld [vmem:[%s148 + $0x1808] sm:$0xff]
                %345 = vst [vmem:[%s149 + $0x308] sm:$0xff] %v344
              $region41: #{resnet_generator_forward.37} parent=35 // loop_footer
                %s147 = sadd.s32 1, %s143
              $region42: #{resnet_generator_forward.37} parent=35 // loop_footer_branch
                %142 = sbr.rel target = $region38
              $region43: #{resnet_generator_forward.37} parent=35 // loop_exit
                _
            $region36: #{resnet_generator_forward.37} parent=31 // pred_fallthru
              _
            // Predicated region
            $region44: #{resnet_generator_forward.37} parent=31 // pred_check
              _
            $region45: #{resnet_generator_forward.37} parent=31 // pred_check_branch
              %347 = sbr.rel target = $region47
            $region46: #{resnet_generator_forward.37} parent=31 // pred_region
              _
            $region47: #{resnet_generator_forward.37} parent=31 // pred_fallthru
              _
          $region32: #{resnet_generator_forward.37} parent=27 // pred_fallthru
            _
          %348 = vnop
        $region28: #{resnet_generator_forward.37} parent=23 // pred_fallthru
          _
      $region24: #{resnet_generator_forward.37} parent=5 // pred_fallthru
        _
      %p349 = scmp.le.s32.totalorder 1, %s9
      %p350 = scmp.lt.s32.totalorder %s9, 9
      %p351 = pnand %p349, %p350
      %p352 = pneg %p351
      // Predicated region
      $region48: #{resnet_generator_forward.37} parent=5 // pred_check
        _
      $region49: #{resnet_generator_forward.37} parent=5 // pred_check_branch
        %354 = sbr.rel (%p351) target = $region51
      $region50: #{resnet_generator_forward.37} parent=5 // pred_region
        %s355 = ssub.s32 %s9, 1
        %s356 = sand.u32 %s22, 1
        %s357 = sand.u32 %s22, 1
        %s358 = smul.addr %s357, 784
        %s359 = scalar_lea.vmem [#allocation2], %s358
        // Predicated region
        $region52: #{resnet_generator_forward.37} parent=50 // pred_check
          %p360 = pneg %p35
        $region53: #{resnet_generator_forward.37} parent=50 // pred_check_branch
          %362 = sbr.rel (%p360) target = $region55
        $region54: #{resnet_generator_forward.37} parent=50 // pred_region
          _
        $region55: #{resnet_generator_forward.37} parent=50 // pred_fallthru
          _
        %s363 = sand.u32 %s22, 1
        %s364 = sand.u32 %s22, 1
        %s365 = smul.addr %s364, 784
        %s366 = scalar_lea.vmem [#allocation2], %s365
        %p367 = pneg %p35
        %p368 = pneg %p32
        %p369 = pneg %p56
        %p370 = pneg %p53
        %p371 = pneg %p77
        %p372 = pneg %p74
        %p373 = pneg %p103
        %p374 = pneg %p100
        %s375 = smul.u32 2, %s14
        %p376 = scmp.lt.s32.totalorder %s375, 15
        %s377 = scalar_select %p376, %s375, 15
        %s378 = smul.addr %s377, 8
        %s379 = scalar_lea.vmem %s3, %s378
        %s380 = smul.u32 2, %s14
        %s381 = smul.u32 2, %s14
        %p382 = scmp.lt.s32.totalorder %s381, 15
        %s383 = scalar_select %p382, %s381, 15
        %s384 = smul.addr %s383, 8
        %s385 = scalar_lea.vmem %s3, %s384
        %s386 = smul.u32 2, %s14
        %v387 = vld [vmem:[%s1] sm:$0xff]
        %v388 = vld [vmem:[%s1 + $0x8] sm:$0xff]
        %v389 = vld [vmem:[%s1 + $0x10] sm:$0xff]
        %v390 = vld [vmem:[%s1 + $0x18] sm:$0xff]
        %v391 = vld [vmem:[%s359] sm:$0xff]
        %v392 = vld [vmem:[%s359 + $0x8] sm:$0xff]
        %v393 = vld [vmem:[%s359 + $0x10] sm:$0xff]
        %v394 = vld [vmem:[%s359 + $0x18] sm:$0xff]
        %v395 = vld [vmem:[%s359 + $0x20] sm:$0xff]
        %v396 = vld [vmem:[%s359 + $0x28] sm:$0xff]
        %v397 = vld [vmem:[%s359 + $0x30] sm:$0xff]
        %v398 = vld [vmem:[%s359 + $0x38] sm:$0xff]
        %v399 = vld [vmem:[%s359 + $0x40] sm:$0xff]
        %v400 = vld [vmem:[%s359 + $0x48] sm:$0xff]
        %v401 = vld [vmem:[%s359 + $0x50] sm:$0xff]
        %v402 = vld [vmem:[%s359 + $0x58] sm:$0xff]
        %v403 = vld [vmem:[%s359 + $0x60] sm:$0xff]
        %v404 = vld [vmem:[%s359 + $0x68] sm:$0xff]
        %v405 = vld [vmem:[%s359 + $0x70] sm:$0xff]
        %v406 = vld [vmem:[%s359 + $0x78] sm:$0xff]
        %v407 = vld [vmem:[%s359 + $0x80] sm:$0xff]
        %v408 = vld [vmem:[%s359 + $0x88] sm:$0xff]
        %v409 = vld [vmem:[%s359 + $0x90] sm:$0xff]
        %v410 = vld [vmem:[%s359 + $0x98] sm:$0xff]
        %v411 = vld [vmem:[%s359 + $0xa0] sm:$0xff]
        %v412 = vld [vmem:[%s359 + $0xa8] sm:$0xff]
        %v413 = vld [vmem:[%s359 + $0xb0] sm:$0xff]
        %v414 = vld [vmem:[%s359 + $0xb8] sm:$0xff]
        %v415 = vld [vmem:[%s359 + $0xc0] sm:$0xff]
        %v416 = vld [vmem:[%s359 + $0xc8] sm:$0xff]
        %v417 = vld [vmem:[%s359 + $0xd0] sm:$0xff]
        %v418 = vld [vmem:[%s359 + $0xd8] sm:$0xff]
        %v419 = vld [vmem:[%s359 + $0xe0] sm:$0xff]
        %v420 = vld [vmem:[%s359 + $0xe8] sm:$0xff]
        %v421 = vld [vmem:[%s359 + $0xf0] sm:$0xff]
        %v422 = vld [vmem:[%s359 + $0xf8] sm:$0xff]
        %v423 = vld [vmem:[%s359 + $0x100] sm:$0xff]
        %v424 = vld [vmem:[%s359 + $0x108] sm:$0xff]
        %v425 = vld [vmem:[%s359 + $0x110] sm:$0xff]
        %v426 = vld [vmem:[%s359 + $0x118] sm:$0xff]
        %v427 = vld [vmem:[%s359 + $0x120] sm:$0xff]
        %v428 = vld [vmem:[%s359 + $0x128] sm:$0xff]
        %v429 = vld [vmem:[%s359 + $0x130] sm:$0xff]
        %v430 = vld [vmem:[%s359 + $0x138] sm:$0xff]
        %v431 = vld [vmem:[%s359 + $0x140] sm:$0xff]
        %v432 = vld [vmem:[%s359 + $0x148] sm:$0xff]
        %v433 = vld [vmem:[%s359 + $0x150] sm:$0xff]
        %v434 = vld [vmem:[%s359 + $0x158] sm:$0xff]
        %v435 = vld [vmem:[%s359 + $0x160] sm:$0xff]
        %v436 = vld [vmem:[%s359 + $0x168] sm:$0xff]
        %v437 = vld [vmem:[%s359 + $0x170] sm:$0xff]
        %v438 = vld [vmem:[%s359 + $0x178] sm:$0xff]
        %v439 = vld [vmem:[%s359 + $0x180] sm:$0xff]
        %v440 = vld [vmem:[%s359 + $0x188] sm:$0xff]
        %v441 = vld [vmem:[%s359 + $0x190] sm:$0xff]
        %v442 = vld [vmem:[%s359 + $0x198] sm:$0xff]
        %v443 = vld [vmem:[%s359 + $0x1a0] sm:$0xff]
        %v444 = vld [vmem:[%s359 + $0x1a8] sm:$0xff]
        %v445 = vld [vmem:[%s359 + $0x1b0] sm:$0xff]
        %v446 = vld [vmem:[%s359 + $0x1b8] sm:$0xff]
        %v447 = vld [vmem:[%s359 + $0x1c0] sm:$0xff]
        %v448 = vld [vmem:[%s359 + $0x1c8] sm:$0xff]
        %v449 = vld [vmem:[%s359 + $0x1d0] sm:$0xff]
        %v450 = vld [vmem:[%s359 + $0x1d8] sm:$0xff]
        %v451 = vld [vmem:[%s359 + $0x1e0] sm:$0xff]
        %v452 = vld [vmem:[%s359 + $0x1e8] sm:$0xff]
        %v453 = vld [vmem:[%s359 + $0x1f0] sm:$0xff]
        %v454 = vld [vmem:[%s359 + $0x1f8] sm:$0xff]
        %v455 = vld [vmem:[%s359 + $0x200] sm:$0xff]
        %v456 = vld [vmem:[%s359 + $0x208] sm:$0xff]
        %v457 = vld [vmem:[%s359 + $0x210] sm:$0xff]
        %v458 = vld [vmem:[%s359 + $0x218] sm:$0xff]
        %v459 = vld [vmem:[%s359 + $0x220] sm:$0xff]
        %v460 = vld [vmem:[%s359 + $0x228] sm:$0xff]
        %v461 = vld [vmem:[%s359 + $0x230] sm:$0xff]
        %v462 = vld [vmem:[%s359 + $0x238] sm:$0xff]
        %v463 = vld [vmem:[%s359 + $0x240] sm:$0xff]
        %v464 = vld [vmem:[%s359 + $0x248] sm:$0xff]
        %v465 = vld [vmem:[%s359 + $0x250] sm:$0xff]
        %v466 = vld [vmem:[%s359 + $0x258] sm:$0xff]
        %v467 = vld [vmem:[%s359 + $0x260] sm:$0xff]
        %v468 = vld [vmem:[%s359 + $0x268] sm:$0xff]
        %v469 = vld [vmem:[%s359 + $0x270] sm:$0xff]
        %v470 = vld [vmem:[%s359 + $0x278] sm:$0xff]
        %v471 = vld [vmem:[%s359 + $0x280] sm:$0xff]
        %v472 = vld [vmem:[%s359 + $0x288] sm:$0xff]
        %v473 = vld [vmem:[%s359 + $0x290] sm:$0xff]
        %v474 = vld [vmem:[%s359 + $0x298] sm:$0xff]
        %v475 = vld [vmem:[%s359 + $0x2a0] sm:$0xff]
        %v476 = vld [vmem:[%s359 + $0x2a8] sm:$0xff]
        %v477 = vld [vmem:[%s359 + $0x2b0] sm:$0xff]
        %v478 = vld [vmem:[%s359 + $0x2b8] sm:$0xff]
        %v479 = vld [vmem:[%s359 + $0x2c0] sm:$0xff]
        %v480 = vld [vmem:[%s359 + $0x2c8] sm:$0xff]
        %v481 = vld [vmem:[%s359 + $0x2d0] sm:$0xff]
        %v482 = vld [vmem:[%s359 + $0x2d8] sm:$0xff]
        %v483 = vld [vmem:[%s359 + $0x2e0] sm:$0xff]
        %v484 = vld [vmem:[%s359 + $0x2e8] sm:$0xff]
        %v485 = vld [vmem:[%s359 + $0x2f0] sm:$0xff]
        %v486 = vld [vmem:[%s359 + $0x2f8] sm:$0xff]
        %v487 = vld [vmem:[%s359 + $0x300] sm:$0xff]
        %v488 = vld [vmem:[%s359 + $0x308] sm:$0xff]
        %v489 = vld [vmem:[%s2] sm:$0xff]
        %491 = vset.pattern.permute.xlu0 0
        %492 = vperm.xlu0 %491, %v489
        %v493 = vpop.permute.xlu0 %492
        %vm495 = vcmask 64512
        %v497 = vsel %vm495, %v390, 0
        %499 = vmatprep.subr.mxu0 %v392
        %500 = vmatpush1.msra.mxu0 %v391
        %501 = vmatprep.subr.mxu0 %v394
        %502 = vmatpush1.msra.mxu0 %v393
        %503 = vmatprep.subr.mxu0 %v396
        %504 = vmatpush1.msra.mxu0 %v395
        %505 = vmatprep.subr.mxu0 %v398
        %506 = vmatpush1.msra.mxu0 %v397
        %507 = vmatprep.subr.mxu0 %v400
        %508 = vmatpush1.msra.mxu0 %v399
        %509 = vmatprep.subr.mxu0 %v402
        %510 = vmatpush1.msra.mxu0 %v401
        %511 = vmatprep.subr.mxu0 %v404
        %512 = vmatpush1.msra.mxu0 %v403
        %513 = vmatprep.subr.mxu0 %v406
        %514 = vmatpush1.msra.mxu0 %v405
        %515 = vmatprep.subr.mxu0 %v408
        %516 = vmatpush1.msra.mxu0 %v407
        %517 = vmatprep.subr.mxu0 %v410
        %518 = vmatpush1.msra.mxu0 %v409
        %519 = vmatprep.subr.mxu0 %v412
        %520 = vmatpush1.msra.mxu0 %v411
        %521 = vmatprep.subr.mxu0 %v414
        %522 = vmatpush1.msra.mxu0 %v413
        %523 = vmatprep.subr.mxu0 %v416
        %524 = vmatpush1.msra.mxu0 %v415
        %525 = vmatprep.subr.mxu0 %v418
        %526 = vmatpush1.msra.mxu0 %v417
        %527 = vmatprep.subr.mxu0 %v420
        %528 = vmatpush1.msra.mxu0 %v419
        %529 = vmatprep.subr.mxu0 %v422
        %530 = vmatpush1.msra.mxu0 %v421
        %531 = vmatprep.subr.mxu0 %v424
        %532 = vmatpush1.msra.mxu0 %v423
        %533 = vmatprep.subr.mxu0 %v426
        %534 = vmatpush1.msra.mxu0 %v425
        %535 = vmatprep.subr.mxu0 %v428
        %536 = vmatpush1.msra.mxu0 %v427
        %537 = vmatprep.subr.mxu0 %v430
        %538 = vmatpush1.msra.mxu0 %v429
        %539 = vmatprep.subr.mxu0 %v432
        %540 = vmatpush1.msra.mxu0 %v431
        %541 = vmatprep.subr.mxu0 %v434
        %542 = vmatpush1.msra.mxu0 %v433
        %543 = vmatprep.subr.mxu0 %v436
        %544 = vmatpush1.msra.mxu0 %v435
        %545 = vmatprep.subr.mxu0 %v438
        %546 = vmatpush1.msra.mxu0 %v437
        %547 = vmatprep.subr.mxu0 %v440
        %548 = vmatpush1.msra.mxu0 %v439
        %549 = vmatprep.subr.mxu0 %v442
        %550 = vmatpush1.msra.mxu0 %v441
        %551 = vmatprep.subr.mxu0 %v444
        %552 = vmatpush1.msra.mxu0 %v443
        %553 = vmatprep.subr.mxu0 %v446
        %554 = vmatpush1.msra.mxu0 %v445
        %555 = vmatprep.subr.mxu0 %v448
        %556 = vmatpush1.msra.mxu0 %v447
        %557 = vmatprep.subr.mxu0 %v450
        %558 = vmatpush1.msra.mxu0 %v449
        %559 = vmatprep.subr.mxu0 %v452
        %560 = vmatpush1.msra.mxu0 %v451
        %561 = vmatprep.subr.mxu0 %v454
        %562 = vmatpush1.msra.mxu0 %v453
        %563 = vmatprep.mubr.f32.mxu0 %v388
        %564 = vmatmul.mubr.f32.gmra.mrb[0].mxu0 %v387
        %v565 = vpop.f32.mrb[0].mxu0
        %v566 = vadd.f32 %v493, %v565
        %v567 = vpop.f32.mrb[0].mxu0
        %v568 = vadd.f32 %v493, %v567
        %569 = vdwg.mxu0
        %570 = vmatprep.subr.mxu0 %v456
        %571 = vmatpush1.msra.mxu0 %v455
        %572 = vmatprep.subr.mxu0 %v458
        %573 = vmatpush1.msra.mxu0 %v457
        %574 = vmatprep.subr.mxu0 %v460
        %575 = vmatpush1.msra.mxu0 %v459
        %576 = vmatprep.subr.mxu0 %v462
        %577 = vmatpush1.msra.mxu0 %v461
        %578 = vmatprep.subr.mxu0 %v464
        %579 = vmatpush1.msra.mxu0 %v463
        %580 = vmatprep.subr.mxu0 %v466
        %581 = vmatpush1.msra.mxu0 %v465
        %582 = vmatprep.subr.mxu0 %v468
        %583 = vmatpush1.msra.mxu0 %v467
        %584 = vmatprep.subr.mxu0 %v470
        %585 = vmatpush1.msra.mxu0 %v469
        %586 = vmatprep.subr.mxu0 %v472
        %587 = vmatpush1.msra.mxu0 %v471
        %588 = vmatprep.subr.mxu0 %v474
        %589 = vmatpush1.msra.mxu0 %v473
        %590 = vmatprep.subr.mxu0 %v476
        %591 = vmatpush1.msra.mxu0 %v475
        %592 = vmatprep.subr.mxu0 %v478
        %593 = vmatpush1.msra.mxu0 %v477
        %594 = vmatprep.subr.mxu0 %v480
        %595 = vmatpush1.msra.mxu0 %v479
        %596 = vmatprep.subr.mxu0 %v482
        %597 = vmatpush1.msra.mxu0 %v481
        %598 = vmatprep.subr.mxu0 %v484
        %599 = vmatpush1.msra.mxu0 %v483
        %600 = vmatprep.subr.mxu0 %v486
        %601 = vmatpush1.msra.mxu0 %v485
        %602 = vmatprep.subr.mxu0 %v488
        %603 = vmatpush1.msra.mxu0 %v487
        %604 = vmatprep.subr.mxu0 0.0
        %605 = vmatpush1.msra.mxu0 0.0
        %606 = vmatprep.subr.mxu0 0.0
        %607 = vmatpush1.msra.mxu0 0.0
        %608 = vmatprep.subr.mxu0 0.0
        %609 = vmatpush1.msra.mxu0 0.0
        %610 = vmatprep.subr.mxu0 0.0
        %611 = vmatpush1.msra.mxu0 0.0
        %612 = vmatprep.subr.mxu0 0.0
        %613 = vmatpush1.msra.mxu0 0.0
        %614 = vmatprep.subr.mxu0 0.0
        %615 = vmatpush1.msra.mxu0 0.0
        %616 = vmatprep.subr.mxu0 0.0
        %617 = vmatpush1.msra.mxu0 0.0
        %618 = vmatprep.subr.mxu0 0.0
        %619 = vmatpush1.msra.mxu0 0.0
        %620 = vmatprep.subr.mxu0 0.0
        %621 = vmatpush1.msra.mxu0 0.0
        %622 = vmatprep.subr.mxu0 0.0
        %623 = vmatpush1.msra.mxu0 0.0
        %624 = vmatprep.subr.mxu0 0.0
        %625 = vmatpush1.msra.mxu0 0.0
        %626 = vmatprep.subr.mxu0 0.0
        %627 = vmatpush1.msra.mxu0 0.0
        %628 = vmatprep.subr.mxu0 0.0
        %629 = vmatpush1.msra.mxu0 0.0
        %630 = vmatprep.subr.mxu0 0.0
        %631 = vmatpush1.msra.mxu0 0.0
        %632 = vmatprep.subr.mxu0 0.0
        %633 = vmatpush1.msra.mxu0 0.0
        %634 = vmatprep.mubr.f32.mxu0 %v497
        %635 = vmatmul.mubr.f32.gmra.mrb[0].mxu0 %v389
        %v636 = vpop.f32.mrb[0].mxu0
        %v637 = vadd.f32 %v566, %v636
        %v638 = vpop.f32.mrb[0].mxu0
        %v639 = vadd.f32 %v568, %v638
        %640 = vdwg.mxu0
        %v641 = vtanh.pop %v637
        %v642 = vtanh.pop %v639
        %643 = vst [vmem:[%s385] sm:$0xff] %v641
        %644 = vst [vmem:[%s385 + $0x8] sm:$0xff] %v642
        %s645 = smul.u32 2, %s14
        %p646 = scmp.lt.s32.totalorder %s645, 15
        %s647 = scalar_select %p646, %s645, 15
        %s648 = smul.addr %s647, 8
        %s649 = scalar_lea.vmem %s3, %s648
        // Predicated region
        $region56: #{resnet_generator_forward.37} parent=50 // pred_check
          %p650 = pneg %p100
        $region57: #{resnet_generator_forward.37} parent=50 // pred_check_branch
          %652 = sbr.rel (%p650) target = $region59
        $region58: #{resnet_generator_forward.37} parent=50 // pred_region
          %s653 = smul.u32 2, %s14
        $region59: #{resnet_generator_forward.37} parent=50 // pred_fallthru
          _
      $region51: #{resnet_generator_forward.37} parent=5 // pred_fallthru
        _
      %p654 = scmp.le.s32.totalorder 2, %s9
      // Predicated region
      $region60: #{resnet_generator_forward.37} parent=5 // pred_check
        %p655 = pneg %p654
      $region61: #{resnet_generator_forward.37} parent=5 // pred_check_branch
        %657 = sbr.rel (%p655) target = $region63
      $region62: #{resnet_generator_forward.37} parent=5 // pred_region
        %s658 = ssub.s32 %s9, 2
        // Predicated region
        $region64: #{resnet_generator_forward.37} parent=62 // pred_check
          %p659 = pneg %p106
        $region65: #{resnet_generator_forward.37} parent=62 // pred_check_branch
          %661 = sbr.rel (%p659) target = $region67
        $region66: #{resnet_generator_forward.37} parent=62 // pred_region
          %s662 = smul.u32 2, %s15
          %p663 = scmp.lt.s32.totalorder %s662, 15
          %s664 = scalar_select %p663, %s662, 15
          %s665 = smul.addr %s664, 8
          %s666 = scalar_lea.vmem %s3, %s665
        $region67: #{resnet_generator_forward.37} parent=62 // pred_fallthru
          _
      $region63: #{resnet_generator_forward.37} parent=5 // pred_fallthru
        _
    $region6: #{resnet_generator_forward.37} parent=1 // loop_footer
      %s13 = sadd.s32 1, %s9
    $region7: #{resnet_generator_forward.37} parent=1 // loop_footer_branch
      %8 = sbr.rel target = $region3
    $region8: #{resnet_generator_forward.37} parent=1 // loop_exit
      _

</llo_original>
